<compile_context>
chip_gen: v7x
topology: tpu7x:2x2x1
jax: 0.10.0
libtpu: 0.0.40
codegen_flags: <defaults>
</compile_context>

<pallas_src>
import numpy as np
import jax
import jax.numpy as jnp
from jax.experimental import pallas as pl
from jax.experimental.pallas import tpu as pltpu

_EPS = 1e-5

# Tap tables for ConvTranspose2d(kernel=4, stride=2, pad=1) decomposed into the 4
# output sub-pixel phases (di, dj) in {0,1}^2.  For output row 2m+di the
# contributing padded-input row offsets ho and kernel rows kh are:
#   di=0: (ho=0, kh=3), (ho=1, kh=1)        di=1: (ho=1, kh=2), (ho=2, kh=0)
# (same along the column/dj axis).  _K_OF[d][offset] -> kernel index (or missing).
_K_OF = ({0: 3, 1: 1}, {1: 2, 2: 0})


def _shift_weights(weight, c_pad):
    """weight (C_in, C_out, 4, 4) -> (9, C_in, 4*c_pad) per-(ho,wo)-shift weights.

    Column block s = 2*di + dj of shift g = 3*ho + wo holds weight[:, :, kh, kw]
    if phase (di, dj) uses row-shift ho (kernel row kh) and col-shift wo (kernel
    col kw); otherwise zeros.  Channels are zero-padded up to c_pad.
    """
    c_in, c_out = weight.shape[0], weight.shape[1]
    if c_pad != c_out:
        weight = jnp.pad(weight, ((0, 0), (0, c_pad - c_out), (0, 0), (0, 0)))
    zero = jnp.zeros((c_in, c_pad), weight.dtype)
    groups = []
    for ho in range(3):
        for wo in range(3):
            blocks = []
            for di in range(2):
                for dj in range(2):
                    kh = _K_OF[di].get(ho)
                    kw = _K_OF[dj].get(wo)
                    blocks.append(zero if (kh is None or kw is None)
                                  else weight[:, :, kh, kw])
            groups.append(jnp.concatenate(blocks, axis=1))      # (C_in, 4*c_pad)
    return jnp.stack(groups, axis=0)                            # (9, C_in, 4*c_pad)


def _padded_block_bytes(shape, dtype):
    """VMEM footprint of a block after (sublane, lane) layout padding."""
    itemsize = jnp.dtype(dtype).itemsize
    sublane = 8 * max(1, 4 // itemsize)        # 8 for f32, 16 for bf16
    s = list(shape)
    if len(s) >= 1:
        s[-1] = -(-s[-1] // 128) * 128
    if len(s) >= 2:
        s[-2] = -(-s[-2] // sublane) * sublane
    n = 1
    for d in s:
        n *= int(d)
    return n * itemsize


def upsample(x, weight, bias, out_dtype=jnp.bfloat16):
    """x: (B, C_in, H, W), weight: (C_in, C_out, 4, 4), bias: (C_out,) -> (B, C_out, 2H, 2W)."""
    del bias  # InstanceNorm2d(affine=False) cancels a per-channel constant shift.

    B, C_in, H, W = x.shape
    C_out = weight.shape[1]
    C_pad = -(-C_out // 32) * 32         # 4*C_pad is a multiple of 128 (lane-dense stores)
    n_cols = 4 * C_pad
    Wp = W + 2
    Hp = H * Wp                          # rows of the per-batch output slab
    rows = (H + 2) * Wp                  # rows of the flattened padded input
    rows_p = ((rows + 2 + 7) // 8) * 8   # >= rows + 2 (largest shift overruns by 2), 8-aligned

    # --- wrapper glue: one bf16 channels-last copy of the zero-padded input ---
    xf = x.astype(jnp.bfloat16)
    xf = jnp.pad(xf, ((0, 0), (0, 0), (1, 1), (1, 1)))
    xf = xf.transpose(0, 2, 3, 1).reshape(B, rows, C_in)
    xf = jnp.pad(xf, ((0, 0), (0, rows_p - rows), (0, 0)))
    wsh = _shift_weights(weight.astype(jnp.bfloat16), C_pad)    # (9, C_in, 4*C_pad) bf16

    inv_n = 1.0 / float(4 * H * W)

    def kernel(x_ref, w_ref, o_ref, acc_ref):
        # x_ref: (1, rows_p, C_in) bf16   w_ref: (9, C_in, n_cols) bf16
        # o_ref: (1, Hp, n_cols) out_dtype   acc_ref: (Hp, n_cols) f32 VMEM scratch
        # 9 accumulating MXU dots, one per (row-shift ho, col-shift wo).  20/36 of
        # the stacked phase blocks are zero (2.25x extra MXU flops, fine: memory-bound).
        for ho in range(3):
            for wo in range(3):
                g = 3 * ho + wo
                start = ho * Wp + wo
                slab = x_ref[0, start:start + Hp, :]             # contiguous sublane slice
                d = jnp.dot(slab, w_ref[g, :, :],
                            preferred_element_type=jnp.float32)
                if g == 0:
                    acc_ref[...] = d
                else:
                    acc_ref[...] += d

        acc = acc_ref[...]
        # Mask the 2 wrap-around garbage columns once; single-pass f32 stats.
        col = jax.lax.broadcasted_iota(jnp.int32, (Hp, 1), 0) % Wp
        accm = jnp.where(col < W, acc, 0.0)
        s1 = jnp.sum(accm, axis=0, keepdims=True)                # (1, n_cols)
        s2 = jnp.sum(accm * accm, axis=0, keepdims=True)         # (1, n_cols)
        # Fold the 4 sub-pixel phases of each output channel.
        s1c = (s1[:, :C_pad] + s1[:, C_pad:2 * C_pad]
               + s1[:, 2 * C_pad:3 * C_pad] + s1[:, 3 * C_pad:])
        s2c = (s2[:, :C_pad] + s2[:, C_pad:2 * C_pad]
               + s2[:, 2 * C_pad:3 * C_pad] + s2[:, 3 * C_pad:])
        mean = s1c * inv_n
        var = jnp.maximum(s2c * inv_n - mean * mean, 0.0)
        inv = jax.lax.rsqrt(var + _EPS)
        mean4 = jnp.concatenate([mean] * 4, axis=1)              # (1, n_cols)
        inv4 = jnp.concatenate([inv] * 4, axis=1)
        o_ref[0, :, :] = jnp.maximum((acc - mean4) * inv4, 0.0).astype(o_ref.dtype)

    # Scoped-VMEM request from the layout-padded block sizes.  Input/output/weight
    # blocks are double-buffered by the pipeline; the f32 accumulator is a single
    # scratch.  (The weight block is grid-invariant; its second buffer is wasted
    # VMEM but kept for compile robustness.)
    in_block = _padded_block_bytes((1, rows_p, C_in), jnp.bfloat16)
    w_block = _padded_block_bytes((9, C_in, n_cols), jnp.bfloat16)
    out_block = _padded_block_bytes((1, Hp, n_cols), out_dtype)
    acc_block = _padded_block_bytes((Hp, n_cols), jnp.float32)
    block_bytes = 2 * in_block + 2 * w_block + 2 * out_block + acc_block
    try:
        phys_vmem = int(getattr(pltpu.get_tpu_info(), "vmem_capacity_bytes",
                                64 * 2 ** 20))
    except Exception:
        phys_vmem = 64 * 2 ** 20
    cap = (phys_vmem * 4) // 5           # ~20% headroom for compiler internal scratch
    vmem_limit = int(max(32 * 2 ** 20,
                         min(cap, int(1.25 * block_bytes) + (2 << 20))))

    out = pl.pallas_call(
        kernel,
        out_shape=jax.ShapeDtypeStruct((B, Hp, n_cols), out_dtype),
        grid_spec=pltpu.PrefetchScalarGridSpec(
            num_scalar_prefetch=0,
            grid=(B,),
            in_specs=[
                pl.BlockSpec((1, rows_p, C_in), lambda b: (b, 0, 0)),
                pl.BlockSpec((9, C_in, n_cols), lambda b: (0, 0, 0)),
            ],
            out_specs=pl.BlockSpec((1, Hp, n_cols), lambda b: (b, 0, 0)),
            scratch_shapes=[pltpu.VMEM((Hp, n_cols), jnp.float32)],
        ),
        compiler_params=pltpu.CompilerParams(
            dimension_semantics=("parallel",),
            vmem_limit_bytes=vmem_limit,
        ),
    )(xf, wsh)

    # De-interleave the 4 sub-pixel phases back to NCHW (drop garbage columns and
    # channel pad), all in bf16.  TODO(synk): fuse this into the kernel's store.
    y = out.reshape(B, H, Wp, 2, 2, C_pad)[:, :, :W, :, :, :C_out]
    y = y.transpose(0, 5, 1, 3, 2, 4).reshape(B, C_out, 2 * H, 2 * W)
    return y


if __name__ == "__main__":
    B, C_in, C_out, H, W = 2, 4, 8, 16, 16
    key = jax.random.PRNGKey(0)
    kx, kw, kb = jax.random.split(key, 3)

    x = jax.random.normal(kx, (B, C_in, H, W), jnp.float32)
    bound = 1.0 / np.sqrt(C_in * 4 * 4)  # deterministic synthetic init (PyTorch-ish scale)
    w = jax.random.uniform(kw, (C_in, C_out, 4, 4), jnp.float32, -bound, bound)
    b = jax.random.uniform(kb, (C_out,), jnp.float32, -bound, bound)

    y = jax.block_until_ready(jax.jit(upsample)(x, w, b))

    # --- pure-numpy reference on the bf16-quantized inputs (kernel uses bf16 in,
    #     f32 accumulation): ConvTranspose2d(4,2,1) + InstanceNorm2d + ReLU ---
    xq = np.asarray(x.astype(jnp.bfloat16).astype(jnp.float32))
    wq = np.asarray(w.astype(jnp.bfloat16).astype(jnp.float32))
    bn = np.asarray(b)
    ref = np.zeros((B, C_out, 2 * H, 2 * W), np.float32)
    ref += bn[None, :, None, None]
    for ih in range(H):
        for kh in range(4):
            oh = ih * 2 - 1 + kh
            if not 0 <= oh < 2 * H:
                continue
            for iw in range(W):
                for kw_ in range(4):
                    ow = iw * 2 - 1 + kw_
                    if not 0 <= ow < 2 * W:
                        continue
                    ref[:, :, oh, ow] += xq[:, :, ih, iw] @ wq[:, :, kh, kw_]
    mean = ref.mean(axis=(2, 3), keepdims=True)
    var = ref.var(axis=(2, 3), keepdims=True)
    ref = np.maximum((ref - mean) / np.sqrt(var + _EPS), 0.0)

    assert y.shape == (B, C_out, 2 * H, 2 * W), y.shape
    np.testing.assert_allclose(np.asarray(y.astype(jnp.float32)), ref,
                               rtol=2e-2, atol=2e-2)
    print("KERNEL_OK")
</pallas_src>

<mosaic_0001>
module attributes {stable_mosaic.version = 11 : i64} {
  func.func @kernel(%arg0: i32, %arg1: memref<1x328x4xbf16, #tpu.memory_space<vmem>>, %arg2: memref<9x4x128xbf16, #tpu.memory_space<vmem>>, %arg3: memref<1x288x128xbf16, #tpu.memory_space<vmem>>, %arg4: memref<288x128xf32, #tpu.memory_space<vmem>>) attributes {dimension_semantics = [#tpu.dimension_semantics<parallel>], iteration_bounds = array<i64: 2>, scalar_prefetch = 0 : i64, scratch_operands = 1 : i64, tpu.core_type = #tpu.core_type<tc>, window_params = [{transform_indices = @transform_0, window_bounds = array<i64: 1, 328, 4>}, {pipeline_mode = #tpu.pipeline_mode<synchronous>, transform_indices = @transform_1, window_bounds = array<i64: 9, 4, 128>}, {transform_indices = @transform_2, window_bounds = array<i64: 1, 288, 128>}]} {
    %c0 = arith.constant 0 : index
    %c0_0 = arith.constant 0 : index
    %c0_1 = arith.constant 0 : index
    %0 = vector.load %arg1[%c0, %c0_0, %c0_1] : memref<1x328x4xbf16, #tpu.memory_space<vmem>>, vector<1x288x4xbf16>
    %1 = vector.shape_cast %0 : vector<1x288x4xbf16> to vector<288x4xbf16>
    %c0_2 = arith.constant 0 : index
    %c0_3 = arith.constant 0 : index
    %c0_4 = arith.constant 0 : index
    %2 = vector.load %arg2[%c0_2, %c0_3, %c0_4] : memref<9x4x128xbf16, #tpu.memory_space<vmem>>, vector<1x4x128xbf16>
    %3 = vector.shape_cast %2 : vector<1x4x128xbf16> to vector<4x128xbf16>
    %cst = arith.constant dense<0.000000e+00> : vector<288x128xf32>
    %4 = tpu.matmul %1, %3, %cst {dimension_numbers = #tpu.dot_dimension_numbers<[1], [0], [0], [1], [0, 0, 1, 1], [], []>} : vector<288x4xbf16>, vector<4x128xbf16>, vector<288x128xf32> -> vector<288x128xf32>
    %c0_5 = arith.constant 0 : index
    %c0_6 = arith.constant 0 : index
    %5 = vector.load %arg4[%c0_5, %c0_6] : memref<288x128xf32, #tpu.memory_space<vmem>>, vector<288x128xf32>
    tpu.vector_store %arg4[%c0_5, %c0_6], %4 {strides = array<i32>} : memref<288x128xf32, #tpu.memory_space<vmem>>, vector<288x128xf32>,
    %c0_7 = arith.constant 0 : index
    %c1 = arith.constant 1 : index
    %c0_8 = arith.constant 0 : index
    %6 = vector.load %arg1[%c0_7, %c1, %c0_8] : memref<1x328x4xbf16, #tpu.memory_space<vmem>>, vector<1x288x4xbf16>
    %7 = vector.shape_cast %6 : vector<1x288x4xbf16> to vector<288x4xbf16>
    %c1_9 = arith.constant 1 : index
    %c0_10 = arith.constant 0 : index
    %c0_11 = arith.constant 0 : index
    %8 = vector.load %arg2[%c1_9, %c0_10, %c0_11] : memref<9x4x128xbf16, #tpu.memory_space<vmem>>, vector<1x4x128xbf16>
    %9 = vector.shape_cast %8 : vector<1x4x128xbf16> to vector<4x128xbf16>
    %cst_12 = arith.constant dense<0.000000e+00> : vector<288x128xf32>
    %10 = tpu.matmul %7, %9, %cst_12 {dimension_numbers = #tpu.dot_dimension_numbers<[1], [0], [0], [1], [0, 0, 1, 1], [], []>} : vector<288x4xbf16>, vector<4x128xbf16>, vector<288x128xf32> -> vector<288x128xf32>
    %c0_13 = arith.constant 0 : index
    %c0_14 = arith.constant 0 : index
    %11 = vector.load %arg4[%c0_13, %c0_14] : memref<288x128xf32, #tpu.memory_space<vmem>>, vector<288x128xf32>
    %12 = arith.addf %11, %10 : vector<288x128xf32>
    %c0_15 = arith.constant 0 : index
    %c0_16 = arith.constant 0 : index
    %13 = vector.load %arg4[%c0_15, %c0_16] : memref<288x128xf32, #tpu.memory_space<vmem>>, vector<288x128xf32>
    tpu.vector_store %arg4[%c0_15, %c0_16], %12 {strides = array<i32>} : memref<288x128xf32, #tpu.memory_space<vmem>>, vector<288x128xf32>,
    %c0_17 = arith.constant 0 : index
    %c2 = arith.constant 2 : index
    %c0_18 = arith.constant 0 : index
    %14 = vector.load %arg1[%c0_17, %c2, %c0_18] : memref<1x328x4xbf16, #tpu.memory_space<vmem>>, vector<1x288x4xbf16>
    %15 = vector.shape_cast %14 : vector<1x288x4xbf16> to vector<288x4xbf16>
    %c2_19 = arith.constant 2 : index
    %c0_20 = arith.constant 0 : index
    %c0_21 = arith.constant 0 : index
    %16 = vector.load %arg2[%c2_19, %c0_20, %c0_21] : memref<9x4x128xbf16, #tpu.memory_space<vmem>>, vector<1x4x128xbf16>
    %17 = vector.shape_cast %16 : vector<1x4x128xbf16> to vector<4x128xbf16>
    %cst_22 = arith.constant dense<0.000000e+00> : vector<288x128xf32>
    %18 = tpu.matmul %15, %17, %cst_22 {dimension_numbers = #tpu.dot_dimension_numbers<[1], [0], [0], [1], [0, 0, 1, 1], [], []>} : vector<288x4xbf16>, vector<4x128xbf16>, vector<288x128xf32> -> vector<288x128xf32>
    %c0_23 = arith.constant 0 : index
    %c0_24 = arith.constant 0 : index
    %19 = vector.load %arg4[%c0_23, %c0_24] : memref<288x128xf32, #tpu.memory_space<vmem>>, vector<288x128xf32>
    %20 = arith.addf %19, %18 : vector<288x128xf32>
    %c0_25 = arith.constant 0 : index
    %c0_26 = arith.constant 0 : index
    %21 = vector.load %arg4[%c0_25, %c0_26] : memref<288x128xf32, #tpu.memory_space<vmem>>, vector<288x128xf32>
    tpu.vector_store %arg4[%c0_25, %c0_26], %20 {strides = array<i32>} : memref<288x128xf32, #tpu.memory_space<vmem>>, vector<288x128xf32>,
    %c0_27 = arith.constant 0 : index
    %c18 = arith.constant 18 : index
    %c0_28 = arith.constant 0 : index
    %22 = vector.load %arg1[%c0_27, %c18, %c0_28] : memref<1x328x4xbf16, #tpu.memory_space<vmem>>, vector<1x288x4xbf16>
    %23 = vector.shape_cast %22 : vector<1x288x4xbf16> to vector<288x4xbf16>
    %c3 = arith.constant 3 : index
    %c0_29 = arith.constant 0 : index
    %c0_30 = arith.constant 0 : index
    %24 = vector.load %arg2[%c3, %c0_29, %c0_30] : memref<9x4x128xbf16, #tpu.memory_space<vmem>>, vector<1x4x128xbf16>
    %25 = vector.shape_cast %24 : vector<1x4x128xbf16> to vector<4x128xbf16>
    %cst_31 = arith.constant dense<0.000000e+00> : vector<288x128xf32>
    %26 = tpu.matmul %23, %25, %cst_31 {dimension_numbers = #tpu.dot_dimension_numbers<[1], [0], [0], [1], [0, 0, 1, 1], [], []>} : vector<288x4xbf16>, vector<4x128xbf16>, vector<288x128xf32> -> vector<288x128xf32>
    %c0_32 = arith.constant 0 : index
    %c0_33 = arith.constant 0 : index
    %27 = vector.load %arg4[%c0_32, %c0_33] : memref<288x128xf32, #tpu.memory_space<vmem>>, vector<288x128xf32>
    %28 = arith.addf %27, %26 : vector<288x128xf32>
    %c0_34 = arith.constant 0 : index
    %c0_35 = arith.constant 0 : index
    %29 = vector.load %arg4[%c0_34, %c0_35] : memref<288x128xf32, #tpu.memory_space<vmem>>, vector<288x128xf32>
    tpu.vector_store %arg4[%c0_34, %c0_35], %28 {strides = array<i32>} : memref<288x128xf32, #tpu.memory_space<vmem>>, vector<288x128xf32>,
    %c0_36 = arith.constant 0 : index
    %c19 = arith.constant 19 : index
    %c0_37 = arith.constant 0 : index
    %30 = vector.load %arg1[%c0_36, %c19, %c0_37] : memref<1x328x4xbf16, #tpu.memory_space<vmem>>, vector<1x288x4xbf16>
    %31 = vector.shape_cast %30 : vector<1x288x4xbf16> to vector<288x4xbf16>
    %c4 = arith.constant 4 : index
    %c0_38 = arith.constant 0 : index
    %c0_39 = arith.constant 0 : index
    %32 = vector.load %arg2[%c4, %c0_38, %c0_39] : memref<9x4x128xbf16, #tpu.memory_space<vmem>>, vector<1x4x128xbf16>
    %33 = vector.shape_cast %32 : vector<1x4x128xbf16> to vector<4x128xbf16>
    %cst_40 = arith.constant dense<0.000000e+00> : vector<288x128xf32>
    %34 = tpu.matmul %31, %33, %cst_40 {dimension_numbers = #tpu.dot_dimension_numbers<[1], [0], [0], [1], [0, 0, 1, 1], [], []>} : vector<288x4xbf16>, vector<4x128xbf16>, vector<288x128xf32> -> vector<288x128xf32>
    %c0_41 = arith.constant 0 : index
    %c0_42 = arith.constant 0 : index
    %35 = vector.load %arg4[%c0_41, %c0_42] : memref<288x128xf32, #tpu.memory_space<vmem>>, vector<288x128xf32>
    %36 = arith.addf %35, %34 : vector<288x128xf32>
    %c0_43 = arith.constant 0 : index
    %c0_44 = arith.constant 0 : index
    %37 = vector.load %arg4[%c0_43, %c0_44] : memref<288x128xf32, #tpu.memory_space<vmem>>, vector<288x128xf32>
    tpu.vector_store %arg4[%c0_43, %c0_44], %36 {strides = array<i32>} : memref<288x128xf32, #tpu.memory_space<vmem>>, vector<288x128xf32>,
    %c0_45 = arith.constant 0 : index
    %c20 = arith.constant 20 : index
    %c0_46 = arith.constant 0 : index
    %38 = vector.load %arg1[%c0_45, %c20, %c0_46] : memref<1x328x4xbf16, #tpu.memory_space<vmem>>, vector<1x288x4xbf16>
    %39 = vector.shape_cast %38 : vector<1x288x4xbf16> to vector<288x4xbf16>
    %c5 = arith.constant 5 : index
    %c0_47 = arith.constant 0 : index
    %c0_48 = arith.constant 0 : index
    %40 = vector.load %arg2[%c5, %c0_47, %c0_48] : memref<9x4x128xbf16, #tpu.memory_space<vmem>>, vector<1x4x128xbf16>
    %41 = vector.shape_cast %40 : vector<1x4x128xbf16> to vector<4x128xbf16>
    %cst_49 = arith.constant dense<0.000000e+00> : vector<288x128xf32>
    %42 = tpu.matmul %39, %41, %cst_49 {dimension_numbers = #tpu.dot_dimension_numbers<[1], [0], [0], [1], [0, 0, 1, 1], [], []>} : vector<288x4xbf16>, vector<4x128xbf16>, vector<288x128xf32> -> vector<288x128xf32>
    %c0_50 = arith.constant 0 : index
    %c0_51 = arith.constant 0 : index
    %43 = vector.load %arg4[%c0_50, %c0_51] : memref<288x128xf32, #tpu.memory_space<vmem>>, vector<288x128xf32>
    %44 = arith.addf %43, %42 : vector<288x128xf32>
    %c0_52 = arith.constant 0 : index
    %c0_53 = arith.constant 0 : index
    %45 = vector.load %arg4[%c0_52, %c0_53] : memref<288x128xf32, #tpu.memory_space<vmem>>, vector<288x128xf32>
    tpu.vector_store %arg4[%c0_52, %c0_53], %44 {strides = array<i32>} : memref<288x128xf32, #tpu.memory_space<vmem>>, vector<288x128xf32>,
    %c0_54 = arith.constant 0 : index
    %c36 = arith.constant 36 : index
    %c0_55 = arith.constant 0 : index
    %46 = vector.load %arg1[%c0_54, %c36, %c0_55] : memref<1x328x4xbf16, #tpu.memory_space<vmem>>, vector<1x288x4xbf16>
    %47 = vector.shape_cast %46 : vector<1x288x4xbf16> to vector<288x4xbf16>
    %c6 = arith.constant 6 : index
    %c0_56 = arith.constant 0 : index
    %c0_57 = arith.constant 0 : index
    %48 = vector.load %arg2[%c6, %c0_56, %c0_57] : memref<9x4x128xbf16, #tpu.memory_space<vmem>>, vector<1x4x128xbf16>
    %49 = vector.shape_cast %48 : vector<1x4x128xbf16> to vector<4x128xbf16>
    %cst_58 = arith.constant dense<0.000000e+00> : vector<288x128xf32>
    %50 = tpu.matmul %47, %49, %cst_58 {dimension_numbers = #tpu.dot_dimension_numbers<[1], [0], [0], [1], [0, 0, 1, 1], [], []>} : vector<288x4xbf16>, vector<4x128xbf16>, vector<288x128xf32> -> vector<288x128xf32>
    %c0_59 = arith.constant 0 : index
    %c0_60 = arith.constant 0 : index
    %51 = vector.load %arg4[%c0_59, %c0_60] : memref<288x128xf32, #tpu.memory_space<vmem>>, vector<288x128xf32>
    %52 = arith.addf %51, %50 : vector<288x128xf32>
    %c0_61 = arith.constant 0 : index
    %c0_62 = arith.constant 0 : index
    %53 = vector.load %arg4[%c0_61, %c0_62] : memref<288x128xf32, #tpu.memory_space<vmem>>, vector<288x128xf32>
    tpu.vector_store %arg4[%c0_61, %c0_62], %52 {strides = array<i32>} : memref<288x128xf32, #tpu.memory_space<vmem>>, vector<288x128xf32>,
    %c0_63 = arith.constant 0 : index
    %c37 = arith.constant 37 : index
    %c0_64 = arith.constant 0 : index
    %54 = vector.load %arg1[%c0_63, %c37, %c0_64] : memref<1x328x4xbf16, #tpu.memory_space<vmem>>, vector<1x288x4xbf16>
    %55 = vector.shape_cast %54 : vector<1x288x4xbf16> to vector<288x4xbf16>
    %c7 = arith.constant 7 : index
    %c0_65 = arith.constant 0 : index
    %c0_66 = arith.constant 0 : index
    %56 = vector.load %arg2[%c7, %c0_65, %c0_66] : memref<9x4x128xbf16, #tpu.memory_space<vmem>>, vector<1x4x128xbf16>
    %57 = vector.shape_cast %56 : vector<1x4x128xbf16> to vector<4x128xbf16>
    %cst_67 = arith.constant dense<0.000000e+00> : vector<288x128xf32>
    %58 = tpu.matmul %55, %57, %cst_67 {dimension_numbers = #tpu.dot_dimension_numbers<[1], [0], [0], [1], [0, 0, 1, 1], [], []>} : vector<288x4xbf16>, vector<4x128xbf16>, vector<288x128xf32> -> vector<288x128xf32>
    %c0_68 = arith.constant 0 : index
    %c0_69 = arith.constant 0 : index
    %59 = vector.load %arg4[%c0_68, %c0_69] : memref<288x128xf32, #tpu.memory_space<vmem>>, vector<288x128xf32>
    %60 = arith.addf %59, %58 : vector<288x128xf32>
    %c0_70 = arith.constant 0 : index
    %c0_71 = arith.constant 0 : index
    %61 = vector.load %arg4[%c0_70, %c0_71] : memref<288x128xf32, #tpu.memory_space<vmem>>, vector<288x128xf32>
    tpu.vector_store %arg4[%c0_70, %c0_71], %60 {strides = array<i32>} : memref<288x128xf32, #tpu.memory_space<vmem>>, vector<288x128xf32>,
    %c0_72 = arith.constant 0 : index
    %c38 = arith.constant 38 : index
    %c0_73 = arith.constant 0 : index
    %62 = vector.load %arg1[%c0_72, %c38, %c0_73] : memref<1x328x4xbf16, #tpu.memory_space<vmem>>, vector<1x288x4xbf16>
    %63 = vector.shape_cast %62 : vector<1x288x4xbf16> to vector<288x4xbf16>
    %c8 = arith.constant 8 : index
    %c0_74 = arith.constant 0 : index
    %c0_75 = arith.constant 0 : index
    %64 = vector.load %arg2[%c8, %c0_74, %c0_75] : memref<9x4x128xbf16, #tpu.memory_space<vmem>>, vector<1x4x128xbf16>
    %65 = vector.shape_cast %64 : vector<1x4x128xbf16> to vector<4x128xbf16>
    %cst_76 = arith.constant dense<0.000000e+00> : vector<288x128xf32>
    %66 = tpu.matmul %63, %65, %cst_76 {dimension_numbers = #tpu.dot_dimension_numbers<[1], [0], [0], [1], [0, 0, 1, 1], [], []>} : vector<288x4xbf16>, vector<4x128xbf16>, vector<288x128xf32> -> vector<288x128xf32>
    %c0_77 = arith.constant 0 : index
    %c0_78 = arith.constant 0 : index
    %67 = vector.load %arg4[%c0_77, %c0_78] : memref<288x128xf32, #tpu.memory_space<vmem>>, vector<288x128xf32>
    %68 = arith.addf %67, %66 : vector<288x128xf32>
    %c0_79 = arith.constant 0 : index
    %c0_80 = arith.constant 0 : index
    %69 = vector.load %arg4[%c0_79, %c0_80] : memref<288x128xf32, #tpu.memory_space<vmem>>, vector<288x128xf32>
    tpu.vector_store %arg4[%c0_79, %c0_80], %68 {strides = array<i32>} : memref<288x128xf32, #tpu.memory_space<vmem>>, vector<288x128xf32>,
    %c0_81 = arith.constant 0 : index
    %c0_82 = arith.constant 0 : index
    %70 = vector.load %arg4[%c0_81, %c0_82] : memref<288x128xf32, #tpu.memory_space<vmem>>, vector<288x128xf32>
    %71 = tpu.iota {dimensions = array<i32: 0>} : vector<288x1xi32>
    %c18_i32 = arith.constant 18 : i32
    %c0_i32 = arith.constant 0 : i32
    %72 = arith.cmpi eq, %c18_i32, %c0_i32 : i32
    %c1_i32 = arith.constant 1 : i32
    %73 = arith.select %72, %c1_i32, %c18_i32 : i32
    %74 = vector.broadcast %73 : i32 to vector<288x1xi32>
    %75 = arith.remsi %71, %74 : vector<288x1xi32>
    %c0_i32_83 = arith.constant 0 : i32
    %76 = vector.broadcast %c0_i32_83 : i32 to vector<288x1xi32>
    %77 = arith.cmpi ne, %75, %76 : vector<288x1xi32>
    %c0_i32_84 = arith.constant 0 : i32
    %78 = vector.broadcast %c0_i32_84 : i32 to vector<288x1xi32>
    %79 = arith.cmpi slt, %75, %78 : vector<288x1xi32>
    %c0_i32_85 = arith.constant 0 : i32
    %80 = arith.cmpi slt, %73, %c0_i32_85 : i32
    %81 = vector.broadcast %80 : i1 to vector<288x1xi1>
    %82 = vector.broadcast %81 : vector<288x1xi1> to vector<288x1xi1>
    %83 = arith.xori %79, %82 : vector<288x1xi1>
    %84 = arith.andi %83, %77 : vector<288x1xi1>
    %85 = vector.broadcast %73 : i32 to vector<288x1xi32>
    %86 = arith.addi %75, %85 : vector<288x1xi32>
    %87 = arith.select %84, %86, %75 : vector<288x1xi1>, vector<288x1xi32>
    %c16_i32 = arith.constant 16 : i32
    %88 = vector.broadcast %c16_i32 : i32 to vector<288x1xi32>
    %89 = arith.cmpi slt, %87, %88 : vector<288x1xi32>
    %cst_86 = arith.constant 0.000000e+00 : f32
    %90 = vector.shape_cast %89 : vector<288x1xi1> to vector<288x1xi1>
    %91 = vector.broadcast %90 : vector<288x1xi1> to vector<288x128xi1>
    %92 = vector.broadcast %cst_86 : f32 to vector<288x128xf32>
    %93 = arith.select %91, %70, %92 : vector<288x128xi1>, vector<288x128xf32>
    %cst_87 = arith.constant dense<0.000000e+00> : vector<128xf32>
    %94 = vector.multi_reduction <add>, %93, %cst_87 [0] : vector<288x128xf32> to vector<128xf32>
    %95 = vector.shape_cast %94 : vector<128xf32> to vector<1x128xf32>
    %96 = arith.mulf %93, %93 : vector<288x128xf32>
    %cst_88 = arith.constant dense<0.000000e+00> : vector<128xf32>
    %97 = vector.multi_reduction <add>, %96, %cst_88 [0] : vector<288x128xf32> to vector<128xf32>
    %98 = vector.shape_cast %97 : vector<128xf32> to vector<1x128xf32>
    %99 = vector.extract_strided_slice %95 {offsets = [0, 0], sizes = [1, 32], strides = [1, 1]} : vector<1x128xf32> to vector<1x32xf32>
    %100 = vector.extract_strided_slice %95 {offsets = [0, 32], sizes = [1, 32], strides = [1, 1]} : vector<1x128xf32> to vector<1x32xf32>
    %101 = arith.addf %99, %100 : vector<1x32xf32>
    %102 = vector.extract_strided_slice %95 {offsets = [0, 64], sizes = [1, 32], strides = [1, 1]} : vector<1x128xf32> to vector<1x32xf32>
    %103 = arith.addf %101, %102 : vector<1x32xf32>
    %104 = vector.extract_strided_slice %95 {offsets = [0, 96], sizes = [1, 32], strides = [1, 1]} : vector<1x128xf32> to vector<1x32xf32>
    %105 = arith.addf %103, %104 : vector<1x32xf32>
    %106 = vector.extract_strided_slice %98 {offsets = [0, 0], sizes = [1, 32], strides = [1, 1]} : vector<1x128xf32> to vector<1x32xf32>
    %107 = vector.extract_strided_slice %98 {offsets = [0, 32], sizes = [1, 32], strides = [1, 1]} : vector<1x128xf32> to vector<1x32xf32>
    %108 = arith.addf %106, %107 : vector<1x32xf32>
    %109 = vector.extract_strided_slice %98 {offsets = [0, 64], sizes = [1, 32], strides = [1, 1]} : vector<1x128xf32> to vector<1x32xf32>
    %110 = arith.addf %108, %109 : vector<1x32xf32>
    %111 = vector.extract_strided_slice %98 {offsets = [0, 96], sizes = [1, 32], strides = [1, 1]} : vector<1x128xf32> to vector<1x32xf32>
    %112 = arith.addf %110, %111 : vector<1x32xf32>
    %cst_89 = arith.constant 9.765625E-4 : f32
    %113 = vector.broadcast %cst_89 : f32 to vector<1x32xf32>
    %114 = arith.mulf %105, %113 : vector<1x32xf32>
    %cst_90 = arith.constant 9.765625E-4 : f32
    %115 = vector.broadcast %cst_90 : f32 to vector<1x32xf32>
    %116 = arith.mulf %112, %115 : vector<1x32xf32>
    %117 = arith.mulf %114, %114 : vector<1x32xf32>
    %118 = arith.subf %116, %117 : vector<1x32xf32>
    %cst_91 = arith.constant 0.000000e+00 : f32
    %119 = vector.broadcast %cst_91 : f32 to vector<1x32xf32>
    %120 = arith.maximumf %118, %119 : vector<1x32xf32>
    %cst_92 = arith.constant 9.99999974E-6 : f32
    %121 = vector.broadcast %cst_92 : f32 to vector<1x32xf32>
    %122 = arith.addf %120, %121 : vector<1x32xf32>
    %123 = math.rsqrt %122 : vector<1x32xf32>
    %124 = tpu.concatenate %114, %114, %114, %114 in 1 : vector<1x32xf32>, vector<1x32xf32>, vector<1x32xf32>, vector<1x32xf32> -> vector<1x128xf32>
    %125 = tpu.concatenate %123, %123, %123, %123 in 1 : vector<1x32xf32>, vector<1x32xf32>, vector<1x32xf32>, vector<1x32xf32> -> vector<1x128xf32>
    %126 = vector.broadcast %124 : vector<1x128xf32> to vector<288x128xf32>
    %127 = arith.subf %70, %126 : vector<288x128xf32>
    %128 = vector.broadcast %125 : vector<1x128xf32> to vector<288x128xf32>
    %129 = arith.mulf %127, %128 : vector<288x128xf32>
    %cst_93 = arith.constant 0.000000e+00 : f32
    %130 = vector.broadcast %cst_93 : f32 to vector<288x128xf32>
    %131 = arith.maximumf %129, %130 : vector<288x128xf32>
    %132 = arith.truncf %131 : vector<288x128xf32> to vector<288x128xbf16>
    %c0_94 = arith.constant 0 : index
    %c0_95 = arith.constant 0 : index
    %c0_96 = arith.constant 0 : index
    %133 = vector.load %arg3[%c0_94, %c0_95, %c0_96] : memref<1x288x128xbf16, #tpu.memory_space<vmem>>, vector<1x288x128xbf16>
    %134 = vector.shape_cast %133 : vector<1x288x128xbf16> to vector<288x128xbf16>
    %135 = vector.shape_cast %132 : vector<288x128xbf16> to vector<1x288x128xbf16>
    tpu.vector_store %arg3[%c0_94, %c0_95, %c0_96], %135 {strides = array<i32>} : memref<1x288x128xbf16, #tpu.memory_space<vmem>>, vector<1x288x128xbf16>,
    return
  }
  func.func @transform_0(%arg0: i32) -> (i32, i32, i32) {
    %c0_i32 = arith.constant 0 : i32
    %c0_i32_0 = arith.constant 0 : i32
    %c0_i32_1 = arith.constant 0 : i32
    return %arg0, %c0_i32, %c0_i32_0 : i32, i32, i32
  }
  func.func @transform_1(%arg0: i32) -> (i32, i32, i32) {
    %c0_i32 = arith.constant 0 : i32
    %c0_i32_0 = arith.constant 0 : i32
    %c0_i32_1 = arith.constant 0 : i32
    %c0_i32_2 = arith.constant 0 : i32
    return %c0_i32, %c0_i32_0, %c0_i32_1 : i32, i32, i32
  }
  func.func @transform_2(%arg0: i32) -> (i32, i32, i32) {
    %c0_i32 = arith.constant 0 : i32
    %c0_i32_0 = arith.constant 0 : i32
    %c0_i32_1 = arith.constant 0 : i32
    return %arg0, %c0_i32, %c0_i32_0 : i32, i32, i32
  }
}

</mosaic_0001>

<llo_original>
// kernel: upsample.1
$region0: #{upsample.1}
  #allocation0 [shape = 'u32[]', space=smem, size = 0x4, offset = 0x4, fixed_abs, tag = 'smem constant byte address 0x4 - core index']
  #allocation1 [shape = 'u32[144,128]{1,0:T(1,128)}', space=vmem, size = 0x12000, scoped, tag = 'internal scratch']
  #allocation2 [shape = 'f32[288,128]{1,0:T(8,128)}', space=vmem, size = 0x24000, scoped, tag = 'scratch operand']
  %s0 = inlined_call_operand.vmem [shape: bf16[2,328,4], index: 0, kind: input, shape index: {}]
  %s1 = inlined_call_operand.vmem [shape: bf16[9,4,128], index: 1, kind: input, shape index: {}]
  %s2 = inlined_call_operand.vmem [shape: bf16[2,288,128], index: 2, kind: output, shape index: {}]
  %s3 = sld [smem:[#allocation0]]
  $region41: #{upsample.1} parent=0
    _
  %s5 = ssub.s32 1, %s3
  %s6 = scalar_select 0, %s5, %s3
  loop: start=0, step=1, limit=4
  $region2: #{upsample.1} parent=0 // loop_pre_header
    _
  $region3: #{upsample.1} parent=0 // loop_header
    %s8 = sphi 0, %s12
    %p9 = scmp.ge.s32.totalorder %s8, 4
    %s18 = sphi 0, %s20
    %s21 = sphi 0, %s18
    %s22 = sphi 0, %s21
    %s38 = sphi 0, %s22
    %s42 = sphi 0, %s42
    %s44 = sphi 0, %s42
    %s45 = sphi 0, %s44
    %s59 = sphi 0, %s45
    %s65 = sphi 0, %s67
    %s68 = sphi 0, %s65
    %s69 = sphi 0, %s68
    %s85 = sphi 0, %s69
  $region4: #{upsample.1} parent=0 // loop_header_branch
    %11 = sbr.rel (%p9) target = $region8
  $region5: #{upsample.1} parent=0 // loop_body
    %s13 = ssub.s32 %s8, 1
    %s14 = ssub.s32 %s8, 2
    %s15 = sadd.s32 %s8, 1
    %s16 = ssub.s32 %s8, %s15
    %p17 = scmp.eq.s32.totalorder %s16, 0
    %s19 = sadd.s32 %s18, 1
    %s20 = scalar_select %p17, %s18, %s19
    %p23 = pneg %p17
    %p24 = scmp.eq.s32.totalorder %s8, 1
    %p25 = por %p23, %p24
    %p26 = scmp.ne.s32.totalorder %s18, %s21
    %p27 = scmp.eq.s32.totalorder %s8, 0
    %p28 = por %p26, %p27
    %p29 = scmp.ne.s32.totalorder %s18, %s21
    %p30 = scmp.eq.s32.totalorder %s13, 1
    %p31 = por %p29, %p30
    %p32 = scmp.ne.s32.totalorder %s21, %s22
    %p33 = scmp.eq.s32.totalorder %s13, 0
    %p34 = por %p32, %p33
    %p35 = scmp.ne.s32.totalorder %s21, %s22
    %p36 = scmp.eq.s32.totalorder %s14, 1
    %p37 = por %p35, %p36
    %p39 = scmp.ne.s32.totalorder %s22, %s38
    %p40 = scmp.eq.s32.totalorder %s14, 0
    %p41 = por %p39, %p40
    %s43 = sadd.s32 %s42, 1
    %p46 = scmp.eq.s32.totalorder %s8, 1
    %p47 = scmp.ne.s32.totalorder %s42, %s44
    %p48 = scmp.eq.s32.totalorder %s8, 0
    %p49 = por %p47, %p48
    %p50 = scmp.ne.s32.totalorder %s42, %s44
    %p51 = scmp.eq.s32.totalorder %s13, 1
    %p52 = por %p50, %p51
    %p53 = scmp.ne.s32.totalorder %s44, %s45
    %p54 = scmp.eq.s32.totalorder %s13, 0
    %p55 = por %p53, %p54
    %p56 = scmp.ne.s32.totalorder %s44, %s45
    %p57 = scmp.eq.s32.totalorder %s14, 1
    %p58 = por %p56, %p57
    %p60 = scmp.ne.s32.totalorder %s45, %s59
    %p61 = scmp.eq.s32.totalorder %s14, 0
    %p62 = por %p60, %p61
    %s63 = ssub.s32 %s8, %s15
    %p64 = scmp.eq.s32.totalorder %s63, 0
    %s66 = sadd.s32 %s65, 1
    %s67 = scalar_select %p64, %s65, %s66
    %p70 = pneg %p64
    %p71 = scmp.eq.s32.totalorder %s8, 1
    %p72 = por %p70, %p71
    %p73 = scmp.ne.s32.totalorder %s65, %s68
    %p74 = scmp.eq.s32.totalorder %s8, 0
    %p75 = por %p73, %p74
    %p76 = scmp.ne.s32.totalorder %s65, %s68
    %p77 = scmp.eq.s32.totalorder %s13, 1
    %p78 = por %p76, %p77
    %p79 = scmp.ne.s32.totalorder %s68, %s69
    %p80 = scmp.eq.s32.totalorder %s13, 0
    %p81 = por %p79, %p80
    %p82 = scmp.ne.s32.totalorder %s68, %s69
    %p83 = scmp.eq.s32.totalorder %s14, 1
    %p84 = por %p82, %p83
    %p86 = scmp.ne.s32.totalorder %s69, %s85
    %p87 = scmp.eq.s32.totalorder %s14, 0
    %p88 = por %p86, %p87
    %p89 = scmp.le.s32.totalorder 1, %s8
    %p90 = scmp.lt.s32.totalorder %s8, 3
    %p91 = pnand %p89, %p90
    %p92 = pneg %p91
    // Predicated region
    $region9: #{upsample.1} parent=5 // pred_check
      _
    $region10: #{upsample.1} parent=5 // pred_check_branch
      %94 = sbr.rel (%p91) target = $region12
    $region11: #{upsample.1} parent=5 // pred_region
      %s95 = ssub.s32 %s8, 1
      // Predicated region
      $region13: #{upsample.1} parent=11 // pred_check
        %p96 = pneg %p55
      $region14: #{upsample.1} parent=11 // pred_check_branch
        %98 = sbr.rel (%p96) target = $region16
      $region15: #{upsample.1} parent=11 // pred_region
        _
      $region16: #{upsample.1} parent=11 // pred_fallthru
        _
    $region12: #{upsample.1} parent=5 // pred_fallthru
      _
    %p99 = scmp.lt.s32.totalorder %s8, 2
    // Predicated region
    $region17: #{upsample.1} parent=5 // pred_check
      %p100 = pneg %p99
    $region18: #{upsample.1} parent=5 // pred_check_branch
      %102 = sbr.rel (%p100) target = $region20
    $region19: #{upsample.1} parent=5 // pred_region
      // Predicated region
      $region21: #{upsample.1} parent=19 // pred_check
        %p103 = pneg %p28
      $region22: #{upsample.1} parent=19 // pred_check_branch
        %105 = sbr.rel (%p103) target = $region24
      $region23: #{upsample.1} parent=19 // pred_region
        %p106 = scmp.lt.s32.totalorder %s8, 1
        %s107 = scalar_select %p106, %s8, 1
        %s108 = smul.addr %s107, 41
        %s109 = smul.addr %s108, 4
        %s110 = scalar_lea.vmem %s0, %s109
      $region24: #{upsample.1} parent=19 // pred_fallthru
        _
    $region20: #{upsample.1} parent=5 // pred_fallthru
      _
    %p111 = scmp.le.s32.totalorder 1, %s8
    %p112 = scmp.lt.s32.totalorder %s8, 3
    %p113 = pnand %p111, %p112
    %p114 = pneg %p113
    // Predicated region
    $region25: #{upsample.1} parent=5 // pred_check
      _
    $region26: #{upsample.1} parent=5 // pred_check_branch
      %116 = sbr.rel (%p113) target = $region28
    $region27: #{upsample.1} parent=5 // pred_region
      %s117 = ssub.s32 %s8, 1
      %p118 = scmp.lt.s32.totalorder %s13, 1
      %s119 = scalar_select %p118, %s13, 1
      %s120 = smul.addr %s119, 41
      %s121 = smul.addr %s120, 4
      %s122 = scalar_lea.vmem %s0, %s121
      %p123 = pneg %p34
      %p124 = pneg %p31
      %p125 = pneg %p55
      %p126 = pneg %p52
      %p127 = pneg %p81
      %p128 = pneg %p78
      %p129 = scmp.lt.s32.totalorder %s13, 1
      %s130 = scalar_select %p129, %s13, 1
      %s131 = smul.addr %s130, 36
      %s132 = smul.addr %s131, 4
      %s133 = scalar_lea.vmem %s2, %s132
      %p134 = scmp.lt.s32.totalorder %s13, 1
      %s135 = scalar_select %p134, %s13, 1
      %s136 = smul.addr %s135, 41
      %s137 = smul.addr %s136, 4
      %s138 = scalar_lea.vmem %s0, %s137
      %p139 = scmp.lt.s32.totalorder %s13, 1
      %s140 = scalar_select %p139, %s13, 1
      %s141 = smul.addr %s140, 36
      %s142 = smul.addr %s141, 4
      %s143 = scalar_lea.vmem %s2, %s142
      %v145 = vld [vmem:[%s138] sm:$0xf]
      %v146 = vld [vmem:[%s138 + $0x4] sm:$0xf]
      %v147 = vld [vmem:[%s138 + $0x8] sm:$0xf]
      %v148 = vld [vmem:[%s138 + $0xc] sm:$0xf]
      %v149 = vld [vmem:[%s138 + $0x10] sm:$0xf]
      %v150 = vld [vmem:[%s138 + $0x14] sm:$0xf]
      %v151 = vld [vmem:[%s138 + $0x18] sm:$0xf]
      %v152 = vld [vmem:[%s138 + $0x1c] sm:$0xf]
      %v153 = vld [vmem:[%s138 + $0x20] sm:$0xf]
      %v154 = vld [vmem:[%s138 + $0x24] sm:$0xf]
      %v155 = vld [vmem:[%s138 + $0x28] sm:$0xf]
      %v156 = vld [vmem:[%s138 + $0x2c] sm:$0xf]
      %v157 = vld [vmem:[%s138 + $0x30] sm:$0xf]
      %v158 = vld [vmem:[%s138 + $0x34] sm:$0xf]
      %v159 = vld [vmem:[%s138 + $0x38] sm:$0xf]
      %v160 = vld [vmem:[%s138 + $0x3c] sm:$0xf]
      %v161 = vld [vmem:[%s138 + $0x40] sm:$0xf]
      %v162 = vld [vmem:[%s138 + $0x44] sm:$0xf]
      %v163 = vld [vmem:[%s138 + $0x48] sm:$0xf]
      %v164 = vld [vmem:[%s138 + $0x4c] sm:$0xf]
      %v165 = vld [vmem:[%s138 + $0x50] sm:$0xf]
      %v166 = vld [vmem:[%s138 + $0x54] sm:$0xf]
      %v167 = vld [vmem:[%s138 + $0x58] sm:$0xf]
      %v168 = vld [vmem:[%s138 + $0x5c] sm:$0xf]
      %v169 = vld [vmem:[%s138 + $0x60] sm:$0xf]
      %v170 = vld [vmem:[%s138 + $0x64] sm:$0xf]
      %v171 = vld [vmem:[%s138 + $0x68] sm:$0xf]
      %v172 = vld [vmem:[%s138 + $0x6c] sm:$0xf]
      %v173 = vld [vmem:[%s138 + $0x70] sm:$0xf]
      %v174 = vld [vmem:[%s138 + $0x74] sm:$0xf]
      %v175 = vld [vmem:[%s138 + $0x78] sm:$0xf]
      %v176 = vld [vmem:[%s138 + $0x7c] sm:$0xf]
      %v177 = vld [vmem:[%s138 + $0x80] sm:$0xf]
      %v178 = vld [vmem:[%s138 + $0x84] sm:$0xf]
      %v179 = vld [vmem:[%s138 + $0x88] sm:$0xf]
      %v180 = vld [vmem:[%s138 + $0x8c] sm:$0xf]
      %v181 = vld [vmem:[%s1] sm:$0x3]
      %v218 = vunpack.c.l.b16 %v145
      %v219 = vunpack.c.l.b16 %v146
      %v220 = vunpack.c.l.b16 %v147
      %v221 = vunpack.c.l.b16 %v148
      %v222 = vunpack.c.l.b16 %v149
      %v223 = vunpack.c.l.b16 %v150
      %v224 = vunpack.c.l.b16 %v151
      %v225 = vunpack.c.l.b16 %v152
      %v226 = vunpack.c.l.b16 %v153
      %v227 = vunpack.c.l.b16 %v154
      %v228 = vunpack.c.l.b16 %v155
      %v229 = vunpack.c.l.b16 %v156
      %v230 = vunpack.c.l.b16 %v157
      %v231 = vunpack.c.l.b16 %v158
      %v232 = vunpack.c.l.b16 %v159
      %v233 = vunpack.c.l.b16 %v160
      %v234 = vunpack.c.l.b16 %v161
      %v235 = vunpack.c.l.b16 %v162
      %v236 = vunpack.c.l.b16 %v163
      %v237 = vunpack.c.l.b16 %v164
      %v238 = vunpack.c.l.b16 %v165
      %v239 = vunpack.c.l.b16 %v166
      %v240 = vunpack.c.l.b16 %v167
      %v241 = vunpack.c.l.b16 %v168
      %v242 = vunpack.c.l.b16 %v169
      %v243 = vunpack.c.l.b16 %v170
      %v244 = vunpack.c.l.b16 %v171
      %v245 = vunpack.c.l.b16 %v172
      %v246 = vunpack.c.l.b16 %v173
      %v247 = vunpack.c.l.b16 %v174
      %v248 = vunpack.c.l.b16 %v175
      %v249 = vunpack.c.l.b16 %v176
      %v250 = vunpack.c.l.b16 %v177
      %v251 = vunpack.c.l.b16 %v178
      %v252 = vunpack.c.l.b16 %v179
      %v253 = vunpack.c.l.b16 %v180
      %v254 = vpack.c.b16 %v219, %v218
      %v255 = vpack.c.b16 %v221, %v220
      %v256 = vpack.c.b16 %v223, %v222
      %v257 = vpack.c.b16 %v225, %v224
      %v258 = vpack.c.b16 %v227, %v226
      %v259 = vpack.c.b16 %v229, %v228
      %v260 = vpack.c.b16 %v231, %v230
      %v261 = vpack.c.b16 %v233, %v232
      %v262 = vpack.c.b16 %v235, %v234
      %v263 = vpack.c.b16 %v237, %v236
      %v264 = vpack.c.b16 %v239, %v238
      %v265 = vpack.c.b16 %v241, %v240
      %v266 = vpack.c.b16 %v243, %v242
      %v267 = vpack.c.b16 %v245, %v244
      %v268 = vpack.c.b16 %v247, %v246
      %v269 = vpack.c.b16 %v249, %v248
      %v270 = vpack.c.b16 %v251, %v250
      %v271 = vpack.c.b16 %v253, %v252
      %vm272 = vcmask 31744
      %v274 = vsel %vm272, %v254, 0
      %v277 = vsel %vm272, %v255, 0
      %v280 = vsel %vm272, %v256, 0
      %v283 = vsel %vm272, %v257, 0
      %v286 = vsel %vm272, %v258, 0
      %v289 = vsel %vm272, %v259, 0
      %v292 = vsel %vm272, %v260, 0
      %v295 = vsel %vm272, %v261, 0
      %v298 = vsel %vm272, %v262, 0
      %v301 = vsel %vm272, %v263, 0
      %v304 = vsel %vm272, %v264, 0
      %v307 = vsel %vm272, %v265, 0
      %v310 = vsel %vm272, %v266, 0
      %v313 = vsel %vm272, %v267, 0
      %v316 = vsel %vm272, %v268, 0
      %v319 = vsel %vm272, %v269, 0
      %v322 = vsel %vm272, %v270, 0
      %v325 = vsel %vm272, %v271, 0
      %vm327 = vcmask 1041408
      %v329 = vsel %vm327, %v181, 0
      %331 = vmatprep.subr.bf16.mxu0 0
      %332 = vmatpush1.bf16.msra.mxu0 %v329
      %333 = vmatprep.subr.bf16.mxu0 0
      %334 = vmatpush1.bf16.msra.mxu0 0
      %335 = vmatprep.subr.bf16.mxu0 0
      %336 = vmatpush1.bf16.msra.mxu0 0
      %337 = vmatprep.subr.bf16.mxu0 0
      %338 = vmatpush1.bf16.msra.mxu0 0
      %339 = vmatprep.subr.bf16.mxu0 0
      %340 = vmatpush1.bf16.msra.mxu0 0
      %341 = vmatprep.subr.bf16.mxu0 0
      %342 = vmatpush1.bf16.msra.mxu0 0
      %343 = vmatprep.subr.bf16.mxu0 0
      %344 = vmatpush1.bf16.msra.mxu0 0
      %345 = vmatprep.subr.bf16.mxu0 0
      %346 = vmatpush1.bf16.msra.mxu0 0
      %347 = vmatprep.subr.bf16.mxu0 0
      %348 = vmatpush1.bf16.msra.mxu0 0
      %349 = vmatprep.subr.bf16.mxu0 0
      %350 = vmatpush1.bf16.msra.mxu0 0
      %351 = vmatprep.subr.bf16.mxu0 0
      %352 = vmatpush1.bf16.msra.mxu0 0
      %353 = vmatprep.subr.bf16.mxu0 0
      %354 = vmatpush1.bf16.msra.mxu0 0
      %355 = vmatprep.subr.bf16.mxu0 0
      %356 = vmatpush1.bf16.msra.mxu0 0
      %357 = vmatprep.subr.bf16.mxu0 0
      %358 = vmatpush1.bf16.msra.mxu0 0
      %359 = vmatprep.subr.bf16.mxu0 0
      %360 = vmatpush1.bf16.msra.mxu0 0
      %361 = vmatprep.subr.bf16.mxu0 0
      %362 = vmatpush1.bf16.msra.mxu0 0
      %363 = vmatprep.mubr.bf16.mxu0 0
      %364 = vmatmul.mubr.bf16.gmra.mrb[0].mxu0 %v274
      %v365 = vpop.f32.mrb[0].mxu0
      %v366 = vadd.f32 0.0, %v365
      %v367 = vpop.f32.mrb[0].mxu0
      %v368 = vpop.f32.mrb[0].mxu0
      %v369 = vadd.f32 0.0, %v368
      %v370 = vpop.f32.mrb[0].mxu0
      %371 = vmatprep.mubr.bf16.mxu0 0
      %372 = vmatmul.mubr.bf16.gmra.mrb[0].mxu0 %v277
      %v373 = vpop.f32.mrb[0].mxu0
      %v374 = vadd.f32 0.0, %v373
      %v375 = vpop.f32.mrb[0].mxu0
      %v376 = vpop.f32.mrb[0].mxu0
      %v377 = vadd.f32 0.0, %v376
      %v378 = vpop.f32.mrb[0].mxu0
      %379 = vmatprep.mubr.bf16.mxu0 0
      %380 = vmatmul.mubr.bf16.gmra.mrb[0].mxu0 %v280
      %v381 = vpop.f32.mrb[0].mxu0
      %v382 = vadd.f32 0.0, %v381
      %v383 = vpop.f32.mrb[0].mxu0
      %v384 = vpop.f32.mrb[0].mxu0
      %v385 = vadd.f32 0.0, %v384
      %v386 = vpop.f32.mrb[0].mxu0
      %387 = vmatprep.mubr.bf16.mxu0 0
      %388 = vmatmul.mubr.bf16.gmra.mrb[0].mxu0 %v283
      %v389 = vpop.f32.mrb[0].mxu0
      %v390 = vadd.f32 0.0, %v389
      %v391 = vpop.f32.mrb[0].mxu0
      %v392 = vpop.f32.mrb[0].mxu0
      %v393 = vadd.f32 0.0, %v392
      %v394 = vpop.f32.mrb[0].mxu0
      %395 = vmatprep.mubr.bf16.mxu0 0
      %396 = vmatmul.mubr.bf16.gmra.mrb[0].mxu0 %v286
      %v397 = vpop.f32.mrb[0].mxu0
      %v398 = vadd.f32 0.0, %v397
      %v399 = vpop.f32.mrb[0].mxu0
      %v400 = vpop.f32.mrb[0].mxu0
      %v401 = vadd.f32 0.0, %v400
      %v402 = vpop.f32.mrb[0].mxu0
      %403 = vmatprep.mubr.bf16.mxu0 0
      %404 = vmatmul.mubr.bf16.gmra.mrb[0].mxu0 %v289
      %v405 = vpop.f32.mrb[0].mxu0
      %v406 = vadd.f32 0.0, %v405
      %v407 = vpop.f32.mrb[0].mxu0
      %v408 = vpop.f32.mrb[0].mxu0
      %v409 = vadd.f32 0.0, %v408
      %v410 = vpop.f32.mrb[0].mxu0
      %411 = vmatprep.mubr.bf16.mxu0 0
      %412 = vmatmul.mubr.bf16.gmra.mrb[0].mxu0 %v292
      %v413 = vpop.f32.mrb[0].mxu0
      %v414 = vadd.f32 0.0, %v413
      %v415 = vpop.f32.mrb[0].mxu0
      %v416 = vpop.f32.mrb[0].mxu0
      %v417 = vadd.f32 0.0, %v416
      %v418 = vpop.f32.mrb[0].mxu0
      %419 = vmatprep.mubr.bf16.mxu0 0
      %420 = vmatmul.mubr.bf16.gmra.mrb[0].mxu0 %v295
      %v421 = vpop.f32.mrb[0].mxu0
      %v422 = vadd.f32 0.0, %v421
      %v423 = vpop.f32.mrb[0].mxu0
      %v424 = vpop.f32.mrb[0].mxu0
      %v425 = vadd.f32 0.0, %v424
      %v426 = vpop.f32.mrb[0].mxu0
      %427 = vmatprep.mubr.bf16.mxu0 0
      %428 = vmatmul.mubr.bf16.gmra.mrb[0].mxu0 %v298
      %v429 = vpop.f32.mrb[0].mxu0
      %v430 = vadd.f32 0.0, %v429
      %v431 = vpop.f32.mrb[0].mxu0
      %v432 = vpop.f32.mrb[0].mxu0
      %v433 = vadd.f32 0.0, %v432
      %v434 = vpop.f32.mrb[0].mxu0
      %435 = vmatprep.mubr.bf16.mxu0 0
      %436 = vmatmul.mubr.bf16.gmra.mrb[0].mxu0 %v301
      %v437 = vpop.f32.mrb[0].mxu0
      %v438 = vadd.f32 0.0, %v437
      %v439 = vpop.f32.mrb[0].mxu0
      %v440 = vpop.f32.mrb[0].mxu0
      %v441 = vadd.f32 0.0, %v440
      %v442 = vpop.f32.mrb[0].mxu0
      %443 = vmatprep.mubr.bf16.mxu0 0
      %444 = vmatmul.mubr.bf16.gmra.mrb[0].mxu0 %v304
      %v445 = vpop.f32.mrb[0].mxu0
      %v446 = vadd.f32 0.0, %v445
      %v447 = vpop.f32.mrb[0].mxu0
      %v448 = vpop.f32.mrb[0].mxu0
      %v449 = vadd.f32 0.0, %v448
      %v450 = vpop.f32.mrb[0].mxu0
      %451 = vmatprep.mubr.bf16.mxu0 0
      %452 = vmatmul.mubr.bf16.gmra.mrb[0].mxu0 %v307
      %v453 = vpop.f32.mrb[0].mxu0
      %v454 = vadd.f32 0.0, %v453
      %v455 = vpop.f32.mrb[0].mxu0
      %v456 = vpop.f32.mrb[0].mxu0
      %v457 = vadd.f32 0.0, %v456
      %v458 = vpop.f32.mrb[0].mxu0
      %459 = vmatprep.mubr.bf16.mxu0 0
      %460 = vmatmul.mubr.bf16.gmra.mrb[0].mxu0 %v310
      %v461 = vpop.f32.mrb[0].mxu0
      %v462 = vadd.f32 0.0, %v461
      %v463 = vpop.f32.mrb[0].mxu0
      %v464 = vpop.f32.mrb[0].mxu0
      %v465 = vadd.f32 0.0, %v464
      %v466 = vpop.f32.mrb[0].mxu0
      %467 = vmatprep.mubr.bf16.mxu0 0
      %468 = vmatmul.mubr.bf16.gmra.mrb[0].mxu0 %v313
      %v469 = vpop.f32.mrb[0].mxu0
      %v470 = vadd.f32 0.0, %v469
      %v471 = vpop.f32.mrb[0].mxu0
      %v472 = vpop.f32.mrb[0].mxu0
      %v473 = vadd.f32 0.0, %v472
      %v474 = vpop.f32.mrb[0].mxu0
      %475 = vmatprep.mubr.bf16.mxu0 0
      %476 = vmatmul.mubr.bf16.gmra.mrb[0].mxu0 %v316
      %v477 = vpop.f32.mrb[0].mxu0
      %v478 = vadd.f32 0.0, %v477
      %v479 = vpop.f32.mrb[0].mxu0
      %v480 = vpop.f32.mrb[0].mxu0
      %v481 = vadd.f32 0.0, %v480
      %v482 = vpop.f32.mrb[0].mxu0
      %483 = vmatprep.mubr.bf16.mxu0 0
      %484 = vmatmul.mubr.bf16.gmra.mrb[0].mxu0 %v319
      %v485 = vpop.f32.mrb[0].mxu0
      %v486 = vadd.f32 0.0, %v485
      %v487 = vpop.f32.mrb[0].mxu0
      %v488 = vpop.f32.mrb[0].mxu0
      %v489 = vadd.f32 0.0, %v488
      %v490 = vpop.f32.mrb[0].mxu0
      %491 = vmatprep.mubr.bf16.mxu0 0
      %492 = vmatmul.mubr.bf16.gmra.mrb[0].mxu0 %v322
      %v493 = vpop.f32.mrb[0].mxu0
      %v494 = vadd.f32 0.0, %v493
      %v495 = vpop.f32.mrb[0].mxu0
      %v496 = vpop.f32.mrb[0].mxu0
      %v497 = vadd.f32 0.0, %v496
      %v498 = vpop.f32.mrb[0].mxu0
      %499 = vmatprep.mubr.bf16.mxu0 0
      %500 = vmatmul.mubr.bf16.gmra.mrb[0].mxu0 %v325
      %v501 = vpop.f32.mrb[0].mxu0
      %v502 = vadd.f32 0.0, %v501
      %v503 = vpop.f32.mrb[0].mxu0
      %v504 = vpop.f32.mrb[0].mxu0
      %v505 = vadd.f32 0.0, %v504
      %v506 = vpop.f32.mrb[0].mxu0
      %507 = vdwg.mxu0
      %508 = vst [vmem:[#allocation2] sm:$0xff] %v366
      %509 = vst [vmem:[#allocation2 + $0x8] sm:$0xff] %v369
      %510 = vst [vmem:[#allocation2 + $0x10] sm:$0xff] %v374
      %511 = vst [vmem:[#allocation2 + $0x18] sm:$0xff] %v377
      %512 = vst [vmem:[#allocation2 + $0x20] sm:$0xff] %v382
      %513 = vst [vmem:[#allocation2 + $0x28] sm:$0xff] %v385
      %514 = vst [vmem:[#allocation2 + $0x30] sm:$0xff] %v390
      %515 = vst [vmem:[#allocation2 + $0x38] sm:$0xff] %v393
      %516 = vst [vmem:[#allocation2 + $0x40] sm:$0xff] %v398
      %517 = vst [vmem:[#allocation2 + $0x48] sm:$0xff] %v401
      %518 = vst [vmem:[#allocation2 + $0x50] sm:$0xff] %v406
      %519 = vst [vmem:[#allocation2 + $0x58] sm:$0xff] %v409
      %520 = vst [vmem:[#allocation2 + $0x60] sm:$0xff] %v414
      %521 = vst [vmem:[#allocation2 + $0x68] sm:$0xff] %v417
      %522 = vst [vmem:[#allocation2 + $0x70] sm:$0xff] %v422
      %523 = vst [vmem:[#allocation2 + $0x78] sm:$0xff] %v425
      %524 = vst [vmem:[#allocation2 + $0x80] sm:$0xff] %v430
      %525 = vst [vmem:[#allocation2 + $0x88] sm:$0xff] %v433
      %526 = vst [vmem:[#allocation2 + $0x90] sm:$0xff] %v438
      %527 = vst [vmem:[#allocation2 + $0x98] sm:$0xff] %v441
      %528 = vst [vmem:[#allocation2 + $0xa0] sm:$0xff] %v446
      %529 = vst [vmem:[#allocation2 + $0xa8] sm:$0xff] %v449
      %530 = vst [vmem:[#allocation2 + $0xb0] sm:$0xff] %v454
      %531 = vst [vmem:[#allocation2 + $0xb8] sm:$0xff] %v457
      %532 = vst [vmem:[#allocation2 + $0xc0] sm:$0xff] %v462
      %533 = vst [vmem:[#allocation2 + $0xc8] sm:$0xff] %v465
      %534 = vst [vmem:[#allocation2 + $0xd0] sm:$0xff] %v470
      %535 = vst [vmem:[#allocation2 + $0xd8] sm:$0xff] %v473
      %536 = vst [vmem:[#allocation2 + $0xe0] sm:$0xff] %v478
      %537 = vst [vmem:[#allocation2 + $0xe8] sm:$0xff] %v481
      %538 = vst [vmem:[#allocation2 + $0xf0] sm:$0xff] %v486
      %539 = vst [vmem:[#allocation2 + $0xf8] sm:$0xff] %v489
      %540 = vst [vmem:[#allocation2 + $0x100] sm:$0xff] %v494
      %541 = vst [vmem:[#allocation2 + $0x108] sm:$0xff] %v497
      %542 = vst [vmem:[#allocation2 + $0x110] sm:$0xff] %v502
      %543 = vst [vmem:[#allocation2 + $0x118] sm:$0xff] %v505
      %v544 = vld [vmem:[%s138] sm:$0xf]
      %v545 = vld [vmem:[%s138 + $0x4] sm:$0xf]
      %v546 = vld [vmem:[%s138 + $0x8] sm:$0xf]
      %v547 = vld [vmem:[%s138 + $0xc] sm:$0xf]
      %v548 = vld [vmem:[%s138 + $0x10] sm:$0xf]
      %v549 = vld [vmem:[%s138 + $0x14] sm:$0xf]
      %v550 = vld [vmem:[%s138 + $0x18] sm:$0xf]
      %v551 = vld [vmem:[%s138 + $0x1c] sm:$0xf]
      %v552 = vld [vmem:[%s138 + $0x20] sm:$0xf]
      %v553 = vld [vmem:[%s138 + $0x24] sm:$0xf]
      %v554 = vld [vmem:[%s138 + $0x28] sm:$0xf]
      %v555 = vld [vmem:[%s138 + $0x2c] sm:$0xf]
      %v556 = vld [vmem:[%s138 + $0x30] sm:$0xf]
      %v557 = vld [vmem:[%s138 + $0x34] sm:$0xf]
      %v558 = vld [vmem:[%s138 + $0x38] sm:$0xf]
      %v559 = vld [vmem:[%s138 + $0x3c] sm:$0xf]
      %v560 = vld [vmem:[%s138 + $0x40] sm:$0xf]
      %v561 = vld [vmem:[%s138 + $0x44] sm:$0xf]
      %v562 = vld [vmem:[%s138 + $0x48] sm:$0xf]
      %v563 = vld [vmem:[%s138 + $0x4c] sm:$0xf]
      %v564 = vld [vmem:[%s138 + $0x50] sm:$0xf]
      %v565 = vld [vmem:[%s138 + $0x54] sm:$0xf]
      %v566 = vld [vmem:[%s138 + $0x58] sm:$0xf]
      %v567 = vld [vmem:[%s138 + $0x5c] sm:$0xf]
      %v568 = vld [vmem:[%s138 + $0x60] sm:$0xf]
      %v569 = vld [vmem:[%s138 + $0x64] sm:$0xf]
      %v570 = vld [vmem:[%s138 + $0x68] sm:$0xf]
      %v571 = vld [vmem:[%s138 + $0x6c] sm:$0xf]
      %v572 = vld [vmem:[%s138 + $0x70] sm:$0xf]
      %v573 = vld [vmem:[%s138 + $0x74] sm:$0xf]
      %v574 = vld [vmem:[%s138 + $0x78] sm:$0xf]
      %v575 = vld [vmem:[%s138 + $0x7c] sm:$0xf]
      %v576 = vld [vmem:[%s138 + $0x80] sm:$0xf]
      %v577 = vld [vmem:[%s138 + $0x84] sm:$0xf]
      %v578 = vld [vmem:[%s138 + $0x88] sm:$0xf]
      %v579 = vld [vmem:[%s138 + $0x8c] sm:$0xf]
      %v580 = vld [vmem:[%s138 + $0x90] sm:$0x1]
      %s581 = scalar_lea.vmem %s1, 2
      %v582 = vld [vmem:[%s581] sm:$0x3]
      %v620 = vunpack.c.l.b16 %v544
      %v621 = vunpack.c.l.b16 %v545
      %v622 = vunpack.c.l.b16 %v546
      %v623 = vunpack.c.l.b16 %v547
      %v624 = vunpack.c.l.b16 %v548
      %v625 = vunpack.c.l.b16 %v549
      %v626 = vunpack.c.l.b16 %v550
      %v627 = vunpack.c.l.b16 %v551
      %v628 = vunpack.c.l.b16 %v552
      %v629 = vunpack.c.l.b16 %v553
      %v630 = vunpack.c.l.b16 %v554
      %v631 = vunpack.c.l.b16 %v555
      %v632 = vunpack.c.l.b16 %v556
      %v633 = vunpack.c.l.b16 %v557
      %v634 = vunpack.c.l.b16 %v558
      %v635 = vunpack.c.l.b16 %v559
      %v636 = vunpack.c.l.b16 %v560
      %v637 = vunpack.c.l.b16 %v561
      %v638 = vunpack.c.l.b16 %v562
      %v639 = vunpack.c.l.b16 %v563
      %v640 = vunpack.c.l.b16 %v564
      %v641 = vunpack.c.l.b16 %v565
      %v642 = vunpack.c.l.b16 %v566
      %v643 = vunpack.c.l.b16 %v567
      %v644 = vunpack.c.l.b16 %v568
      %v645 = vunpack.c.l.b16 %v569
      %v646 = vunpack.c.l.b16 %v570
      %v647 = vunpack.c.l.b16 %v571
      %v648 = vunpack.c.l.b16 %v572
      %v649 = vunpack.c.l.b16 %v573
      %v650 = vunpack.c.l.b16 %v574
      %v651 = vunpack.c.l.b16 %v575
      %v652 = vunpack.c.l.b16 %v576
      %v653 = vunpack.c.l.b16 %v577
      %v654 = vunpack.c.l.b16 %v578
      %v655 = vunpack.c.l.b16 %v579
      %v656 = vunpack.c.l.b16 %v580
      %v657 = vpack.c.b16 %v621, %v620
      %v658 = vpack.c.b16 %v623, %v622
      %v659 = vpack.c.b16 %v625, %v624
      %v660 = vpack.c.b16 %v627, %v626
      %v661 = vpack.c.b16 %v629, %v628
      %v662 = vpack.c.b16 %v631, %v630
      %v663 = vpack.c.b16 %v633, %v632
      %v664 = vpack.c.b16 %v635, %v634
      %v665 = vpack.c.b16 %v637, %v636
      %v666 = vpack.c.b16 %v639, %v638
      %v667 = vpack.c.b16 %v641, %v640
      %v668 = vpack.c.b16 %v643, %v642
      %v669 = vpack.c.b16 %v645, %v644
      %v670 = vpack.c.b16 %v647, %v646
      %v671 = vpack.c.b16 %v649, %v648
      %v672 = vpack.c.b16 %v651, %v650
      %v673 = vpack.c.b16 %v653, %v652
      %v674 = vpack.c.b16 %v655, %v654
      %v675 = vpack.c.b16 %v656, %v656
      %vm676 = vsmask.f32 7424
      %v678 = vshrl.u32 %v657, 16
      %v680 = vshll.u32 %v657, 16
      %v682 = vrot.slane %v680, 1
      %v683 = vor.u32 %v678, %v682
      %v685 = vshll.u32 %v658, 16
      %v687 = vrot.slane %v685, 1
      %v688 = vsel %vm676, %v683, %v687
      %v689 = vshrl.u32 %v658, 16
      %v691 = vor.u32 %v689, %v687
      %v693 = vshll.u32 %v659, 16
      %v695 = vrot.slane %v693, 1
      %v696 = vsel %vm676, %v691, %v695
      %v697 = vshrl.u32 %v659, 16
      %v699 = vor.u32 %v697, %v695
      %v701 = vshll.u32 %v660, 16
      %v703 = vrot.slane %v701, 1
      %v704 = vsel %vm676, %v699, %v703
      %v705 = vshrl.u32 %v660, 16
      %v707 = vor.u32 %v705, %v703
      %v709 = vshll.u32 %v661, 16
      %v711 = vrot.slane %v709, 1
      %v712 = vsel %vm676, %v707, %v711
      %v713 = vshrl.u32 %v661, 16
      %v715 = vor.u32 %v713, %v711
      %v717 = vshll.u32 %v662, 16
      %v719 = vrot.slane %v717, 1
      %v720 = vsel %vm676, %v715, %v719
      %v721 = vshrl.u32 %v662, 16
      %v723 = vor.u32 %v721, %v719
      %v725 = vshll.u32 %v663, 16
      %v727 = vrot.slane %v725, 1
      %v728 = vsel %vm676, %v723, %v727
      %v729 = vshrl.u32 %v663, 16
      %v731 = vor.u32 %v729, %v727
      %v733 = vshll.u32 %v664, 16
      %v735 = vrot.slane %v733, 1
      %v736 = vsel %vm676, %v731, %v735
      %v737 = vshrl.u32 %v664, 16
      %v739 = vor.u32 %v737, %v735
      %v741 = vshll.u32 %v665, 16
      %v743 = vrot.slane %v741, 1
      %v744 = vsel %vm676, %v739, %v743
      %v745 = vshrl.u32 %v665, 16
      %v747 = vor.u32 %v745, %v743
      %v749 = vshll.u32 %v666, 16
      %v751 = vrot.slane %v749, 1
      %v752 = vsel %vm676, %v747, %v751
      %v753 = vshrl.u32 %v666, 16
      %v755 = vor.u32 %v753, %v751
      %v757 = vshll.u32 %v667, 16
      %v759 = vrot.slane %v757, 1
      %v760 = vsel %vm676, %v755, %v759
      %v761 = vshrl.u32 %v667, 16
      %v763 = vor.u32 %v761, %v759
      %v765 = vshll.u32 %v668, 16
      %v767 = vrot.slane %v765, 1
      %v768 = vsel %vm676, %v763, %v767
      %v769 = vshrl.u32 %v668, 16
      %v771 = vor.u32 %v769, %v767
      %v773 = vshll.u32 %v669, 16
      %v775 = vrot.slane %v773, 1
      %v776 = vsel %vm676, %v771, %v775
      %v777 = vshrl.u32 %v669, 16
      %v779 = vor.u32 %v777, %v775
      %v781 = vshll.u32 %v670, 16
      %v783 = vrot.slane %v781, 1
      %v784 = vsel %vm676, %v779, %v783
      %v785 = vshrl.u32 %v670, 16
      %v787 = vor.u32 %v785, %v783
      %v789 = vshll.u32 %v671, 16
      %v791 = vrot.slane %v789, 1
      %v792 = vsel %vm676, %v787, %v791
      %v793 = vshrl.u32 %v671, 16
      %v795 = vor.u32 %v793, %v791
      %v797 = vshll.u32 %v672, 16
      %v799 = vrot.slane %v797, 1
      %v800 = vsel %vm676, %v795, %v799
      %v801 = vshrl.u32 %v672, 16
      %v803 = vor.u32 %v801, %v799
      %v805 = vshll.u32 %v673, 16
      %v807 = vrot.slane %v805, 1
      %v808 = vsel %vm676, %v803, %v807
      %v809 = vshrl.u32 %v673, 16
      %v811 = vor.u32 %v809, %v807
      %v813 = vshll.u32 %v674, 16
      %v815 = vrot.slane %v813, 1
      %v816 = vsel %vm676, %v811, %v815
      %v817 = vshrl.u32 %v674, 16
      %v819 = vor.u32 %v817, %v815
      %v821 = vshll.u32 %v675, 16
      %v823 = vrot.slane %v821, 1
      %v824 = vsel %vm676, %v819, %v823
      %v826 = vsel %vm272, %v688, 0
      %v829 = vsel %vm272, %v696, 0
      %v832 = vsel %vm272, %v704, 0
      %v835 = vsel %vm272, %v712, 0
      %v838 = vsel %vm272, %v720, 0
      %v841 = vsel %vm272, %v728, 0
      %v844 = vsel %vm272, %v736, 0
      %v847 = vsel %vm272, %v744, 0
      %v850 = vsel %vm272, %v752, 0
      %v853 = vsel %vm272, %v760, 0
      %v856 = vsel %vm272, %v768, 0
      %v859 = vsel %vm272, %v776, 0
      %v862 = vsel %vm272, %v784, 0
      %v865 = vsel %vm272, %v792, 0
      %v868 = vsel %vm272, %v800, 0
      %v871 = vsel %vm272, %v808, 0
      %v874 = vsel %vm272, %v816, 0
      %v877 = vsel %vm272, %v824, 0
      %v880 = vsel %vm327, %v582, 0
      %882 = vmatprep.subr.bf16.mxu0 0
      %883 = vmatpush1.bf16.msra.mxu0 %v880
      %884 = vmatprep.subr.bf16.mxu0 0
      %885 = vmatpush1.bf16.msra.mxu0 0
      %886 = vmatprep.subr.bf16.mxu0 0
      %887 = vmatpush1.bf16.msra.mxu0 0
      %888 = vmatprep.subr.bf16.mxu0 0
      %889 = vmatpush1.bf16.msra.mxu0 0
      %890 = vmatprep.subr.bf16.mxu0 0
      %891 = vmatpush1.bf16.msra.mxu0 0
      %892 = vmatprep.subr.bf16.mxu0 0
      %893 = vmatpush1.bf16.msra.mxu0 0
      %894 = vmatprep.subr.bf16.mxu0 0
      %895 = vmatpush1.bf16.msra.mxu0 0
      %896 = vmatprep.subr.bf16.mxu0 0
      %897 = vmatpush1.bf16.msra.mxu0 0
      %898 = vmatprep.subr.bf16.mxu0 0
      %899 = vmatpush1.bf16.msra.mxu0 0
      %900 = vmatprep.subr.bf16.mxu0 0
      %901 = vmatpush1.bf16.msra.mxu0 0
      %902 = vmatprep.subr.bf16.mxu0 0
      %903 = vmatpush1.bf16.msra.mxu0 0
      %904 = vmatprep.subr.bf16.mxu0 0
      %905 = vmatpush1.bf16.msra.mxu0 0
      %906 = vmatprep.subr.bf16.mxu0 0
      %907 = vmatpush1.bf16.msra.mxu0 0
      %908 = vmatprep.subr.bf16.mxu0 0
      %909 = vmatpush1.bf16.msra.mxu0 0
      %910 = vmatprep.subr.bf16.mxu0 0
      %911 = vmatpush1.bf16.msra.mxu0 0
      %912 = vmatprep.subr.bf16.mxu0 0
      %913 = vmatpush1.bf16.msra.mxu0 0
      %914 = vmatprep.mubr.bf16.mxu0 0
      %915 = vmatmul.mubr.bf16.gmra.mrb[0].mxu0 %v826
      %v916 = vpop.f32.mrb[0].mxu0
      %v917 = vadd.f32 0.0, %v916
      %v918 = vpop.f32.mrb[0].mxu0
      %v919 = vpop.f32.mrb[0].mxu0
      %v920 = vadd.f32 0.0, %v919
      %v921 = vpop.f32.mrb[0].mxu0
      %922 = vmatprep.mubr.bf16.mxu0 0
      %923 = vmatmul.mubr.bf16.gmra.mrb[0].mxu0 %v829
      %v924 = vpop.f32.mrb[0].mxu0
      %v925 = vadd.f32 0.0, %v924
      %v926 = vpop.f32.mrb[0].mxu0
      %v927 = vpop.f32.mrb[0].mxu0
      %v928 = vadd.f32 0.0, %v927
      %v929 = vpop.f32.mrb[0].mxu0
      %930 = vmatprep.mubr.bf16.mxu0 0
      %931 = vmatmul.mubr.bf16.gmra.mrb[0].mxu0 %v832
      %v932 = vpop.f32.mrb[0].mxu0
      %v933 = vadd.f32 0.0, %v932
      %v934 = vpop.f32.mrb[0].mxu0
      %v935 = vpop.f32.mrb[0].mxu0
      %v936 = vadd.f32 0.0, %v935
      %v937 = vpop.f32.mrb[0].mxu0
      %938 = vmatprep.mubr.bf16.mxu0 0
      %939 = vmatmul.mubr.bf16.gmra.mrb[0].mxu0 %v835
      %v940 = vpop.f32.mrb[0].mxu0
      %v941 = vadd.f32 0.0, %v940
      %v942 = vpop.f32.mrb[0].mxu0
      %v943 = vpop.f32.mrb[0].mxu0
      %v944 = vadd.f32 0.0, %v943
      %v945 = vpop.f32.mrb[0].mxu0
      %946 = vmatprep.mubr.bf16.mxu0 0
      %947 = vmatmul.mubr.bf16.gmra.mrb[0].mxu0 %v838
      %v948 = vpop.f32.mrb[0].mxu0
      %v949 = vadd.f32 0.0, %v948
      %v950 = vpop.f32.mrb[0].mxu0
      %v951 = vpop.f32.mrb[0].mxu0
      %v952 = vadd.f32 0.0, %v951
      %v953 = vpop.f32.mrb[0].mxu0
      %954 = vmatprep.mubr.bf16.mxu0 0
      %955 = vmatmul.mubr.bf16.gmra.mrb[0].mxu0 %v841
      %v956 = vpop.f32.mrb[0].mxu0
      %v957 = vadd.f32 0.0, %v956
      %v958 = vpop.f32.mrb[0].mxu0
      %v959 = vpop.f32.mrb[0].mxu0
      %v960 = vadd.f32 0.0, %v959
      %v961 = vpop.f32.mrb[0].mxu0
      %962 = vmatprep.mubr.bf16.mxu0 0
      %963 = vmatmul.mubr.bf16.gmra.mrb[0].mxu0 %v844
      %v964 = vpop.f32.mrb[0].mxu0
      %v965 = vadd.f32 0.0, %v964
      %v966 = vpop.f32.mrb[0].mxu0
      %v967 = vpop.f32.mrb[0].mxu0
      %v968 = vadd.f32 0.0, %v967
      %v969 = vpop.f32.mrb[0].mxu0
      %970 = vmatprep.mubr.bf16.mxu0 0
      %971 = vmatmul.mubr.bf16.gmra.mrb[0].mxu0 %v847
      %v972 = vpop.f32.mrb[0].mxu0
      %v973 = vadd.f32 0.0, %v972
      %v974 = vpop.f32.mrb[0].mxu0
      %v975 = vpop.f32.mrb[0].mxu0
      %v976 = vadd.f32 0.0, %v975
      %v977 = vpop.f32.mrb[0].mxu0
      %978 = vmatprep.mubr.bf16.mxu0 0
      %979 = vmatmul.mubr.bf16.gmra.mrb[0].mxu0 %v850
      %v980 = vpop.f32.mrb[0].mxu0
      %v981 = vadd.f32 0.0, %v980
      %v982 = vpop.f32.mrb[0].mxu0
      %v983 = vpop.f32.mrb[0].mxu0
      %v984 = vadd.f32 0.0, %v983
      %v985 = vpop.f32.mrb[0].mxu0
      %986 = vmatprep.mubr.bf16.mxu0 0
      %987 = vmatmul.mubr.bf16.gmra.mrb[0].mxu0 %v853
      %v988 = vpop.f32.mrb[0].mxu0
      %v989 = vadd.f32 0.0, %v988
      %v990 = vpop.f32.mrb[0].mxu0
      %v991 = vpop.f32.mrb[0].mxu0
      %v992 = vadd.f32 0.0, %v991
      %v993 = vpop.f32.mrb[0].mxu0
      %994 = vmatprep.mubr.bf16.mxu0 0
      %995 = vmatmul.mubr.bf16.gmra.mrb[0].mxu0 %v856
      %v996 = vpop.f32.mrb[0].mxu0
      %v997 = vadd.f32 0.0, %v996
      %v998 = vpop.f32.mrb[0].mxu0
      %v999 = vpop.f32.mrb[0].mxu0
      %v1000 = vadd.f32 0.0, %v999
      %v1001 = vpop.f32.mrb[0].mxu0
      %1002 = vmatprep.mubr.bf16.mxu0 0
      %1003 = vmatmul.mubr.bf16.gmra.mrb[0].mxu0 %v859
      %v1004 = vpop.f32.mrb[0].mxu0
      %v1005 = vadd.f32 0.0, %v1004
      %v1006 = vpop.f32.mrb[0].mxu0
      %v1007 = vpop.f32.mrb[0].mxu0
      %v1008 = vadd.f32 0.0, %v1007
      %v1009 = vpop.f32.mrb[0].mxu0
      %1010 = vmatprep.mubr.bf16.mxu0 0
      %1011 = vmatmul.mubr.bf16.gmra.mrb[0].mxu0 %v862
      %v1012 = vpop.f32.mrb[0].mxu0
      %v1013 = vadd.f32 0.0, %v1012
      %v1014 = vpop.f32.mrb[0].mxu0
      %v1015 = vpop.f32.mrb[0].mxu0
      %v1016 = vadd.f32 0.0, %v1015
      %v1017 = vpop.f32.mrb[0].mxu0
      %1018 = vmatprep.mubr.bf16.mxu0 0
      %1019 = vmatmul.mubr.bf16.gmra.mrb[0].mxu0 %v865
      %v1020 = vpop.f32.mrb[0].mxu0
      %v1021 = vadd.f32 0.0, %v1020
      %v1022 = vpop.f32.mrb[0].mxu0
      %v1023 = vpop.f32.mrb[0].mxu0
      %v1024 = vadd.f32 0.0, %v1023
      %v1025 = vpop.f32.mrb[0].mxu0
      %1026 = vmatprep.mubr.bf16.mxu0 0
      %1027 = vmatmul.mubr.bf16.gmra.mrb[0].mxu0 %v868
      %v1028 = vpop.f32.mrb[0].mxu0
      %v1029 = vadd.f32 0.0, %v1028
      %v1030 = vpop.f32.mrb[0].mxu0
      %v1031 = vpop.f32.mrb[0].mxu0
      %v1032 = vadd.f32 0.0, %v1031
      %v1033 = vpop.f32.mrb[0].mxu0
      %1034 = vmatprep.mubr.bf16.mxu0 0
      %1035 = vmatmul.mubr.bf16.gmra.mrb[0].mxu0 %v871
      %v1036 = vpop.f32.mrb[0].mxu0
      %v1037 = vadd.f32 0.0, %v1036
      %v1038 = vpop.f32.mrb[0].mxu0
      %v1039 = vpop.f32.mrb[0].mxu0
      %v1040 = vadd.f32 0.0, %v1039
      %v1041 = vpop.f32.mrb[0].mxu0
      %1042 = vmatprep.mubr.bf16.mxu0 0
      %1043 = vmatmul.mubr.bf16.gmra.mrb[0].mxu0 %v874
      %v1044 = vpop.f32.mrb[0].mxu0
      %v1045 = vadd.f32 0.0, %v1044
      %v1046 = vpop.f32.mrb[0].mxu0
      %v1047 = vpop.f32.mrb[0].mxu0
      %v1048 = vadd.f32 0.0, %v1047
      %v1049 = vpop.f32.mrb[0].mxu0
      %1050 = vmatprep.mubr.bf16.mxu0 0
      %1051 = vmatmul.mubr.bf16.gmra.mrb[0].mxu0 %v877
      %v1052 = vpop.f32.mrb[0].mxu0
      %v1053 = vadd.f32 0.0, %v1052
      %v1054 = vpop.f32.mrb[0].mxu0
      %v1055 = vpop.f32.mrb[0].mxu0
      %v1056 = vadd.f32 0.0, %v1055
      %v1057 = vpop.f32.mrb[0].mxu0
      %1058 = vdwg.mxu0
      %v1059 = vld [vmem:[#allocation2] sm:$0xff]
      %v1060 = vld [vmem:[#allocation2 + $0x8] sm:$0xff]
      %v1061 = vld [vmem:[#allocation2 + $0x10] sm:$0xff]
      %v1062 = vld [vmem:[#allocation2 + $0x18] sm:$0xff]
      %v1063 = vld [vmem:[#allocation2 + $0x20] sm:$0xff]
      %v1064 = vld [vmem:[#allocation2 + $0x28] sm:$0xff]
      %v1065 = vld [vmem:[#allocation2 + $0x30] sm:$0xff]
      %v1066 = vld [vmem:[#allocation2 + $0x38] sm:$0xff]
      %v1067 = vld [vmem:[#allocation2 + $0x40] sm:$0xff]
      %v1068 = vld [vmem:[#allocation2 + $0x48] sm:$0xff]
      %v1069 = vld [vmem:[#allocation2 + $0x50] sm:$0xff]
      %v1070 = vld [vmem:[#allocation2 + $0x58] sm:$0xff]
      %v1071 = vld [vmem:[#allocation2 + $0x60] sm:$0xff]
      %v1072 = vld [vmem:[#allocation2 + $0x68] sm:$0xff]
      %v1073 = vld [vmem:[#allocation2 + $0x70] sm:$0xff]
      %v1074 = vld [vmem:[#allocation2 + $0x78] sm:$0xff]
      %v1075 = vld [vmem:[#allocation2 + $0x80] sm:$0xff]
      %v1076 = vld [vmem:[#allocation2 + $0x88] sm:$0xff]
      %v1077 = vld [vmem:[#allocation2 + $0x90] sm:$0xff]
      %v1078 = vld [vmem:[#allocation2 + $0x98] sm:$0xff]
      %v1079 = vld [vmem:[#allocation2 + $0xa0] sm:$0xff]
      %v1080 = vld [vmem:[#allocation2 + $0xa8] sm:$0xff]
      %v1081 = vld [vmem:[#allocation2 + $0xb0] sm:$0xff]
      %v1082 = vld [vmem:[#allocation2 + $0xb8] sm:$0xff]
      %v1083 = vld [vmem:[#allocation2 + $0xc0] sm:$0xff]
      %v1084 = vld [vmem:[#allocation2 + $0xc8] sm:$0xff]
      %v1085 = vld [vmem:[#allocation2 + $0xd0] sm:$0xff]
      %v1086 = vld [vmem:[#allocation2 + $0xd8] sm:$0xff]
      %v1087 = vld [vmem:[#allocation2 + $0xe0] sm:$0xff]
      %v1088 = vld [vmem:[#allocation2 + $0xe8] sm:$0xff]
      %v1089 = vld [vmem:[#allocation2 + $0xf0] sm:$0xff]
      %v1090 = vld [vmem:[#allocation2 + $0xf8] sm:$0xff]
      %v1091 = vld [vmem:[#allocation2 + $0x100] sm:$0xff]
      %v1092 = vld [vmem:[#allocation2 + $0x108] sm:$0xff]
      %v1093 = vld [vmem:[#allocation2 + $0x110] sm:$0xff]
      %v1094 = vld [vmem:[#allocation2 + $0x118] sm:$0xff]
      %v1095 = vadd.f32 %v1059, %v917
      %v1096 = vadd.f32 %v1060, %v920
      %v1097 = vadd.f32 %v1061, %v925
      %v1098 = vadd.f32 %v1062, %v928
      %v1099 = vadd.f32 %v1063, %v933
      %v1100 = vadd.f32 %v1064, %v936
      %v1101 = vadd.f32 %v1065, %v941
      %v1102 = vadd.f32 %v1066, %v944
      %v1103 = vadd.f32 %v1067, %v949
      %v1104 = vadd.f32 %v1068, %v952
      %v1105 = vadd.f32 %v1069, %v957
      %v1106 = vadd.f32 %v1070, %v960
      %v1107 = vadd.f32 %v1071, %v965
      %v1108 = vadd.f32 %v1072, %v968
      %v1109 = vadd.f32 %v1073, %v973
      %v1110 = vadd.f32 %v1074, %v976
      %v1111 = vadd.f32 %v1075, %v981
      %v1112 = vadd.f32 %v1076, %v984
      %v1113 = vadd.f32 %v1077, %v989
      %v1114 = vadd.f32 %v1078, %v992
      %v1115 = vadd.f32 %v1079, %v997
      %v1116 = vadd.f32 %v1080, %v1000
      %v1117 = vadd.f32 %v1081, %v1005
      %v1118 = vadd.f32 %v1082, %v1008
      %v1119 = vadd.f32 %v1083, %v1013
      %v1120 = vadd.f32 %v1084, %v1016
      %v1121 = vadd.f32 %v1085, %v1021
      %v1122 = vadd.f32 %v1086, %v1024
      %v1123 = vadd.f32 %v1087, %v1029
      %v1124 = vadd.f32 %v1088, %v1032
      %v1125 = vadd.f32 %v1089, %v1037
      %v1126 = vadd.f32 %v1090, %v1040
      %v1127 = vadd.f32 %v1091, %v1045
      %v1128 = vadd.f32 %v1092, %v1048
      %v1129 = vadd.f32 %v1093, %v1053
      %v1130 = vadd.f32 %v1094, %v1056
      %1131 = vst [vmem:[#allocation2] sm:$0xff] %v1095
      %1132 = vst [vmem:[#allocation2 + $0x8] sm:$0xff] %v1096
      %1133 = vst [vmem:[#allocation2 + $0x10] sm:$0xff] %v1097
      %1134 = vst [vmem:[#allocation2 + $0x18] sm:$0xff] %v1098
      %1135 = vst [vmem:[#allocation2 + $0x20] sm:$0xff] %v1099
      %1136 = vst [vmem:[#allocation2 + $0x28] sm:$0xff] %v1100
      %1137 = vst [vmem:[#allocation2 + $0x30] sm:$0xff] %v1101
      %1138 = vst [vmem:[#allocation2 + $0x38] sm:$0xff] %v1102
      %1139 = vst [vmem:[#allocation2 + $0x40] sm:$0xff] %v1103
      %1140 = vst [vmem:[#allocation2 + $0x48] sm:$0xff] %v1104
      %1141 = vst [vmem:[#allocation2 + $0x50] sm:$0xff] %v1105
      %1142 = vst [vmem:[#allocation2 + $0x58] sm:$0xff] %v1106
      %1143 = vst [vmem:[#allocation2 + $0x60] sm:$0xff] %v1107
      %1144 = vst [vmem:[#allocation2 + $0x68] sm:$0xff] %v1108
      %1145 = vst [vmem:[#allocation2 + $0x70] sm:$0xff] %v1109
      %1146 = vst [vmem:[#allocation2 + $0x78] sm:$0xff] %v1110
      %1147 = vst [vmem:[#allocation2 + $0x80] sm:$0xff] %v1111
      %1148 = vst [vmem:[#allocation2 + $0x88] sm:$0xff] %v1112
      %1149 = vst [vmem:[#allocation2 + $0x90] sm:$0xff] %v1113
      %1150 = vst [vmem:[#allocation2 + $0x98] sm:$0xff] %v1114
      %1151 = vst [vmem:[#allocation2 + $0xa0] sm:$0xff] %v1115
      %1152 = vst [vmem:[#allocation2 + $0xa8] sm:$0xff] %v1116
      %1153 = vst [vmem:[#allocation2 + $0xb0] sm:$0xff] %v1117
      %1154 = vst [vmem:[#allocation2 + $0xb8] sm:$0xff] %v1118
      %1155 = vst [vmem:[#allocation2 + $0xc0] sm:$0xff] %v1119
      %1156 = vst [vmem:[#allocation2 + $0xc8] sm:$0xff] %v1120
      %1157 = vst [vmem:[#allocation2 + $0xd0] sm:$0xff] %v1121
      %1158 = vst [vmem:[#allocation2 + $0xd8] sm:$0xff] %v1122
      %1159 = vst [vmem:[#allocation2 + $0xe0] sm:$0xff] %v1123
      %1160 = vst [vmem:[#allocation2 + $0xe8] sm:$0xff] %v1124
      %1161 = vst [vmem:[#allocation2 + $0xf0] sm:$0xff] %v1125
      %1162 = vst [vmem:[#allocation2 + $0xf8] sm:$0xff] %v1126
      %1163 = vst [vmem:[#allocation2 + $0x100] sm:$0xff] %v1127
      %1164 = vst [vmem:[#allocation2 + $0x108] sm:$0xff] %v1128
      %1165 = vst [vmem:[#allocation2 + $0x110] sm:$0xff] %v1129
      %1166 = vst [vmem:[#allocation2 + $0x118] sm:$0xff] %v1130
      %v1167 = vld [vmem:[%s138] sm:$0xe]
      %v1168 = vld [vmem:[%s138 + $0x4] sm:$0xf]
      %v1169 = vld [vmem:[%s138 + $0x8] sm:$0xf]
      %v1170 = vld [vmem:[%s138 + $0xc] sm:$0xf]
      %v1171 = vld [vmem:[%s138 + $0x10] sm:$0xf]
      %v1172 = vld [vmem:[%s138 + $0x14] sm:$0xf]
      %v1173 = vld [vmem:[%s138 + $0x18] sm:$0xf]
      %v1174 = vld [vmem:[%s138 + $0x1c] sm:$0xf]
      %v1175 = vld [vmem:[%s138 + $0x20] sm:$0xf]
      %v1176 = vld [vmem:[%s138 + $0x24] sm:$0xf]
      %v1177 = vld [vmem:[%s138 + $0x28] sm:$0xf]
      %v1178 = vld [vmem:[%s138 + $0x2c] sm:$0xf]
      %v1179 = vld [vmem:[%s138 + $0x30] sm:$0xf]
      %v1180 = vld [vmem:[%s138 + $0x34] sm:$0xf]
      %v1181 = vld [vmem:[%s138 + $0x38] sm:$0xf]
      %v1182 = vld [vmem:[%s138 + $0x3c] sm:$0xf]
      %v1183 = vld [vmem:[%s138 + $0x40] sm:$0xf]
      %v1184 = vld [vmem:[%s138 + $0x44] sm:$0xf]
      %v1185 = vld [vmem:[%s138 + $0x48] sm:$0xf]
      %v1186 = vld [vmem:[%s138 + $0x4c] sm:$0xf]
      %v1187 = vld [vmem:[%s138 + $0x50] sm:$0xf]
      %v1188 = vld [vmem:[%s138 + $0x54] sm:$0xf]
      %v1189 = vld [vmem:[%s138 + $0x58] sm:$0xf]
      %v1190 = vld [vmem:[%s138 + $0x5c] sm:$0xf]
      %v1191 = vld [vmem:[%s138 + $0x60] sm:$0xf]
      %v1192 = vld [vmem:[%s138 + $0x64] sm:$0xf]
      %v1193 = vld [vmem:[%s138 + $0x68] sm:$0xf]
      %v1194 = vld [vmem:[%s138 + $0x6c] sm:$0xf]
      %v1195 = vld [vmem:[%s138 + $0x70] sm:$0xf]
      %v1196 = vld [vmem:[%s138 + $0x74] sm:$0xf]
      %v1197 = vld [vmem:[%s138 + $0x78] sm:$0xf]
      %v1198 = vld [vmem:[%s138 + $0x7c] sm:$0xf]
      %v1199 = vld [vmem:[%s138 + $0x80] sm:$0xf]
      %v1200 = vld [vmem:[%s138 + $0x84] sm:$0xf]
      %v1201 = vld [vmem:[%s138 + $0x88] sm:$0xf]
      %v1202 = vld [vmem:[%s138 + $0x8c] sm:$0xf]
      %v1203 = vld [vmem:[%s138 + $0x90] sm:$0x1]
      %s1204 = scalar_lea.vmem %s1, 4
      %v1205 = vld [vmem:[%s1204] sm:$0x3]
      %v1243 = vunpack.c.l.b16 %v1167
      %v1244 = vunpack.c.l.b16 %v1168
      %v1245 = vunpack.c.l.b16 %v1169
      %v1246 = vunpack.c.l.b16 %v1170
      %v1247 = vunpack.c.l.b16 %v1171
      %v1248 = vunpack.c.l.b16 %v1172
      %v1249 = vunpack.c.l.b16 %v1173
      %v1250 = vunpack.c.l.b16 %v1174
      %v1251 = vunpack.c.l.b16 %v1175
      %v1252 = vunpack.c.l.b16 %v1176
      %v1253 = vunpack.c.l.b16 %v1177
      %v1254 = vunpack.c.l.b16 %v1178
      %v1255 = vunpack.c.l.b16 %v1179
      %v1256 = vunpack.c.l.b16 %v1180
      %v1257 = vunpack.c.l.b16 %v1181
      %v1258 = vunpack.c.l.b16 %v1182
      %v1259 = vunpack.c.l.b16 %v1183
      %v1260 = vunpack.c.l.b16 %v1184
      %v1261 = vunpack.c.l.b16 %v1185
      %v1262 = vunpack.c.l.b16 %v1186
      %v1263 = vunpack.c.l.b16 %v1187
      %v1264 = vunpack.c.l.b16 %v1188
      %v1265 = vunpack.c.l.b16 %v1189
      %v1266 = vunpack.c.l.b16 %v1190
      %v1267 = vunpack.c.l.b16 %v1191
      %v1268 = vunpack.c.l.b16 %v1192
      %v1269 = vunpack.c.l.b16 %v1193
      %v1270 = vunpack.c.l.b16 %v1194
      %v1271 = vunpack.c.l.b16 %v1195
      %v1272 = vunpack.c.l.b16 %v1196
      %v1273 = vunpack.c.l.b16 %v1197
      %v1274 = vunpack.c.l.b16 %v1198
      %v1275 = vunpack.c.l.b16 %v1199
      %v1276 = vunpack.c.l.b16 %v1200
      %v1277 = vunpack.c.l.b16 %v1201
      %v1278 = vunpack.c.l.b16 %v1202
      %v1279 = vunpack.c.l.b16 %v1203
      %v1280 = vpack.c.b16 %v1244, %v1243
      %v1281 = vpack.c.b16 %v1246, %v1245
      %v1282 = vpack.c.b16 %v1248, %v1247
      %v1283 = vpack.c.b16 %v1250, %v1249
      %v1284 = vpack.c.b16 %v1252, %v1251
      %v1285 = vpack.c.b16 %v1254, %v1253
      %v1286 = vpack.c.b16 %v1256, %v1255
      %v1287 = vpack.c.b16 %v1258, %v1257
      %v1288 = vpack.c.b16 %v1260, %v1259
      %v1289 = vpack.c.b16 %v1262, %v1261
      %v1290 = vpack.c.b16 %v1264, %v1263
      %v1291 = vpack.c.b16 %v1266, %v1265
      %v1292 = vpack.c.b16 %v1268, %v1267
      %v1293 = vpack.c.b16 %v1270, %v1269
      %v1294 = vpack.c.b16 %v1272, %v1271
      %v1295 = vpack.c.b16 %v1274, %v1273
      %v1296 = vpack.c.b16 %v1276, %v1275
      %v1297 = vpack.c.b16 %v1278, %v1277
      %v1298 = vpack.c.b16 %v1279, %v1279
      %vm1299 = vcmask 1046528
      %v1300 = vrot.slane %v1280, 1
      %v1301 = vrot.slane %v1281, 1
      %v1302 = vsel %vm1299, %v1300, %v1301
      %v1303 = vrot.slane %v1282, 1
      %v1304 = vsel %vm1299, %v1301, %v1303
      %v1305 = vrot.slane %v1283, 1
      %v1306 = vsel %vm1299, %v1303, %v1305
      %v1307 = vrot.slane %v1284, 1
      %v1308 = vsel %vm1299, %v1305, %v1307
      %v1309 = vrot.slane %v1285, 1
      %v1310 = vsel %vm1299, %v1307, %v1309
      %v1311 = vrot.slane %v1286, 1
      %v1312 = vsel %vm1299, %v1309, %v1311
      %v1313 = vrot.slane %v1287, 1
      %v1314 = vsel %vm1299, %v1311, %v1313
      %v1315 = vrot.slane %v1288, 1
      %v1316 = vsel %vm1299, %v1313, %v1315
      %v1317 = vrot.slane %v1289, 1
      %v1318 = vsel %vm1299, %v1315, %v1317
      %v1319 = vrot.slane %v1290, 1
      %v1320 = vsel %vm1299, %v1317, %v1319
      %v1321 = vrot.slane %v1291, 1
      %v1322 = vsel %vm1299, %v1319, %v1321
      %v1323 = vrot.slane %v1292, 1
      %v1324 = vsel %vm1299, %v1321, %v1323
      %v1325 = vrot.slane %v1293, 1
      %v1326 = vsel %vm1299, %v1323, %v1325
      %v1327 = vrot.slane %v1294, 1
      %v1328 = vsel %vm1299, %v1325, %v1327
      %v1329 = vrot.slane %v1295, 1
      %v1330 = vsel %vm1299, %v1327, %v1329
      %v1331 = vrot.slane %v1296, 1
      %v1332 = vsel %vm1299, %v1329, %v1331
      %v1333 = vrot.slane %v1297, 1
      %v1334 = vsel %vm1299, %v1331, %v1333
      %v1335 = vrot.slane %v1298, 1
      %v1336 = vsel %vm1299, %v1333, %v1335
      %v1338 = vsel %vm272, %v1302, 0
      %v1341 = vsel %vm272, %v1304, 0
      %v1344 = vsel %vm272, %v1306, 0
      %v1347 = vsel %vm272, %v1308, 0
      %v1350 = vsel %vm272, %v1310, 0
      %v1353 = vsel %vm272, %v1312, 0
      %v1356 = vsel %vm272, %v1314, 0
      %v1359 = vsel %vm272, %v1316, 0
      %v1362 = vsel %vm272, %v1318, 0
      %v1365 = vsel %vm272, %v1320, 0
      %v1368 = vsel %vm272, %v1322, 0
      %v1371 = vsel %vm272, %v1324, 0
      %v1374 = vsel %vm272, %v1326, 0
      %v1377 = vsel %vm272, %v1328, 0
      %v1380 = vsel %vm272, %v1330, 0
      %v1383 = vsel %vm272, %v1332, 0
      %v1386 = vsel %vm272, %v1334, 0
      %v1389 = vsel %vm272, %v1336, 0
      %v1392 = vsel %vm327, %v1205, 0
      %1394 = vmatprep.subr.bf16.mxu0 0
      %1395 = vmatpush1.bf16.msra.mxu0 %v1392
      %1396 = vmatprep.subr.bf16.mxu0 0
      %1397 = vmatpush1.bf16.msra.mxu0 0
      %1398 = vmatprep.subr.bf16.mxu0 0
      %1399 = vmatpush1.bf16.msra.mxu0 0
      %1400 = vmatprep.subr.bf16.mxu0 0
      %1401 = vmatpush1.bf16.msra.mxu0 0
      %1402 = vmatprep.subr.bf16.mxu0 0
      %1403 = vmatpush1.bf16.msra.mxu0 0
      %1404 = vmatprep.subr.bf16.mxu0 0
      %1405 = vmatpush1.bf16.msra.mxu0 0
      %1406 = vmatprep.subr.bf16.mxu0 0
      %1407 = vmatpush1.bf16.msra.mxu0 0
      %1408 = vmatprep.subr.bf16.mxu0 0
      %1409 = vmatpush1.bf16.msra.mxu0 0
      %1410 = vmatprep.subr.bf16.mxu0 0
      %1411 = vmatpush1.bf16.msra.mxu0 0
      %1412 = vmatprep.subr.bf16.mxu0 0
      %1413 = vmatpush1.bf16.msra.mxu0 0
      %1414 = vmatprep.subr.bf16.mxu0 0
      %1415 = vmatpush1.bf16.msra.mxu0 0
      %1416 = vmatprep.subr.bf16.mxu0 0
      %1417 = vmatpush1.bf16.msra.mxu0 0
      %1418 = vmatprep.subr.bf16.mxu0 0
      %1419 = vmatpush1.bf16.msra.mxu0 0
      %1420 = vmatprep.subr.bf16.mxu0 0
      %1421 = vmatpush1.bf16.msra.mxu0 0
      %1422 = vmatprep.subr.bf16.mxu0 0
      %1423 = vmatpush1.bf16.msra.mxu0 0
      %1424 = vmatprep.subr.bf16.mxu0 0
      %1425 = vmatpush1.bf16.msra.mxu0 0
      %1426 = vmatprep.mubr.bf16.mxu0 0
      %1427 = vmatmul.mubr.bf16.gmra.mrb[0].mxu0 %v1338
      %v1428 = vpop.f32.mrb[0].mxu0
      %v1429 = vadd.f32 0.0, %v1428
      %v1430 = vpop.f32.mrb[0].mxu0
      %v1431 = vpop.f32.mrb[0].mxu0
      %v1432 = vadd.f32 0.0, %v1431
      %v1433 = vpop.f32.mrb[0].mxu0
      %1434 = vmatprep.mubr.bf16.mxu0 0
      %1435 = vmatmul.mubr.bf16.gmra.mrb[0].mxu0 %v1341
      %v1436 = vpop.f32.mrb[0].mxu0
      %v1437 = vadd.f32 0.0, %v1436
      %v1438 = vpop.f32.mrb[0].mxu0
      %v1439 = vpop.f32.mrb[0].mxu0
      %v1440 = vadd.f32 0.0, %v1439
      %v1441 = vpop.f32.mrb[0].mxu0
      %1442 = vmatprep.mubr.bf16.mxu0 0
      %1443 = vmatmul.mubr.bf16.gmra.mrb[0].mxu0 %v1344
      %v1444 = vpop.f32.mrb[0].mxu0
      %v1445 = vadd.f32 0.0, %v1444
      %v1446 = vpop.f32.mrb[0].mxu0
      %v1447 = vpop.f32.mrb[0].mxu0
      %v1448 = vadd.f32 0.0, %v1447
      %v1449 = vpop.f32.mrb[0].mxu0
      %1450 = vmatprep.mubr.bf16.mxu0 0
      %1451 = vmatmul.mubr.bf16.gmra.mrb[0].mxu0 %v1347
      %v1452 = vpop.f32.mrb[0].mxu0
      %v1453 = vadd.f32 0.0, %v1452
      %v1454 = vpop.f32.mrb[0].mxu0
      %v1455 = vpop.f32.mrb[0].mxu0
      %v1456 = vadd.f32 0.0, %v1455
      %v1457 = vpop.f32.mrb[0].mxu0
      %1458 = vmatprep.mubr.bf16.mxu0 0
      %1459 = vmatmul.mubr.bf16.gmra.mrb[0].mxu0 %v1350
      %v1460 = vpop.f32.mrb[0].mxu0
      %v1461 = vadd.f32 0.0, %v1460
      %v1462 = vpop.f32.mrb[0].mxu0
      %v1463 = vpop.f32.mrb[0].mxu0
      %v1464 = vadd.f32 0.0, %v1463
      %v1465 = vpop.f32.mrb[0].mxu0
      %1466 = vmatprep.mubr.bf16.mxu0 0
      %1467 = vmatmul.mubr.bf16.gmra.mrb[0].mxu0 %v1353
      %v1468 = vpop.f32.mrb[0].mxu0
      %v1469 = vadd.f32 0.0, %v1468
      %v1470 = vpop.f32.mrb[0].mxu0
      %v1471 = vpop.f32.mrb[0].mxu0
      %v1472 = vadd.f32 0.0, %v1471
      %v1473 = vpop.f32.mrb[0].mxu0
      %1474 = vmatprep.mubr.bf16.mxu0 0
      %1475 = vmatmul.mubr.bf16.gmra.mrb[0].mxu0 %v1356
      %v1476 = vpop.f32.mrb[0].mxu0
      %v1477 = vadd.f32 0.0, %v1476
      %v1478 = vpop.f32.mrb[0].mxu0
      %v1479 = vpop.f32.mrb[0].mxu0
      %v1480 = vadd.f32 0.0, %v1479
      %v1481 = vpop.f32.mrb[0].mxu0
      %1482 = vmatprep.mubr.bf16.mxu0 0
      %1483 = vmatmul.mubr.bf16.gmra.mrb[0].mxu0 %v1359
      %v1484 = vpop.f32.mrb[0].mxu0
      %v1485 = vadd.f32 0.0, %v1484
      %v1486 = vpop.f32.mrb[0].mxu0
      %v1487 = vpop.f32.mrb[0].mxu0
      %v1488 = vadd.f32 0.0, %v1487
      %v1489 = vpop.f32.mrb[0].mxu0
      %1490 = vmatprep.mubr.bf16.mxu0 0
      %1491 = vmatmul.mubr.bf16.gmra.mrb[0].mxu0 %v1362
      %v1492 = vpop.f32.mrb[0].mxu0
      %v1493 = vadd.f32 0.0, %v1492
      %v1494 = vpop.f32.mrb[0].mxu0
      %v1495 = vpop.f32.mrb[0].mxu0
      %v1496 = vadd.f32 0.0, %v1495
      %v1497 = vpop.f32.mrb[0].mxu0
      %1498 = vmatprep.mubr.bf16.mxu0 0
      %1499 = vmatmul.mubr.bf16.gmra.mrb[0].mxu0 %v1365
      %v1500 = vpop.f32.mrb[0].mxu0
      %v1501 = vadd.f32 0.0, %v1500
      %v1502 = vpop.f32.mrb[0].mxu0
      %v1503 = vpop.f32.mrb[0].mxu0
      %v1504 = vadd.f32 0.0, %v1503
      %v1505 = vpop.f32.mrb[0].mxu0
      %1506 = vmatprep.mubr.bf16.mxu0 0
      %1507 = vmatmul.mubr.bf16.gmra.mrb[0].mxu0 %v1368
      %v1508 = vpop.f32.mrb[0].mxu0
      %v1509 = vadd.f32 0.0, %v1508
      %v1510 = vpop.f32.mrb[0].mxu0
      %v1511 = vpop.f32.mrb[0].mxu0
      %v1512 = vadd.f32 0.0, %v1511
      %v1513 = vpop.f32.mrb[0].mxu0
      %1514 = vmatprep.mubr.bf16.mxu0 0
      %1515 = vmatmul.mubr.bf16.gmra.mrb[0].mxu0 %v1371
      %v1516 = vpop.f32.mrb[0].mxu0
      %v1517 = vadd.f32 0.0, %v1516
      %v1518 = vpop.f32.mrb[0].mxu0
      %v1519 = vpop.f32.mrb[0].mxu0
      %v1520 = vadd.f32 0.0, %v1519
      %v1521 = vpop.f32.mrb[0].mxu0
      %1522 = vmatprep.mubr.bf16.mxu0 0
      %1523 = vmatmul.mubr.bf16.gmra.mrb[0].mxu0 %v1374
      %v1524 = vpop.f32.mrb[0].mxu0
      %v1525 = vadd.f32 0.0, %v1524
      %v1526 = vpop.f32.mrb[0].mxu0
      %v1527 = vpop.f32.mrb[0].mxu0
      %v1528 = vadd.f32 0.0, %v1527
      %v1529 = vpop.f32.mrb[0].mxu0
      %1530 = vmatprep.mubr.bf16.mxu0 0
      %1531 = vmatmul.mubr.bf16.gmra.mrb[0].mxu0 %v1377
      %v1532 = vpop.f32.mrb[0].mxu0
      %v1533 = vadd.f32 0.0, %v1532
      %v1534 = vpop.f32.mrb[0].mxu0
      %v1535 = vpop.f32.mrb[0].mxu0
      %v1536 = vadd.f32 0.0, %v1535
      %v1537 = vpop.f32.mrb[0].mxu0
      %1538 = vmatprep.mubr.bf16.mxu0 0
      %1539 = vmatmul.mubr.bf16.gmra.mrb[0].mxu0 %v1380
      %v1540 = vpop.f32.mrb[0].mxu0
      %v1541 = vadd.f32 0.0, %v1540
      %v1542 = vpop.f32.mrb[0].mxu0
      %v1543 = vpop.f32.mrb[0].mxu0
      %v1544 = vadd.f32 0.0, %v1543
      %v1545 = vpop.f32.mrb[0].mxu0
      %1546 = vmatprep.mubr.bf16.mxu0 0
      %1547 = vmatmul.mubr.bf16.gmra.mrb[0].mxu0 %v1383
      %v1548 = vpop.f32.mrb[0].mxu0
      %v1549 = vadd.f32 0.0, %v1548
      %v1550 = vpop.f32.mrb[0].mxu0
      %v1551 = vpop.f32.mrb[0].mxu0
      %v1552 = vadd.f32 0.0, %v1551
      %v1553 = vpop.f32.mrb[0].mxu0
      %1554 = vmatprep.mubr.bf16.mxu0 0
      %1555 = vmatmul.mubr.bf16.gmra.mrb[0].mxu0 %v1386
      %v1556 = vpop.f32.mrb[0].mxu0
      %v1557 = vadd.f32 0.0, %v1556
      %v1558 = vpop.f32.mrb[0].mxu0
      %v1559 = vpop.f32.mrb[0].mxu0
      %v1560 = vadd.f32 0.0, %v1559
      %v1561 = vpop.f32.mrb[0].mxu0
      %1562 = vmatprep.mubr.bf16.mxu0 0
      %1563 = vmatmul.mubr.bf16.gmra.mrb[0].mxu0 %v1389
      %v1564 = vpop.f32.mrb[0].mxu0
      %v1565 = vadd.f32 0.0, %v1564
      %v1566 = vpop.f32.mrb[0].mxu0
      %v1567 = vpop.f32.mrb[0].mxu0
      %v1568 = vadd.f32 0.0, %v1567
      %v1569 = vpop.f32.mrb[0].mxu0
      %1570 = vdwg.mxu0
      %v1571 = vld [vmem:[#allocation2] sm:$0xff]
      %v1572 = vld [vmem:[#allocation2 + $0x8] sm:$0xff]
      %v1573 = vld [vmem:[#allocation2 + $0x10] sm:$0xff]
      %v1574 = vld [vmem:[#allocation2 + $0x18] sm:$0xff]
      %v1575 = vld [vmem:[#allocation2 + $0x20] sm:$0xff]
      %v1576 = vld [vmem:[#allocation2 + $0x28] sm:$0xff]
      %v1577 = vld [vmem:[#allocation2 + $0x30] sm:$0xff]
      %v1578 = vld [vmem:[#allocation2 + $0x38] sm:$0xff]
      %v1579 = vld [vmem:[#allocation2 + $0x40] sm:$0xff]
      %v1580 = vld [vmem:[#allocation2 + $0x48] sm:$0xff]
      %v1581 = vld [vmem:[#allocation2 + $0x50] sm:$0xff]
      %v1582 = vld [vmem:[#allocation2 + $0x58] sm:$0xff]
      %v1583 = vld [vmem:[#allocation2 + $0x60] sm:$0xff]
      %v1584 = vld [vmem:[#allocation2 + $0x68] sm:$0xff]
      %v1585 = vld [vmem:[#allocation2 + $0x70] sm:$0xff]
      %v1586 = vld [vmem:[#allocation2 + $0x78] sm:$0xff]
      %v1587 = vld [vmem:[#allocation2 + $0x80] sm:$0xff]
      %v1588 = vld [vmem:[#allocation2 + $0x88] sm:$0xff]
      %v1589 = vld [vmem:[#allocation2 + $0x90] sm:$0xff]
      %v1590 = vld [vmem:[#allocation2 + $0x98] sm:$0xff]
      %v1591 = vld [vmem:[#allocation2 + $0xa0] sm:$0xff]
      %v1592 = vld [vmem:[#allocation2 + $0xa8] sm:$0xff]
      %v1593 = vld [vmem:[#allocation2 + $0xb0] sm:$0xff]
      %v1594 = vld [vmem:[#allocation2 + $0xb8] sm:$0xff]
      %v1595 = vld [vmem:[#allocation2 + $0xc0] sm:$0xff]
      %v1596 = vld [vmem:[#allocation2 + $0xc8] sm:$0xff]
      %v1597 = vld [vmem:[#allocation2 + $0xd0] sm:$0xff]
      %v1598 = vld [vmem:[#allocation2 + $0xd8] sm:$0xff]
      %v1599 = vld [vmem:[#allocation2 + $0xe0] sm:$0xff]
      %v1600 = vld [vmem:[#allocation2 + $0xe8] sm:$0xff]
      %v1601 = vld [vmem:[#allocation2 + $0xf0] sm:$0xff]
      %v1602 = vld [vmem:[#allocation2 + $0xf8] sm:$0xff]
      %v1603 = vld [vmem:[#allocation2 + $0x100] sm:$0xff]
      %v1604 = vld [vmem:[#allocation2 + $0x108] sm:$0xff]
      %v1605 = vld [vmem:[#allocation2 + $0x110] sm:$0xff]
      %v1606 = vld [vmem:[#allocation2 + $0x118] sm:$0xff]
      %v1607 = vadd.f32 %v1571, %v1429
      %v1608 = vadd.f32 %v1572, %v1432
      %v1609 = vadd.f32 %v1573, %v1437
      %v1610 = vadd.f32 %v1574, %v1440
      %v1611 = vadd.f32 %v1575, %v1445
      %v1612 = vadd.f32 %v1576, %v1448
      %v1613 = vadd.f32 %v1577, %v1453
      %v1614 = vadd.f32 %v1578, %v1456
      %v1615 = vadd.f32 %v1579, %v1461
      %v1616 = vadd.f32 %v1580, %v1464
      %v1617 = vadd.f32 %v1581, %v1469
      %v1618 = vadd.f32 %v1582, %v1472
      %v1619 = vadd.f32 %v1583, %v1477
      %v1620 = vadd.f32 %v1584, %v1480
      %v1621 = vadd.f32 %v1585, %v1485
      %v1622 = vadd.f32 %v1586, %v1488
      %v1623 = vadd.f32 %v1587, %v1493
      %v1624 = vadd.f32 %v1588, %v1496
      %v1625 = vadd.f32 %v1589, %v1501
      %v1626 = vadd.f32 %v1590, %v1504
      %v1627 = vadd.f32 %v1591, %v1509
      %v1628 = vadd.f32 %v1592, %v1512
      %v1629 = vadd.f32 %v1593, %v1517
      %v1630 = vadd.f32 %v1594, %v1520
      %v1631 = vadd.f32 %v1595, %v1525
      %v1632 = vadd.f32 %v1596, %v1528
      %v1633 = vadd.f32 %v1597, %v1533
      %v1634 = vadd.f32 %v1598, %v1536
      %v1635 = vadd.f32 %v1599, %v1541
      %v1636 = vadd.f32 %v1600, %v1544
      %v1637 = vadd.f32 %v1601, %v1549
      %v1638 = vadd.f32 %v1602, %v1552
      %v1639 = vadd.f32 %v1603, %v1557
      %v1640 = vadd.f32 %v1604, %v1560
      %v1641 = vadd.f32 %v1605, %v1565
      %v1642 = vadd.f32 %v1606, %v1568
      %1643 = vst [vmem:[#allocation2] sm:$0xff] %v1607
      %1644 = vst [vmem:[#allocation2 + $0x8] sm:$0xff] %v1608
      %1645 = vst [vmem:[#allocation2 + $0x10] sm:$0xff] %v1609
      %1646 = vst [vmem:[#allocation2 + $0x18] sm:$0xff] %v1610
      %1647 = vst [vmem:[#allocation2 + $0x20] sm:$0xff] %v1611
      %1648 = vst [vmem:[#allocation2 + $0x28] sm:$0xff] %v1612
      %1649 = vst [vmem:[#allocation2 + $0x30] sm:$0xff] %v1613
      %1650 = vst [vmem:[#allocation2 + $0x38] sm:$0xff] %v1614
      %1651 = vst [vmem:[#allocation2 + $0x40] sm:$0xff] %v1615
      %1652 = vst [vmem:[#allocation2 + $0x48] sm:$0xff] %v1616
      %1653 = vst [vmem:[#allocation2 + $0x50] sm:$0xff] %v1617
      %1654 = vst [vmem:[#allocation2 + $0x58] sm:$0xff] %v1618
      %1655 = vst [vmem:[#allocation2 + $0x60] sm:$0xff] %v1619
      %1656 = vst [vmem:[#allocation2 + $0x68] sm:$0xff] %v1620
      %1657 = vst [vmem:[#allocation2 + $0x70] sm:$0xff] %v1621
      %1658 = vst [vmem:[#allocation2 + $0x78] sm:$0xff] %v1622
      %1659 = vst [vmem:[#allocation2 + $0x80] sm:$0xff] %v1623
      %1660 = vst [vmem:[#allocation2 + $0x88] sm:$0xff] %v1624
      %1661 = vst [vmem:[#allocation2 + $0x90] sm:$0xff] %v1625
      %1662 = vst [vmem:[#allocation2 + $0x98] sm:$0xff] %v1626
      %1663 = vst [vmem:[#allocation2 + $0xa0] sm:$0xff] %v1627
      %1664 = vst [vmem:[#allocation2 + $0xa8] sm:$0xff] %v1628
      %1665 = vst [vmem:[#allocation2 + $0xb0] sm:$0xff] %v1629
      %1666 = vst [vmem:[#allocation2 + $0xb8] sm:$0xff] %v1630
      %1667 = vst [vmem:[#allocation2 + $0xc0] sm:$0xff] %v1631
      %1668 = vst [vmem:[#allocation2 + $0xc8] sm:$0xff] %v1632
      %1669 = vst [vmem:[#allocation2 + $0xd0] sm:$0xff] %v1633
      %1670 = vst [vmem:[#allocation2 + $0xd8] sm:$0xff] %v1634
      %1671 = vst [vmem:[#allocation2 + $0xe0] sm:$0xff] %v1635
      %1672 = vst [vmem:[#allocation2 + $0xe8] sm:$0xff] %v1636
      %1673 = vst [vmem:[#allocation2 + $0xf0] sm:$0xff] %v1637
      %1674 = vst [vmem:[#allocation2 + $0xf8] sm:$0xff] %v1638
      %1675 = vst [vmem:[#allocation2 + $0x100] sm:$0xff] %v1639
      %1676 = vst [vmem:[#allocation2 + $0x108] sm:$0xff] %v1640
      %1677 = vst [vmem:[#allocation2 + $0x110] sm:$0xff] %v1641
      %1678 = vst [vmem:[#allocation2 + $0x118] sm:$0xff] %v1642
      %v1679 = vld [vmem:[%s138 + $0x8] sm:$0xe]
      %v1680 = vld [vmem:[%s138 + $0xc] sm:$0xf]
      %v1681 = vld [vmem:[%s138 + $0x10] sm:$0xf]
      %v1682 = vld [vmem:[%s138 + $0x14] sm:$0xf]
      %v1683 = vld [vmem:[%s138 + $0x18] sm:$0xf]
      %v1684 = vld [vmem:[%s138 + $0x1c] sm:$0xf]
      %v1685 = vld [vmem:[%s138 + $0x20] sm:$0xf]
      %v1686 = vld [vmem:[%s138 + $0x24] sm:$0xf]
      %v1687 = vld [vmem:[%s138 + $0x28] sm:$0xf]
      %v1688 = vld [vmem:[%s138 + $0x2c] sm:$0xf]
      %v1689 = vld [vmem:[%s138 + $0x30] sm:$0xf]
      %v1690 = vld [vmem:[%s138 + $0x34] sm:$0xf]
      %v1691 = vld [vmem:[%s138 + $0x38] sm:$0xf]
      %v1692 = vld [vmem:[%s138 + $0x3c] sm:$0xf]
      %v1693 = vld [vmem:[%s138 + $0x40] sm:$0xf]
      %v1694 = vld [vmem:[%s138 + $0x44] sm:$0xf]
      %v1695 = vld [vmem:[%s138 + $0x48] sm:$0xf]
      %v1696 = vld [vmem:[%s138 + $0x4c] sm:$0xf]
      %v1697 = vld [vmem:[%s138 + $0x50] sm:$0xf]
      %v1698 = vld [vmem:[%s138 + $0x54] sm:$0xf]
      %v1699 = vld [vmem:[%s138 + $0x58] sm:$0xf]
      %v1700 = vld [vmem:[%s138 + $0x5c] sm:$0xf]
      %v1701 = vld [vmem:[%s138 + $0x60] sm:$0xf]
      %v1702 = vld [vmem:[%s138 + $0x64] sm:$0xf]
      %v1703 = vld [vmem:[%s138 + $0x68] sm:$0xf]
      %v1704 = vld [vmem:[%s138 + $0x6c] sm:$0xf]
      %v1705 = vld [vmem:[%s138 + $0x70] sm:$0xf]
      %v1706 = vld [vmem:[%s138 + $0x74] sm:$0xf]
      %v1707 = vld [vmem:[%s138 + $0x78] sm:$0xf]
      %v1708 = vld [vmem:[%s138 + $0x7c] sm:$0xf]
      %v1709 = vld [vmem:[%s138 + $0x80] sm:$0xf]
      %v1710 = vld [vmem:[%s138 + $0x84] sm:$0xf]
      %v1711 = vld [vmem:[%s138 + $0x88] sm:$0xf]
      %v1712 = vld [vmem:[%s138 + $0x8c] sm:$0xf]
      %v1713 = vld [vmem:[%s138 + $0x90] sm:$0xf]
      %v1714 = vld [vmem:[%s138 + $0x94] sm:$0xf]
      %v1715 = vld [vmem:[%s138 + $0x98] sm:$0x1]
      %s1716 = scalar_lea.vmem %s1, 6
      %v1717 = vld [vmem:[%s1716] sm:$0x3]
      %v1755 = vunpack.c.l.b16 %v1679
      %v1756 = vunpack.c.l.b16 %v1680
      %v1757 = vunpack.c.l.b16 %v1681
      %v1758 = vunpack.c.l.b16 %v1682
      %v1759 = vunpack.c.l.b16 %v1683
      %v1760 = vunpack.c.l.b16 %v1684
      %v1761 = vunpack.c.l.b16 %v1685
      %v1762 = vunpack.c.l.b16 %v1686
      %v1763 = vunpack.c.l.b16 %v1687
      %v1764 = vunpack.c.l.b16 %v1688
      %v1765 = vunpack.c.l.b16 %v1689
      %v1766 = vunpack.c.l.b16 %v1690
      %v1767 = vunpack.c.l.b16 %v1691
      %v1768 = vunpack.c.l.b16 %v1692
      %v1769 = vunpack.c.l.b16 %v1693
      %v1770 = vunpack.c.l.b16 %v1694
      %v1771 = vunpack.c.l.b16 %v1695
      %v1772 = vunpack.c.l.b16 %v1696
      %v1773 = vunpack.c.l.b16 %v1697
      %v1774 = vunpack.c.l.b16 %v1698
      %v1775 = vunpack.c.l.b16 %v1699
      %v1776 = vunpack.c.l.b16 %v1700
      %v1777 = vunpack.c.l.b16 %v1701
      %v1778 = vunpack.c.l.b16 %v1702
      %v1779 = vunpack.c.l.b16 %v1703
      %v1780 = vunpack.c.l.b16 %v1704
      %v1781 = vunpack.c.l.b16 %v1705
      %v1782 = vunpack.c.l.b16 %v1706
      %v1783 = vunpack.c.l.b16 %v1707
      %v1784 = vunpack.c.l.b16 %v1708
      %v1785 = vunpack.c.l.b16 %v1709
      %v1786 = vunpack.c.l.b16 %v1710
      %v1787 = vunpack.c.l.b16 %v1711
      %v1788 = vunpack.c.l.b16 %v1712
      %v1789 = vunpack.c.l.b16 %v1713
      %v1790 = vunpack.c.l.b16 %v1714
      %v1791 = vunpack.c.l.b16 %v1715
      %v1792 = vpack.c.b16 %v1756, %v1755
      %v1793 = vpack.c.b16 %v1758, %v1757
      %v1794 = vpack.c.b16 %v1760, %v1759
      %v1795 = vpack.c.b16 %v1762, %v1761
      %v1796 = vpack.c.b16 %v1764, %v1763
      %v1797 = vpack.c.b16 %v1766, %v1765
      %v1798 = vpack.c.b16 %v1768, %v1767
      %v1799 = vpack.c.b16 %v1770, %v1769
      %v1800 = vpack.c.b16 %v1772, %v1771
      %v1801 = vpack.c.b16 %v1774, %v1773
      %v1802 = vpack.c.b16 %v1776, %v1775
      %v1803 = vpack.c.b16 %v1778, %v1777
      %v1804 = vpack.c.b16 %v1780, %v1779
      %v1805 = vpack.c.b16 %v1782, %v1781
      %v1806 = vpack.c.b16 %v1784, %v1783
      %v1807 = vpack.c.b16 %v1786, %v1785
      %v1808 = vpack.c.b16 %v1788, %v1787
      %v1809 = vpack.c.b16 %v1790, %v1789
      %v1810 = vpack.c.b16 %v1791, %v1791
      %v1811 = vrot.slane %v1792, 1
      %v1812 = vrot.slane %v1793, 1
      %v1813 = vsel %vm1299, %v1811, %v1812
      %v1814 = vrot.slane %v1794, 1
      %v1815 = vsel %vm1299, %v1812, %v1814
      %v1816 = vrot.slane %v1795, 1
      %v1817 = vsel %vm1299, %v1814, %v1816
      %v1818 = vrot.slane %v1796, 1
      %v1819 = vsel %vm1299, %v1816, %v1818
      %v1820 = vrot.slane %v1797, 1
      %v1821 = vsel %vm1299, %v1818, %v1820
      %v1822 = vrot.slane %v1798, 1
      %v1823 = vsel %vm1299, %v1820, %v1822
      %v1824 = vrot.slane %v1799, 1
      %v1825 = vsel %vm1299, %v1822, %v1824
      %v1826 = vrot.slane %v1800, 1
      %v1827 = vsel %vm1299, %v1824, %v1826
      %v1828 = vrot.slane %v1801, 1
      %v1829 = vsel %vm1299, %v1826, %v1828
      %v1830 = vrot.slane %v1802, 1
      %v1831 = vsel %vm1299, %v1828, %v1830
      %v1832 = vrot.slane %v1803, 1
      %v1833 = vsel %vm1299, %v1830, %v1832
      %v1834 = vrot.slane %v1804, 1
      %v1835 = vsel %vm1299, %v1832, %v1834
      %v1836 = vrot.slane %v1805, 1
      %v1837 = vsel %vm1299, %v1834, %v1836
      %v1838 = vrot.slane %v1806, 1
      %v1839 = vsel %vm1299, %v1836, %v1838
      %v1840 = vrot.slane %v1807, 1
      %v1841 = vsel %vm1299, %v1838, %v1840
      %v1842 = vrot.slane %v1808, 1
      %v1843 = vsel %vm1299, %v1840, %v1842
      %v1844 = vrot.slane %v1809, 1
      %v1845 = vsel %vm1299, %v1842, %v1844
      %v1846 = vrot.slane %v1810, 1
      %v1847 = vsel %vm1299, %v1844, %v1846
      %v1849 = vsel %vm272, %v1813, 0
      %v1852 = vsel %vm272, %v1815, 0
      %v1855 = vsel %vm272, %v1817, 0
      %v1858 = vsel %vm272, %v1819, 0
      %v1861 = vsel %vm272, %v1821, 0
      %v1864 = vsel %vm272, %v1823, 0
      %v1867 = vsel %vm272, %v1825, 0
      %v1870 = vsel %vm272, %v1827, 0
      %v1873 = vsel %vm272, %v1829, 0
      %v1876 = vsel %vm272, %v1831, 0
      %v1879 = vsel %vm272, %v1833, 0
      %v1882 = vsel %vm272, %v1835, 0
      %v1885 = vsel %vm272, %v1837, 0
      %v1888 = vsel %vm272, %v1839, 0
      %v1891 = vsel %vm272, %v1841, 0
      %v1894 = vsel %vm272, %v1843, 0
      %v1897 = vsel %vm272, %v1845, 0
      %v1900 = vsel %vm272, %v1847, 0
      %v1903 = vsel %vm327, %v1717, 0
      %1905 = vmatprep.subr.bf16.mxu0 0
      %1906 = vmatpush1.bf16.msra.mxu0 %v1903
      %1907 = vmatprep.subr.bf16.mxu0 0
      %1908 = vmatpush1.bf16.msra.mxu0 0
      %1909 = vmatprep.subr.bf16.mxu0 0
      %1910 = vmatpush1.bf16.msra.mxu0 0
      %1911 = vmatprep.subr.bf16.mxu0 0
      %1912 = vmatpush1.bf16.msra.mxu0 0
      %1913 = vmatprep.subr.bf16.mxu0 0
      %1914 = vmatpush1.bf16.msra.mxu0 0
      %1915 = vmatprep.subr.bf16.mxu0 0
      %1916 = vmatpush1.bf16.msra.mxu0 0
      %1917 = vmatprep.subr.bf16.mxu0 0
      %1918 = vmatpush1.bf16.msra.mxu0 0
      %1919 = vmatprep.subr.bf16.mxu0 0
      %1920 = vmatpush1.bf16.msra.mxu0 0
      %1921 = vmatprep.subr.bf16.mxu0 0
      %1922 = vmatpush1.bf16.msra.mxu0 0
      %1923 = vmatprep.subr.bf16.mxu0 0
      %1924 = vmatpush1.bf16.msra.mxu0 0
      %1925 = vmatprep.subr.bf16.mxu0 0
      %1926 = vmatpush1.bf16.msra.mxu0 0
      %1927 = vmatprep.subr.bf16.mxu0 0
      %1928 = vmatpush1.bf16.msra.mxu0 0
      %1929 = vmatprep.subr.bf16.mxu0 0
      %1930 = vmatpush1.bf16.msra.mxu0 0
      %1931 = vmatprep.subr.bf16.mxu0 0
      %1932 = vmatpush1.bf16.msra.mxu0 0
      %1933 = vmatprep.subr.bf16.mxu0 0
      %1934 = vmatpush1.bf16.msra.mxu0 0
      %1935 = vmatprep.subr.bf16.mxu0 0
      %1936 = vmatpush1.bf16.msra.mxu0 0
      %1937 = vmatprep.mubr.bf16.mxu0 0
      %1938 = vmatmul.mubr.bf16.gmra.mrb[0].mxu0 %v1849
      %v1939 = vpop.f32.mrb[0].mxu0
      %v1940 = vadd.f32 0.0, %v1939
      %v1941 = vpop.f32.mrb[0].mxu0
      %v1942 = vpop.f32.mrb[0].mxu0
      %v1943 = vadd.f32 0.0, %v1942
      %v1944 = vpop.f32.mrb[0].mxu0
      %1945 = vmatprep.mubr.bf16.mxu0 0
      %1946 = vmatmul.mubr.bf16.gmra.mrb[0].mxu0 %v1852
      %v1947 = vpop.f32.mrb[0].mxu0
      %v1948 = vadd.f32 0.0, %v1947
      %v1949 = vpop.f32.mrb[0].mxu0
      %v1950 = vpop.f32.mrb[0].mxu0
      %v1951 = vadd.f32 0.0, %v1950
      %v1952 = vpop.f32.mrb[0].mxu0
      %1953 = vmatprep.mubr.bf16.mxu0 0
      %1954 = vmatmul.mubr.bf16.gmra.mrb[0].mxu0 %v1855
      %v1955 = vpop.f32.mrb[0].mxu0
      %v1956 = vadd.f32 0.0, %v1955
      %v1957 = vpop.f32.mrb[0].mxu0
      %v1958 = vpop.f32.mrb[0].mxu0
      %v1959 = vadd.f32 0.0, %v1958
      %v1960 = vpop.f32.mrb[0].mxu0
      %1961 = vmatprep.mubr.bf16.mxu0 0
      %1962 = vmatmul.mubr.bf16.gmra.mrb[0].mxu0 %v1858
      %v1963 = vpop.f32.mrb[0].mxu0
      %v1964 = vadd.f32 0.0, %v1963
      %v1965 = vpop.f32.mrb[0].mxu0
      %v1966 = vpop.f32.mrb[0].mxu0
      %v1967 = vadd.f32 0.0, %v1966
      %v1968 = vpop.f32.mrb[0].mxu0
      %1969 = vmatprep.mubr.bf16.mxu0 0
      %1970 = vmatmul.mubr.bf16.gmra.mrb[0].mxu0 %v1861
      %v1971 = vpop.f32.mrb[0].mxu0
      %v1972 = vadd.f32 0.0, %v1971
      %v1973 = vpop.f32.mrb[0].mxu0
      %v1974 = vpop.f32.mrb[0].mxu0
      %v1975 = vadd.f32 0.0, %v1974
      %v1976 = vpop.f32.mrb[0].mxu0
      %1977 = vmatprep.mubr.bf16.mxu0 0
      %1978 = vmatmul.mubr.bf16.gmra.mrb[0].mxu0 %v1864
      %v1979 = vpop.f32.mrb[0].mxu0
      %v1980 = vadd.f32 0.0, %v1979
      %v1981 = vpop.f32.mrb[0].mxu0
      %v1982 = vpop.f32.mrb[0].mxu0
      %v1983 = vadd.f32 0.0, %v1982
      %v1984 = vpop.f32.mrb[0].mxu0
      %1985 = vmatprep.mubr.bf16.mxu0 0
      %1986 = vmatmul.mubr.bf16.gmra.mrb[0].mxu0 %v1867
      %v1987 = vpop.f32.mrb[0].mxu0
      %v1988 = vadd.f32 0.0, %v1987
      %v1989 = vpop.f32.mrb[0].mxu0
      %v1990 = vpop.f32.mrb[0].mxu0
      %v1991 = vadd.f32 0.0, %v1990
      %v1992 = vpop.f32.mrb[0].mxu0
      %1993 = vmatprep.mubr.bf16.mxu0 0
      %1994 = vmatmul.mubr.bf16.gmra.mrb[0].mxu0 %v1870
      %v1995 = vpop.f32.mrb[0].mxu0
      %v1996 = vadd.f32 0.0, %v1995
      %v1997 = vpop.f32.mrb[0].mxu0
      %v1998 = vpop.f32.mrb[0].mxu0
      %v1999 = vadd.f32 0.0, %v1998
      %v2000 = vpop.f32.mrb[0].mxu0
      %2001 = vmatprep.mubr.bf16.mxu0 0
      %2002 = vmatmul.mubr.bf16.gmra.mrb[0].mxu0 %v1873
      %v2003 = vpop.f32.mrb[0].mxu0
      %v2004 = vadd.f32 0.0, %v2003
      %v2005 = vpop.f32.mrb[0].mxu0
      %v2006 = vpop.f32.mrb[0].mxu0
      %v2007 = vadd.f32 0.0, %v2006
      %v2008 = vpop.f32.mrb[0].mxu0
      %2009 = vmatprep.mubr.bf16.mxu0 0
      %2010 = vmatmul.mubr.bf16.gmra.mrb[0].mxu0 %v1876
      %v2011 = vpop.f32.mrb[0].mxu0
      %v2012 = vadd.f32 0.0, %v2011
      %v2013 = vpop.f32.mrb[0].mxu0
      %v2014 = vpop.f32.mrb[0].mxu0
      %v2015 = vadd.f32 0.0, %v2014
      %v2016 = vpop.f32.mrb[0].mxu0
      %2017 = vmatprep.mubr.bf16.mxu0 0
      %2018 = vmatmul.mubr.bf16.gmra.mrb[0].mxu0 %v1879
      %v2019 = vpop.f32.mrb[0].mxu0
      %v2020 = vadd.f32 0.0, %v2019
      %v2021 = vpop.f32.mrb[0].mxu0
      %v2022 = vpop.f32.mrb[0].mxu0
      %v2023 = vadd.f32 0.0, %v2022
      %v2024 = vpop.f32.mrb[0].mxu0
      %2025 = vmatprep.mubr.bf16.mxu0 0
      %2026 = vmatmul.mubr.bf16.gmra.mrb[0].mxu0 %v1882
      %v2027 = vpop.f32.mrb[0].mxu0
      %v2028 = vadd.f32 0.0, %v2027
      %v2029 = vpop.f32.mrb[0].mxu0
      %v2030 = vpop.f32.mrb[0].mxu0
      %v2031 = vadd.f32 0.0, %v2030
      %v2032 = vpop.f32.mrb[0].mxu0
      %2033 = vmatprep.mubr.bf16.mxu0 0
      %2034 = vmatmul.mubr.bf16.gmra.mrb[0].mxu0 %v1885
      %v2035 = vpop.f32.mrb[0].mxu0
      %v2036 = vadd.f32 0.0, %v2035
      %v2037 = vpop.f32.mrb[0].mxu0
      %v2038 = vpop.f32.mrb[0].mxu0
      %v2039 = vadd.f32 0.0, %v2038
      %v2040 = vpop.f32.mrb[0].mxu0
      %2041 = vmatprep.mubr.bf16.mxu0 0
      %2042 = vmatmul.mubr.bf16.gmra.mrb[0].mxu0 %v1888
      %v2043 = vpop.f32.mrb[0].mxu0
      %v2044 = vadd.f32 0.0, %v2043
      %v2045 = vpop.f32.mrb[0].mxu0
      %v2046 = vpop.f32.mrb[0].mxu0
      %v2047 = vadd.f32 0.0, %v2046
      %v2048 = vpop.f32.mrb[0].mxu0
      %2049 = vmatprep.mubr.bf16.mxu0 0
      %2050 = vmatmul.mubr.bf16.gmra.mrb[0].mxu0 %v1891
      %v2051 = vpop.f32.mrb[0].mxu0
      %v2052 = vadd.f32 0.0, %v2051
      %v2053 = vpop.f32.mrb[0].mxu0
      %v2054 = vpop.f32.mrb[0].mxu0
      %v2055 = vadd.f32 0.0, %v2054
      %v2056 = vpop.f32.mrb[0].mxu0
      %2057 = vmatprep.mubr.bf16.mxu0 0
      %2058 = vmatmul.mubr.bf16.gmra.mrb[0].mxu0 %v1894
      %v2059 = vpop.f32.mrb[0].mxu0
      %v2060 = vadd.f32 0.0, %v2059
      %v2061 = vpop.f32.mrb[0].mxu0
      %v2062 = vpop.f32.mrb[0].mxu0
      %v2063 = vadd.f32 0.0, %v2062
      %v2064 = vpop.f32.mrb[0].mxu0
      %2065 = vmatprep.mubr.bf16.mxu0 0
      %2066 = vmatmul.mubr.bf16.gmra.mrb[0].mxu0 %v1897
      %v2067 = vpop.f32.mrb[0].mxu0
      %v2068 = vadd.f32 0.0, %v2067
      %v2069 = vpop.f32.mrb[0].mxu0
      %v2070 = vpop.f32.mrb[0].mxu0
      %v2071 = vadd.f32 0.0, %v2070
      %v2072 = vpop.f32.mrb[0].mxu0
      %2073 = vmatprep.mubr.bf16.mxu0 0
      %2074 = vmatmul.mubr.bf16.gmra.mrb[0].mxu0 %v1900
      %v2075 = vpop.f32.mrb[0].mxu0
      %v2076 = vadd.f32 0.0, %v2075
      %v2077 = vpop.f32.mrb[0].mxu0
      %v2078 = vpop.f32.mrb[0].mxu0
      %v2079 = vadd.f32 0.0, %v2078
      %v2080 = vpop.f32.mrb[0].mxu0
      %2081 = vdwg.mxu0
      %v2082 = vld [vmem:[#allocation2] sm:$0xff]
      %v2083 = vld [vmem:[#allocation2 + $0x8] sm:$0xff]
      %v2084 = vld [vmem:[#allocation2 + $0x10] sm:$0xff]
      %v2085 = vld [vmem:[#allocation2 + $0x18] sm:$0xff]
      %v2086 = vld [vmem:[#allocation2 + $0x20] sm:$0xff]
      %v2087 = vld [vmem:[#allocation2 + $0x28] sm:$0xff]
      %v2088 = vld [vmem:[#allocation2 + $0x30] sm:$0xff]
      %v2089 = vld [vmem:[#allocation2 + $0x38] sm:$0xff]
      %v2090 = vld [vmem:[#allocation2 + $0x40] sm:$0xff]
      %v2091 = vld [vmem:[#allocation2 + $0x48] sm:$0xff]
      %v2092 = vld [vmem:[#allocation2 + $0x50] sm:$0xff]
      %v2093 = vld [vmem:[#allocation2 + $0x58] sm:$0xff]
      %v2094 = vld [vmem:[#allocation2 + $0x60] sm:$0xff]
      %v2095 = vld [vmem:[#allocation2 + $0x68] sm:$0xff]
      %v2096 = vld [vmem:[#allocation2 + $0x70] sm:$0xff]
      %v2097 = vld [vmem:[#allocation2 + $0x78] sm:$0xff]
      %v2098 = vld [vmem:[#allocation2 + $0x80] sm:$0xff]
      %v2099 = vld [vmem:[#allocation2 + $0x88] sm:$0xff]
      %v2100 = vld [vmem:[#allocation2 + $0x90] sm:$0xff]
      %v2101 = vld [vmem:[#allocation2 + $0x98] sm:$0xff]
      %v2102 = vld [vmem:[#allocation2 + $0xa0] sm:$0xff]
      %v2103 = vld [vmem:[#allocation2 + $0xa8] sm:$0xff]
      %v2104 = vld [vmem:[#allocation2 + $0xb0] sm:$0xff]
      %v2105 = vld [vmem:[#allocation2 + $0xb8] sm:$0xff]
      %v2106 = vld [vmem:[#allocation2 + $0xc0] sm:$0xff]
      %v2107 = vld [vmem:[#allocation2 + $0xc8] sm:$0xff]
      %v2108 = vld [vmem:[#allocation2 + $0xd0] sm:$0xff]
      %v2109 = vld [vmem:[#allocation2 + $0xd8] sm:$0xff]
      %v2110 = vld [vmem:[#allocation2 + $0xe0] sm:$0xff]
      %v2111 = vld [vmem:[#allocation2 + $0xe8] sm:$0xff]
      %v2112 = vld [vmem:[#allocation2 + $0xf0] sm:$0xff]
      %v2113 = vld [vmem:[#allocation2 + $0xf8] sm:$0xff]
      %v2114 = vld [vmem:[#allocation2 + $0x100] sm:$0xff]
      %v2115 = vld [vmem:[#allocation2 + $0x108] sm:$0xff]
      %v2116 = vld [vmem:[#allocation2 + $0x110] sm:$0xff]
      %v2117 = vld [vmem:[#allocation2 + $0x118] sm:$0xff]
      %v2118 = vadd.f32 %v2082, %v1940
      %v2119 = vadd.f32 %v2083, %v1943
      %v2120 = vadd.f32 %v2084, %v1948
      %v2121 = vadd.f32 %v2085, %v1951
      %v2122 = vadd.f32 %v2086, %v1956
      %v2123 = vadd.f32 %v2087, %v1959
      %v2124 = vadd.f32 %v2088, %v1964
      %v2125 = vadd.f32 %v2089, %v1967
      %v2126 = vadd.f32 %v2090, %v1972
      %v2127 = vadd.f32 %v2091, %v1975
      %v2128 = vadd.f32 %v2092, %v1980
      %v2129 = vadd.f32 %v2093, %v1983
      %v2130 = vadd.f32 %v2094, %v1988
      %v2131 = vadd.f32 %v2095, %v1991
      %v2132 = vadd.f32 %v2096, %v1996
      %v2133 = vadd.f32 %v2097, %v1999
      %v2134 = vadd.f32 %v2098, %v2004
      %v2135 = vadd.f32 %v2099, %v2007
      %v2136 = vadd.f32 %v2100, %v2012
      %v2137 = vadd.f32 %v2101, %v2015
      %v2138 = vadd.f32 %v2102, %v2020
      %v2139 = vadd.f32 %v2103, %v2023
      %v2140 = vadd.f32 %v2104, %v2028
      %v2141 = vadd.f32 %v2105, %v2031
      %v2142 = vadd.f32 %v2106, %v2036
      %v2143 = vadd.f32 %v2107, %v2039
      %v2144 = vadd.f32 %v2108, %v2044
      %v2145 = vadd.f32 %v2109, %v2047
      %v2146 = vadd.f32 %v2110, %v2052
      %v2147 = vadd.f32 %v2111, %v2055
      %v2148 = vadd.f32 %v2112, %v2060
      %v2149 = vadd.f32 %v2113, %v2063
      %v2150 = vadd.f32 %v2114, %v2068
      %v2151 = vadd.f32 %v2115, %v2071
      %v2152 = vadd.f32 %v2116, %v2076
      %v2153 = vadd.f32 %v2117, %v2079
      %2154 = vst [vmem:[#allocation2] sm:$0xff] %v2118
      %2155 = vst [vmem:[#allocation2 + $0x8] sm:$0xff] %v2119
      %2156 = vst [vmem:[#allocation2 + $0x10] sm:$0xff] %v2120
      %2157 = vst [vmem:[#allocation2 + $0x18] sm:$0xff] %v2121
      %2158 = vst [vmem:[#allocation2 + $0x20] sm:$0xff] %v2122
      %2159 = vst [vmem:[#allocation2 + $0x28] sm:$0xff] %v2123
      %2160 = vst [vmem:[#allocation2 + $0x30] sm:$0xff] %v2124
      %2161 = vst [vmem:[#allocation2 + $0x38] sm:$0xff] %v2125
      %2162 = vst [vmem:[#allocation2 + $0x40] sm:$0xff] %v2126
      %2163 = vst [vmem:[#allocation2 + $0x48] sm:$0xff] %v2127
      %2164 = vst [vmem:[#allocation2 + $0x50] sm:$0xff] %v2128
      %2165 = vst [vmem:[#allocation2 + $0x58] sm:$0xff] %v2129
      %2166 = vst [vmem:[#allocation2 + $0x60] sm:$0xff] %v2130
      %2167 = vst [vmem:[#allocation2 + $0x68] sm:$0xff] %v2131
      %2168 = vst [vmem:[#allocation2 + $0x70] sm:$0xff] %v2132
      %2169 = vst [vmem:[#allocation2 + $0x78] sm:$0xff] %v2133
      %2170 = vst [vmem:[#allocation2 + $0x80] sm:$0xff] %v2134
      %2171 = vst [vmem:[#allocation2 + $0x88] sm:$0xff] %v2135
      %2172 = vst [vmem:[#allocation2 + $0x90] sm:$0xff] %v2136
      %2173 = vst [vmem:[#allocation2 + $0x98] sm:$0xff] %v2137
      %2174 = vst [vmem:[#allocation2 + $0xa0] sm:$0xff] %v2138
      %2175 = vst [vmem:[#allocation2 + $0xa8] sm:$0xff] %v2139
      %2176 = vst [vmem:[#allocation2 + $0xb0] sm:$0xff] %v2140
      %2177 = vst [vmem:[#allocation2 + $0xb8] sm:$0xff] %v2141
      %2178 = vst [vmem:[#allocation2 + $0xc0] sm:$0xff] %v2142
      %2179 = vst [vmem:[#allocation2 + $0xc8] sm:$0xff] %v2143
      %2180 = vst [vmem:[#allocation2 + $0xd0] sm:$0xff] %v2144
      %2181 = vst [vmem:[#allocation2 + $0xd8] sm:$0xff] %v2145
      %2182 = vst [vmem:[#allocation2 + $0xe0] sm:$0xff] %v2146
      %2183 = vst [vmem:[#allocation2 + $0xe8] sm:$0xff] %v2147
      %2184 = vst [vmem:[#allocation2 + $0xf0] sm:$0xff] %v2148
      %2185 = vst [vmem:[#allocation2 + $0xf8] sm:$0xff] %v2149
      %2186 = vst [vmem:[#allocation2 + $0x100] sm:$0xff] %v2150
      %2187 = vst [vmem:[#allocation2 + $0x108] sm:$0xff] %v2151
      %2188 = vst [vmem:[#allocation2 + $0x110] sm:$0xff] %v2152
      %2189 = vst [vmem:[#allocation2 + $0x118] sm:$0xff] %v2153
      %v2190 = vld [vmem:[%s138 + $0x8] sm:$0xe]
      %v2191 = vld [vmem:[%s138 + $0xc] sm:$0xf]
      %v2192 = vld [vmem:[%s138 + $0x10] sm:$0xf]
      %v2193 = vld [vmem:[%s138 + $0x14] sm:$0xf]
      %v2194 = vld [vmem:[%s138 + $0x18] sm:$0xf]
      %v2195 = vld [vmem:[%s138 + $0x1c] sm:$0xf]
      %v2196 = vld [vmem:[%s138 + $0x20] sm:$0xf]
      %v2197 = vld [vmem:[%s138 + $0x24] sm:$0xf]
      %v2198 = vld [vmem:[%s138 + $0x28] sm:$0xf]
      %v2199 = vld [vmem:[%s138 + $0x2c] sm:$0xf]
      %v2200 = vld [vmem:[%s138 + $0x30] sm:$0xf]
      %v2201 = vld [vmem:[%s138 + $0x34] sm:$0xf]
      %v2202 = vld [vmem:[%s138 + $0x38] sm:$0xf]
      %v2203 = vld [vmem:[%s138 + $0x3c] sm:$0xf]
      %v2204 = vld [vmem:[%s138 + $0x40] sm:$0xf]
      %v2205 = vld [vmem:[%s138 + $0x44] sm:$0xf]
      %v2206 = vld [vmem:[%s138 + $0x48] sm:$0xf]
      %v2207 = vld [vmem:[%s138 + $0x4c] sm:$0xf]
      %v2208 = vld [vmem:[%s138 + $0x50] sm:$0xf]
      %v2209 = vld [vmem:[%s138 + $0x54] sm:$0xf]
      %v2210 = vld [vmem:[%s138 + $0x58] sm:$0xf]
      %v2211 = vld [vmem:[%s138 + $0x5c] sm:$0xf]
      %v2212 = vld [vmem:[%s138 + $0x60] sm:$0xf]
      %v2213 = vld [vmem:[%s138 + $0x64] sm:$0xf]
      %v2214 = vld [vmem:[%s138 + $0x68] sm:$0xf]
      %v2215 = vld [vmem:[%s138 + $0x6c] sm:$0xf]
      %v2216 = vld [vmem:[%s138 + $0x70] sm:$0xf]
      %v2217 = vld [vmem:[%s138 + $0x74] sm:$0xf]
      %v2218 = vld [vmem:[%s138 + $0x78] sm:$0xf]
      %v2219 = vld [vmem:[%s138 + $0x7c] sm:$0xf]
      %v2220 = vld [vmem:[%s138 + $0x80] sm:$0xf]
      %v2221 = vld [vmem:[%s138 + $0x84] sm:$0xf]
      %v2222 = vld [vmem:[%s138 + $0x88] sm:$0xf]
      %v2223 = vld [vmem:[%s138 + $0x8c] sm:$0xf]
      %v2224 = vld [vmem:[%s138 + $0x90] sm:$0xf]
      %v2225 = vld [vmem:[%s138 + $0x94] sm:$0xf]
      %v2226 = vld [vmem:[%s138 + $0x98] sm:$0x3]
      %s2227 = scalar_lea.vmem %s1, 8
      %v2228 = vld [vmem:[%s2227] sm:$0x3]
      %v2266 = vunpack.c.l.b16 %v2190
      %v2267 = vunpack.c.l.b16 %v2191
      %v2268 = vunpack.c.l.b16 %v2192
      %v2269 = vunpack.c.l.b16 %v2193
      %v2270 = vunpack.c.l.b16 %v2194
      %v2271 = vunpack.c.l.b16 %v2195
      %v2272 = vunpack.c.l.b16 %v2196
      %v2273 = vunpack.c.l.b16 %v2197
      %v2274 = vunpack.c.l.b16 %v2198
      %v2275 = vunpack.c.l.b16 %v2199
      %v2276 = vunpack.c.l.b16 %v2200
      %v2277 = vunpack.c.l.b16 %v2201
      %v2278 = vunpack.c.l.b16 %v2202
      %v2279 = vunpack.c.l.b16 %v2203
      %v2280 = vunpack.c.l.b16 %v2204
      %v2281 = vunpack.c.l.b16 %v2205
      %v2282 = vunpack.c.l.b16 %v2206
      %v2283 = vunpack.c.l.b16 %v2207
      %v2284 = vunpack.c.l.b16 %v2208
      %v2285 = vunpack.c.l.b16 %v2209
      %v2286 = vunpack.c.l.b16 %v2210
      %v2287 = vunpack.c.l.b16 %v2211
      %v2288 = vunpack.c.l.b16 %v2212
      %v2289 = vunpack.c.l.b16 %v2213
      %v2290 = vunpack.c.l.b16 %v2214
      %v2291 = vunpack.c.l.b16 %v2215
      %v2292 = vunpack.c.l.b16 %v2216
      %v2293 = vunpack.c.l.b16 %v2217
      %v2294 = vunpack.c.l.b16 %v2218
      %v2295 = vunpack.c.l.b16 %v2219
      %v2296 = vunpack.c.l.b16 %v2220
      %v2297 = vunpack.c.l.b16 %v2221
      %v2298 = vunpack.c.l.b16 %v2222
      %v2299 = vunpack.c.l.b16 %v2223
      %v2300 = vunpack.c.l.b16 %v2224
      %v2301 = vunpack.c.l.b16 %v2225
      %v2302 = vunpack.c.l.b16 %v2226
      %v2303 = vpack.c.b16 %v2267, %v2266
      %v2304 = vpack.c.b16 %v2269, %v2268
      %v2305 = vpack.c.b16 %v2271, %v2270
      %v2306 = vpack.c.b16 %v2273, %v2272
      %v2307 = vpack.c.b16 %v2275, %v2274
      %v2308 = vpack.c.b16 %v2277, %v2276
      %v2309 = vpack.c.b16 %v2279, %v2278
      %v2310 = vpack.c.b16 %v2281, %v2280
      %v2311 = vpack.c.b16 %v2283, %v2282
      %v2312 = vpack.c.b16 %v2285, %v2284
      %v2313 = vpack.c.b16 %v2287, %v2286
      %v2314 = vpack.c.b16 %v2289, %v2288
      %v2315 = vpack.c.b16 %v2291, %v2290
      %v2316 = vpack.c.b16 %v2293, %v2292
      %v2317 = vpack.c.b16 %v2295, %v2294
      %v2318 = vpack.c.b16 %v2297, %v2296
      %v2319 = vpack.c.b16 %v2299, %v2298
      %v2320 = vpack.c.b16 %v2301, %v2300
      %v2321 = vpack.c.b16 %v2302, %v2302
      %vm2322 = vsmask.f32 6400
      %v2324 = vshrl.u32 %v2303, 16
      %v2326 = vrot.slane %v2324, 1
      %v2327 = vshll.u32 %v2303, 16
      %v2329 = vrot.slane %v2327, 2
      %v2330 = vor.u32 %v2326, %v2329
      %v2332 = vshrl.u32 %v2304, 16
      %v2334 = vrot.slane %v2332, 1
      %v2335 = vshll.u32 %v2304, 16
      %v2337 = vrot.slane %v2335, 2
      %v2338 = vor.u32 %v2334, %v2337
      %v2339 = vsel %vm2322, %v2330, %v2338
      %v2341 = vshrl.u32 %v2305, 16
      %v2343 = vrot.slane %v2341, 1
      %v2344 = vshll.u32 %v2305, 16
      %v2346 = vrot.slane %v2344, 2
      %v2347 = vor.u32 %v2343, %v2346
      %v2348 = vsel %vm2322, %v2338, %v2347
      %v2350 = vshrl.u32 %v2306, 16
      %v2352 = vrot.slane %v2350, 1
      %v2353 = vshll.u32 %v2306, 16
      %v2355 = vrot.slane %v2353, 2
      %v2356 = vor.u32 %v2352, %v2355
      %v2357 = vsel %vm2322, %v2347, %v2356
      %v2359 = vshrl.u32 %v2307, 16
      %v2361 = vrot.slane %v2359, 1
      %v2362 = vshll.u32 %v2307, 16
      %v2364 = vrot.slane %v2362, 2
      %v2365 = vor.u32 %v2361, %v2364
      %v2366 = vsel %vm2322, %v2356, %v2365
      %v2368 = vshrl.u32 %v2308, 16
      %v2370 = vrot.slane %v2368, 1
      %v2371 = vshll.u32 %v2308, 16
      %v2373 = vrot.slane %v2371, 2
      %v2374 = vor.u32 %v2370, %v2373
      %v2375 = vsel %vm2322, %v2365, %v2374
      %v2377 = vshrl.u32 %v2309, 16
      %v2379 = vrot.slane %v2377, 1
      %v2380 = vshll.u32 %v2309, 16
      %v2382 = vrot.slane %v2380, 2
      %v2383 = vor.u32 %v2379, %v2382
      %v2384 = vsel %vm2322, %v2374, %v2383
      %v2386 = vshrl.u32 %v2310, 16
      %v2388 = vrot.slane %v2386, 1
      %v2389 = vshll.u32 %v2310, 16
      %v2391 = vrot.slane %v2389, 2
      %v2392 = vor.u32 %v2388, %v2391
      %v2393 = vsel %vm2322, %v2383, %v2392
      %v2395 = vshrl.u32 %v2311, 16
      %v2397 = vrot.slane %v2395, 1
      %v2398 = vshll.u32 %v2311, 16
      %v2400 = vrot.slane %v2398, 2
      %v2401 = vor.u32 %v2397, %v2400
      %v2402 = vsel %vm2322, %v2392, %v2401
      %v2404 = vshrl.u32 %v2312, 16
      %v2406 = vrot.slane %v2404, 1
      %v2407 = vshll.u32 %v2312, 16
      %v2409 = vrot.slane %v2407, 2
      %v2410 = vor.u32 %v2406, %v2409
      %v2411 = vsel %vm2322, %v2401, %v2410
      %v2413 = vshrl.u32 %v2313, 16
      %v2415 = vrot.slane %v2413, 1
      %v2416 = vshll.u32 %v2313, 16
      %v2418 = vrot.slane %v2416, 2
      %v2419 = vor.u32 %v2415, %v2418
      %v2420 = vsel %vm2322, %v2410, %v2419
      %v2422 = vshrl.u32 %v2314, 16
      %v2424 = vrot.slane %v2422, 1
      %v2425 = vshll.u32 %v2314, 16
      %v2427 = vrot.slane %v2425, 2
      %v2428 = vor.u32 %v2424, %v2427
      %v2429 = vsel %vm2322, %v2419, %v2428
      %v2431 = vshrl.u32 %v2315, 16
      %v2433 = vrot.slane %v2431, 1
      %v2434 = vshll.u32 %v2315, 16
      %v2436 = vrot.slane %v2434, 2
      %v2437 = vor.u32 %v2433, %v2436
      %v2438 = vsel %vm2322, %v2428, %v2437
      %v2440 = vshrl.u32 %v2316, 16
      %v2442 = vrot.slane %v2440, 1
      %v2443 = vshll.u32 %v2316, 16
      %v2445 = vrot.slane %v2443, 2
      %v2446 = vor.u32 %v2442, %v2445
      %v2447 = vsel %vm2322, %v2437, %v2446
      %v2449 = vshrl.u32 %v2317, 16
      %v2451 = vrot.slane %v2449, 1
      %v2452 = vshll.u32 %v2317, 16
      %v2454 = vrot.slane %v2452, 2
      %v2455 = vor.u32 %v2451, %v2454
      %v2456 = vsel %vm2322, %v2446, %v2455
      %v2458 = vshrl.u32 %v2318, 16
      %v2460 = vrot.slane %v2458, 1
      %v2461 = vshll.u32 %v2318, 16
      %v2463 = vrot.slane %v2461, 2
      %v2464 = vor.u32 %v2460, %v2463
      %v2465 = vsel %vm2322, %v2455, %v2464
      %v2467 = vshrl.u32 %v2319, 16
      %v2469 = vrot.slane %v2467, 1
      %v2470 = vshll.u32 %v2319, 16
      %v2472 = vrot.slane %v2470, 2
      %v2473 = vor.u32 %v2469, %v2472
      %v2474 = vsel %vm2322, %v2464, %v2473
      %v2476 = vshrl.u32 %v2320, 16
      %v2478 = vrot.slane %v2476, 1
      %v2479 = vshll.u32 %v2320, 16
      %v2481 = vrot.slane %v2479, 2
      %v2482 = vor.u32 %v2478, %v2481
      %v2483 = vsel %vm2322, %v2473, %v2482
      %v2485 = vshrl.u32 %v2321, 16
      %v2487 = vrot.slane %v2485, 1
      %v2488 = vshll.u32 %v2321, 16
      %v2490 = vrot.slane %v2488, 2
      %v2491 = vor.u32 %v2487, %v2490
      %v2492 = vsel %vm2322, %v2482, %v2491
      %v2494 = vsel %vm272, %v2339, 0
      %v2497 = vsel %vm272, %v2348, 0
      %v2500 = vsel %vm272, %v2357, 0
      %v2503 = vsel %vm272, %v2366, 0
      %v2506 = vsel %vm272, %v2375, 0
      %v2509 = vsel %vm272, %v2384, 0
      %v2512 = vsel %vm272, %v2393, 0
      %v2515 = vsel %vm272, %v2402, 0
      %v2518 = vsel %vm272, %v2411, 0
      %v2521 = vsel %vm272, %v2420, 0
      %v2524 = vsel %vm272, %v2429, 0
      %v2527 = vsel %vm272, %v2438, 0
      %v2530 = vsel %vm272, %v2447, 0
      %v2533 = vsel %vm272, %v2456, 0
      %v2536 = vsel %vm272, %v2465, 0
      %v2539 = vsel %vm272, %v2474, 0
      %v2542 = vsel %vm272, %v2483, 0
      %v2545 = vsel %vm272, %v2492, 0
      %v2548 = vsel %vm327, %v2228, 0
      %2550 = vmatprep.subr.bf16.mxu0 0
      %2551 = vmatpush1.bf16.msra.mxu0 %v2548
      %2552 = vmatprep.subr.bf16.mxu0 0
      %2553 = vmatpush1.bf16.msra.mxu0 0
      %2554 = vmatprep.subr.bf16.mxu0 0
      %2555 = vmatpush1.bf16.msra.mxu0 0
      %2556 = vmatprep.subr.bf16.mxu0 0
      %2557 = vmatpush1.bf16.msra.mxu0 0
      %2558 = vmatprep.subr.bf16.mxu0 0
      %2559 = vmatpush1.bf16.msra.mxu0 0
      %2560 = vmatprep.subr.bf16.mxu0 0
      %2561 = vmatpush1.bf16.msra.mxu0 0
      %2562 = vmatprep.subr.bf16.mxu0 0
      %2563 = vmatpush1.bf16.msra.mxu0 0
      %2564 = vmatprep.subr.bf16.mxu0 0
      %2565 = vmatpush1.bf16.msra.mxu0 0
      %2566 = vmatprep.subr.bf16.mxu0 0
      %2567 = vmatpush1.bf16.msra.mxu0 0
      %2568 = vmatprep.subr.bf16.mxu0 0
      %2569 = vmatpush1.bf16.msra.mxu0 0
      %2570 = vmatprep.subr.bf16.mxu0 0
      %2571 = vmatpush1.bf16.msra.mxu0 0
      %2572 = vmatprep.subr.bf16.mxu0 0
      %2573 = vmatpush1.bf16.msra.mxu0 0
      %2574 = vmatprep.subr.bf16.mxu0 0
      %2575 = vmatpush1.bf16.msra.mxu0 0
      %2576 = vmatprep.subr.bf16.mxu0 0
      %2577 = vmatpush1.bf16.msra.mxu0 0
      %2578 = vmatprep.subr.bf16.mxu0 0
      %2579 = vmatpush1.bf16.msra.mxu0 0
      %2580 = vmatprep.subr.bf16.mxu0 0
      %2581 = vmatpush1.bf16.msra.mxu0 0
      %2582 = vmatprep.mubr.bf16.mxu0 0
      %2583 = vmatmul.mubr.bf16.gmra.mrb[0].mxu0 %v2494
      %v2584 = vpop.f32.mrb[0].mxu0
      %v2585 = vadd.f32 0.0, %v2584
      %v2586 = vpop.f32.mrb[0].mxu0
      %v2587 = vpop.f32.mrb[0].mxu0
      %v2588 = vadd.f32 0.0, %v2587
      %v2589 = vpop.f32.mrb[0].mxu0
      %2590 = vmatprep.mubr.bf16.mxu0 0
      %2591 = vmatmul.mubr.bf16.gmra.mrb[0].mxu0 %v2497
      %v2592 = vpop.f32.mrb[0].mxu0
      %v2593 = vadd.f32 0.0, %v2592
      %v2594 = vpop.f32.mrb[0].mxu0
      %v2595 = vpop.f32.mrb[0].mxu0
      %v2596 = vadd.f32 0.0, %v2595
      %v2597 = vpop.f32.mrb[0].mxu0
      %2598 = vmatprep.mubr.bf16.mxu0 0
      %2599 = vmatmul.mubr.bf16.gmra.mrb[0].mxu0 %v2500
      %v2600 = vpop.f32.mrb[0].mxu0
      %v2601 = vadd.f32 0.0, %v2600
      %v2602 = vpop.f32.mrb[0].mxu0
      %v2603 = vpop.f32.mrb[0].mxu0
      %v2604 = vadd.f32 0.0, %v2603
      %v2605 = vpop.f32.mrb[0].mxu0
      %2606 = vmatprep.mubr.bf16.mxu0 0
      %2607 = vmatmul.mubr.bf16.gmra.mrb[0].mxu0 %v2503
      %v2608 = vpop.f32.mrb[0].mxu0
      %v2609 = vadd.f32 0.0, %v2608
      %v2610 = vpop.f32.mrb[0].mxu0
      %v2611 = vpop.f32.mrb[0].mxu0
      %v2612 = vadd.f32 0.0, %v2611
      %v2613 = vpop.f32.mrb[0].mxu0
      %2614 = vmatprep.mubr.bf16.mxu0 0
      %2615 = vmatmul.mubr.bf16.gmra.mrb[0].mxu0 %v2506
      %v2616 = vpop.f32.mrb[0].mxu0
      %v2617 = vadd.f32 0.0, %v2616
      %v2618 = vpop.f32.mrb[0].mxu0
      %v2619 = vpop.f32.mrb[0].mxu0
      %v2620 = vadd.f32 0.0, %v2619
      %v2621 = vpop.f32.mrb[0].mxu0
      %2622 = vmatprep.mubr.bf16.mxu0 0
      %2623 = vmatmul.mubr.bf16.gmra.mrb[0].mxu0 %v2509
      %v2624 = vpop.f32.mrb[0].mxu0
      %v2625 = vadd.f32 0.0, %v2624
      %v2626 = vpop.f32.mrb[0].mxu0
      %v2627 = vpop.f32.mrb[0].mxu0
      %v2628 = vadd.f32 0.0, %v2627
      %v2629 = vpop.f32.mrb[0].mxu0
      %2630 = vmatprep.mubr.bf16.mxu0 0
      %2631 = vmatmul.mubr.bf16.gmra.mrb[0].mxu0 %v2512
      %v2632 = vpop.f32.mrb[0].mxu0
      %v2633 = vadd.f32 0.0, %v2632
      %v2634 = vpop.f32.mrb[0].mxu0
      %v2635 = vpop.f32.mrb[0].mxu0
      %v2636 = vadd.f32 0.0, %v2635
      %v2637 = vpop.f32.mrb[0].mxu0
      %2638 = vmatprep.mubr.bf16.mxu0 0
      %2639 = vmatmul.mubr.bf16.gmra.mrb[0].mxu0 %v2515
      %v2640 = vpop.f32.mrb[0].mxu0
      %v2641 = vadd.f32 0.0, %v2640
      %v2642 = vpop.f32.mrb[0].mxu0
      %v2643 = vpop.f32.mrb[0].mxu0
      %v2644 = vadd.f32 0.0, %v2643
      %v2645 = vpop.f32.mrb[0].mxu0
      %2646 = vmatprep.mubr.bf16.mxu0 0
      %2647 = vmatmul.mubr.bf16.gmra.mrb[0].mxu0 %v2518
      %v2648 = vpop.f32.mrb[0].mxu0
      %v2649 = vadd.f32 0.0, %v2648
      %v2650 = vpop.f32.mrb[0].mxu0
      %v2651 = vpop.f32.mrb[0].mxu0
      %v2652 = vadd.f32 0.0, %v2651
      %v2653 = vpop.f32.mrb[0].mxu0
      %2654 = vmatprep.mubr.bf16.mxu0 0
      %2655 = vmatmul.mubr.bf16.gmra.mrb[0].mxu0 %v2521
      %v2656 = vpop.f32.mrb[0].mxu0
      %v2657 = vadd.f32 0.0, %v2656
      %v2658 = vpop.f32.mrb[0].mxu0
      %v2659 = vpop.f32.mrb[0].mxu0
      %v2660 = vadd.f32 0.0, %v2659
      %v2661 = vpop.f32.mrb[0].mxu0
      %2662 = vmatprep.mubr.bf16.mxu0 0
      %2663 = vmatmul.mubr.bf16.gmra.mrb[0].mxu0 %v2524
      %v2664 = vpop.f32.mrb[0].mxu0
      %v2665 = vadd.f32 0.0, %v2664
      %v2666 = vpop.f32.mrb[0].mxu0
      %v2667 = vpop.f32.mrb[0].mxu0
      %v2668 = vadd.f32 0.0, %v2667
      %v2669 = vpop.f32.mrb[0].mxu0
      %2670 = vmatprep.mubr.bf16.mxu0 0
      %2671 = vmatmul.mubr.bf16.gmra.mrb[0].mxu0 %v2527
      %v2672 = vpop.f32.mrb[0].mxu0
      %v2673 = vadd.f32 0.0, %v2672
      %v2674 = vpop.f32.mrb[0].mxu0
      %v2675 = vpop.f32.mrb[0].mxu0
      %v2676 = vadd.f32 0.0, %v2675
      %v2677 = vpop.f32.mrb[0].mxu0
      %2678 = vmatprep.mubr.bf16.mxu0 0
      %2679 = vmatmul.mubr.bf16.gmra.mrb[0].mxu0 %v2530
      %v2680 = vpop.f32.mrb[0].mxu0
      %v2681 = vadd.f32 0.0, %v2680
      %v2682 = vpop.f32.mrb[0].mxu0
      %v2683 = vpop.f32.mrb[0].mxu0
      %v2684 = vadd.f32 0.0, %v2683
      %v2685 = vpop.f32.mrb[0].mxu0
      %2686 = vmatprep.mubr.bf16.mxu0 0
      %2687 = vmatmul.mubr.bf16.gmra.mrb[0].mxu0 %v2533
      %v2688 = vpop.f32.mrb[0].mxu0
      %v2689 = vadd.f32 0.0, %v2688
      %v2690 = vpop.f32.mrb[0].mxu0
      %v2691 = vpop.f32.mrb[0].mxu0
      %v2692 = vadd.f32 0.0, %v2691
      %v2693 = vpop.f32.mrb[0].mxu0
      %2694 = vmatprep.mubr.bf16.mxu0 0
      %2695 = vmatmul.mubr.bf16.gmra.mrb[0].mxu0 %v2536
      %v2696 = vpop.f32.mrb[0].mxu0
      %v2697 = vadd.f32 0.0, %v2696
      %v2698 = vpop.f32.mrb[0].mxu0
      %v2699 = vpop.f32.mrb[0].mxu0
      %v2700 = vadd.f32 0.0, %v2699
      %v2701 = vpop.f32.mrb[0].mxu0
      %2702 = vmatprep.mubr.bf16.mxu0 0
      %2703 = vmatmul.mubr.bf16.gmra.mrb[0].mxu0 %v2539
      %v2704 = vpop.f32.mrb[0].mxu0
      %v2705 = vadd.f32 0.0, %v2704
      %v2706 = vpop.f32.mrb[0].mxu0
      %v2707 = vpop.f32.mrb[0].mxu0
      %v2708 = vadd.f32 0.0, %v2707
      %v2709 = vpop.f32.mrb[0].mxu0
      %2710 = vmatprep.mubr.bf16.mxu0 0
      %2711 = vmatmul.mubr.bf16.gmra.mrb[0].mxu0 %v2542
      %v2712 = vpop.f32.mrb[0].mxu0
      %v2713 = vadd.f32 0.0, %v2712
      %v2714 = vpop.f32.mrb[0].mxu0
      %v2715 = vpop.f32.mrb[0].mxu0
      %v2716 = vadd.f32 0.0, %v2715
      %v2717 = vpop.f32.mrb[0].mxu0
      %2718 = vmatprep.mubr.bf16.mxu0 0
      %2719 = vmatmul.mubr.bf16.gmra.mrb[0].mxu0 %v2545
      %v2720 = vpop.f32.mrb[0].mxu0
      %v2721 = vadd.f32 0.0, %v2720
      %v2722 = vpop.f32.mrb[0].mxu0
      %v2723 = vpop.f32.mrb[0].mxu0
      %v2724 = vadd.f32 0.0, %v2723
      %v2725 = vpop.f32.mrb[0].mxu0
      %2726 = vdwg.mxu0
      %v2727 = vld [vmem:[#allocation2] sm:$0xff]
      %v2728 = vld [vmem:[#allocation2 + $0x8] sm:$0xff]
      %v2729 = vld [vmem:[#allocation2 + $0x10] sm:$0xff]
      %v2730 = vld [vmem:[#allocation2 + $0x18] sm:$0xff]
      %v2731 = vld [vmem:[#allocation2 + $0x20] sm:$0xff]
      %v2732 = vld [vmem:[#allocation2 + $0x28] sm:$0xff]
      %v2733 = vld [vmem:[#allocation2 + $0x30] sm:$0xff]
      %v2734 = vld [vmem:[#allocation2 + $0x38] sm:$0xff]
      %v2735 = vld [vmem:[#allocation2 + $0x40] sm:$0xff]
      %v2736 = vld [vmem:[#allocation2 + $0x48] sm:$0xff]
      %v2737 = vld [vmem:[#allocation2 + $0x50] sm:$0xff]
      %v2738 = vld [vmem:[#allocation2 + $0x58] sm:$0xff]
      %v2739 = vld [vmem:[#allocation2 + $0x60] sm:$0xff]
      %v2740 = vld [vmem:[#allocation2 + $0x68] sm:$0xff]
      %v2741 = vld [vmem:[#allocation2 + $0x70] sm:$0xff]
      %v2742 = vld [vmem:[#allocation2 + $0x78] sm:$0xff]
      %v2743 = vld [vmem:[#allocation2 + $0x80] sm:$0xff]
      %v2744 = vld [vmem:[#allocation2 + $0x88] sm:$0xff]
      %v2745 = vld [vmem:[#allocation2 + $0x90] sm:$0xff]
      %v2746 = vld [vmem:[#allocation2 + $0x98] sm:$0xff]
      %v2747 = vld [vmem:[#allocation2 + $0xa0] sm:$0xff]
      %v2748 = vld [vmem:[#allocation2 + $0xa8] sm:$0xff]
      %v2749 = vld [vmem:[#allocation2 + $0xb0] sm:$0xff]
      %v2750 = vld [vmem:[#allocation2 + $0xb8] sm:$0xff]
      %v2751 = vld [vmem:[#allocation2 + $0xc0] sm:$0xff]
      %v2752 = vld [vmem:[#allocation2 + $0xc8] sm:$0xff]
      %v2753 = vld [vmem:[#allocation2 + $0xd0] sm:$0xff]
      %v2754 = vld [vmem:[#allocation2 + $0xd8] sm:$0xff]
      %v2755 = vld [vmem:[#allocation2 + $0xe0] sm:$0xff]
      %v2756 = vld [vmem:[#allocation2 + $0xe8] sm:$0xff]
      %v2757 = vld [vmem:[#allocation2 + $0xf0] sm:$0xff]
      %v2758 = vld [vmem:[#allocation2 + $0xf8] sm:$0xff]
      %v2759 = vld [vmem:[#allocation2 + $0x100] sm:$0xff]
      %v2760 = vld [vmem:[#allocation2 + $0x108] sm:$0xff]
      %v2761 = vld [vmem:[#allocation2 + $0x110] sm:$0xff]
      %v2762 = vld [vmem:[#allocation2 + $0x118] sm:$0xff]
      %v2763 = vadd.f32 %v2727, %v2585
      %v2764 = vadd.f32 %v2728, %v2588
      %v2765 = vadd.f32 %v2729, %v2593
      %v2766 = vadd.f32 %v2730, %v2596
      %v2767 = vadd.f32 %v2731, %v2601
      %v2768 = vadd.f32 %v2732, %v2604
      %v2769 = vadd.f32 %v2733, %v2609
      %v2770 = vadd.f32 %v2734, %v2612
      %v2771 = vadd.f32 %v2735, %v2617
      %v2772 = vadd.f32 %v2736, %v2620
      %v2773 = vadd.f32 %v2737, %v2625
      %v2774 = vadd.f32 %v2738, %v2628
      %v2775 = vadd.f32 %v2739, %v2633
      %v2776 = vadd.f32 %v2740, %v2636
      %v2777 = vadd.f32 %v2741, %v2641
      %v2778 = vadd.f32 %v2742, %v2644
      %v2779 = vadd.f32 %v2743, %v2649
      %v2780 = vadd.f32 %v2744, %v2652
      %v2781 = vadd.f32 %v2745, %v2657
      %v2782 = vadd.f32 %v2746, %v2660
      %v2783 = vadd.f32 %v2747, %v2665
      %v2784 = vadd.f32 %v2748, %v2668
      %v2785 = vadd.f32 %v2749, %v2673
      %v2786 = vadd.f32 %v2750, %v2676
      %v2787 = vadd.f32 %v2751, %v2681
      %v2788 = vadd.f32 %v2752, %v2684
      %v2789 = vadd.f32 %v2753, %v2689
      %v2790 = vadd.f32 %v2754, %v2692
      %v2791 = vadd.f32 %v2755, %v2697
      %v2792 = vadd.f32 %v2756, %v2700
      %v2793 = vadd.f32 %v2757, %v2705
      %v2794 = vadd.f32 %v2758, %v2708
      %v2795 = vadd.f32 %v2759, %v2713
      %v2796 = vadd.f32 %v2760, %v2716
      %v2797 = vadd.f32 %v2761, %v2721
      %v2798 = vadd.f32 %v2762, %v2724
      %2799 = vst [vmem:[#allocation2] sm:$0xff] %v2763
      %2800 = vst [vmem:[#allocation2 + $0x8] sm:$0xff] %v2764
      %2801 = vst [vmem:[#allocation2 + $0x10] sm:$0xff] %v2765
      %2802 = vst [vmem:[#allocation2 + $0x18] sm:$0xff] %v2766
      %2803 = vst [vmem:[#allocation2 + $0x20] sm:$0xff] %v2767
      %2804 = vst [vmem:[#allocation2 + $0x28] sm:$0xff] %v2768
      %2805 = vst [vmem:[#allocation2 + $0x30] sm:$0xff] %v2769
      %2806 = vst [vmem:[#allocation2 + $0x38] sm:$0xff] %v2770
      %2807 = vst [vmem:[#allocation2 + $0x40] sm:$0xff] %v2771
      %2808 = vst [vmem:[#allocation2 + $0x48] sm:$0xff] %v2772
      %2809 = vst [vmem:[#allocation2 + $0x50] sm:$0xff] %v2773
      %2810 = vst [vmem:[#allocation2 + $0x58] sm:$0xff] %v2774
      %2811 = vst [vmem:[#allocation2 + $0x60] sm:$0xff] %v2775
      %2812 = vst [vmem:[#allocation2 + $0x68] sm:$0xff] %v2776
      %2813 = vst [vmem:[#allocation2 + $0x70] sm:$0xff] %v2777
      %2814 = vst [vmem:[#allocation2 + $0x78] sm:$0xff] %v2778
      %2815 = vst [vmem:[#allocation2 + $0x80] sm:$0xff] %v2779
      %2816 = vst [vmem:[#allocation2 + $0x88] sm:$0xff] %v2780
      %2817 = vst [vmem:[#allocation2 + $0x90] sm:$0xff] %v2781
      %2818 = vst [vmem:[#allocation2 + $0x98] sm:$0xff] %v2782
      %2819 = vst [vmem:[#allocation2 + $0xa0] sm:$0xff] %v2783
      %2820 = vst [vmem:[#allocation2 + $0xa8] sm:$0xff] %v2784
      %2821 = vst [vmem:[#allocation2 + $0xb0] sm:$0xff] %v2785
      %2822 = vst [vmem:[#allocation2 + $0xb8] sm:$0xff] %v2786
      %2823 = vst [vmem:[#allocation2 + $0xc0] sm:$0xff] %v2787
      %2824 = vst [vmem:[#allocation2 + $0xc8] sm:$0xff] %v2788
      %2825 = vst [vmem:[#allocation2 + $0xd0] sm:$0xff] %v2789
      %2826 = vst [vmem:[#allocation2 + $0xd8] sm:$0xff] %v2790
      %2827 = vst [vmem:[#allocation2 + $0xe0] sm:$0xff] %v2791
      %2828 = vst [vmem:[#allocation2 + $0xe8] sm:$0xff] %v2792
      %2829 = vst [vmem:[#allocation2 + $0xf0] sm:$0xff] %v2793
      %2830 = vst [vmem:[#allocation2 + $0xf8] sm:$0xff] %v2794
      %2831 = vst [vmem:[#allocation2 + $0x100] sm:$0xff] %v2795
      %2832 = vst [vmem:[#allocation2 + $0x108] sm:$0xff] %v2796
      %2833 = vst [vmem:[#allocation2 + $0x110] sm:$0xff] %v2797
      %2834 = vst [vmem:[#allocation2 + $0x118] sm:$0xff] %v2798
      %v2835 = vld [vmem:[%s138 + $0x8] sm:$0xc]
      %v2836 = vld [vmem:[%s138 + $0xc] sm:$0xf]
      %v2837 = vld [vmem:[%s138 + $0x10] sm:$0xf]
      %v2838 = vld [vmem:[%s138 + $0x14] sm:$0xf]
      %v2839 = vld [vmem:[%s138 + $0x18] sm:$0xf]
      %v2840 = vld [vmem:[%s138 + $0x1c] sm:$0xf]
      %v2841 = vld [vmem:[%s138 + $0x20] sm:$0xf]
      %v2842 = vld [vmem:[%s138 + $0x24] sm:$0xf]
      %v2843 = vld [vmem:[%s138 + $0x28] sm:$0xf]
      %v2844 = vld [vmem:[%s138 + $0x2c] sm:$0xf]
      %v2845 = vld [vmem:[%s138 + $0x30] sm:$0xf]
      %v2846 = vld [vmem:[%s138 + $0x34] sm:$0xf]
      %v2847 = vld [vmem:[%s138 + $0x38] sm:$0xf]
      %v2848 = vld [vmem:[%s138 + $0x3c] sm:$0xf]
      %v2849 = vld [vmem:[%s138 + $0x40] sm:$0xf]
      %v2850 = vld [vmem:[%s138 + $0x44] sm:$0xf]
      %v2851 = vld [vmem:[%s138 + $0x48] sm:$0xf]
      %v2852 = vld [vmem:[%s138 + $0x4c] sm:$0xf]
      %v2853 = vld [vmem:[%s138 + $0x50] sm:$0xf]
      %v2854 = vld [vmem:[%s138 + $0x54] sm:$0xf]
      %v2855 = vld [vmem:[%s138 + $0x58] sm:$0xf]
      %v2856 = vld [vmem:[%s138 + $0x5c] sm:$0xf]
      %v2857 = vld [vmem:[%s138 + $0x60] sm:$0xf]
      %v2858 = vld [vmem:[%s138 + $0x64] sm:$0xf]
      %v2859 = vld [vmem:[%s138 + $0x68] sm:$0xf]
      %v2860 = vld [vmem:[%s138 + $0x6c] sm:$0xf]
      %v2861 = vld [vmem:[%s138 + $0x70] sm:$0xf]
      %v2862 = vld [vmem:[%s138 + $0x74] sm:$0xf]
      %v2863 = vld [vmem:[%s138 + $0x78] sm:$0xf]
      %v2864 = vld [vmem:[%s138 + $0x7c] sm:$0xf]
      %v2865 = vld [vmem:[%s138 + $0x80] sm:$0xf]
      %v2866 = vld [vmem:[%s138 + $0x84] sm:$0xf]
      %v2867 = vld [vmem:[%s138 + $0x88] sm:$0xf]
      %v2868 = vld [vmem:[%s138 + $0x8c] sm:$0xf]
      %v2869 = vld [vmem:[%s138 + $0x90] sm:$0xf]
      %v2870 = vld [vmem:[%s138 + $0x94] sm:$0xf]
      %v2871 = vld [vmem:[%s138 + $0x98] sm:$0x3]
      %s2872 = scalar_lea.vmem %s1, 10
      %v2873 = vld [vmem:[%s2872] sm:$0x3]
      %v2911 = vunpack.c.l.b16 %v2835
      %v2912 = vunpack.c.l.b16 %v2836
      %v2913 = vunpack.c.l.b16 %v2837
      %v2914 = vunpack.c.l.b16 %v2838
      %v2915 = vunpack.c.l.b16 %v2839
      %v2916 = vunpack.c.l.b16 %v2840
      %v2917 = vunpack.c.l.b16 %v2841
      %v2918 = vunpack.c.l.b16 %v2842
      %v2919 = vunpack.c.l.b16 %v2843
      %v2920 = vunpack.c.l.b16 %v2844
      %v2921 = vunpack.c.l.b16 %v2845
      %v2922 = vunpack.c.l.b16 %v2846
      %v2923 = vunpack.c.l.b16 %v2847
      %v2924 = vunpack.c.l.b16 %v2848
      %v2925 = vunpack.c.l.b16 %v2849
      %v2926 = vunpack.c.l.b16 %v2850
      %v2927 = vunpack.c.l.b16 %v2851
      %v2928 = vunpack.c.l.b16 %v2852
      %v2929 = vunpack.c.l.b16 %v2853
      %v2930 = vunpack.c.l.b16 %v2854
      %v2931 = vunpack.c.l.b16 %v2855
      %v2932 = vunpack.c.l.b16 %v2856
      %v2933 = vunpack.c.l.b16 %v2857
      %v2934 = vunpack.c.l.b16 %v2858
      %v2935 = vunpack.c.l.b16 %v2859
      %v2936 = vunpack.c.l.b16 %v2860
      %v2937 = vunpack.c.l.b16 %v2861
      %v2938 = vunpack.c.l.b16 %v2862
      %v2939 = vunpack.c.l.b16 %v2863
      %v2940 = vunpack.c.l.b16 %v2864
      %v2941 = vunpack.c.l.b16 %v2865
      %v2942 = vunpack.c.l.b16 %v2866
      %v2943 = vunpack.c.l.b16 %v2867
      %v2944 = vunpack.c.l.b16 %v2868
      %v2945 = vunpack.c.l.b16 %v2869
      %v2946 = vunpack.c.l.b16 %v2870
      %v2947 = vunpack.c.l.b16 %v2871
      %v2948 = vpack.c.b16 %v2912, %v2911
      %v2949 = vpack.c.b16 %v2914, %v2913
      %v2950 = vpack.c.b16 %v2916, %v2915
      %v2951 = vpack.c.b16 %v2918, %v2917
      %v2952 = vpack.c.b16 %v2920, %v2919
      %v2953 = vpack.c.b16 %v2922, %v2921
      %v2954 = vpack.c.b16 %v2924, %v2923
      %v2955 = vpack.c.b16 %v2926, %v2925
      %v2956 = vpack.c.b16 %v2928, %v2927
      %v2957 = vpack.c.b16 %v2930, %v2929
      %v2958 = vpack.c.b16 %v2932, %v2931
      %v2959 = vpack.c.b16 %v2934, %v2933
      %v2960 = vpack.c.b16 %v2936, %v2935
      %v2961 = vpack.c.b16 %v2938, %v2937
      %v2962 = vpack.c.b16 %v2940, %v2939
      %v2963 = vpack.c.b16 %v2942, %v2941
      %v2964 = vpack.c.b16 %v2944, %v2943
      %v2965 = vpack.c.b16 %v2946, %v2945
      %v2966 = vpack.c.b16 %v2947, %v2947
      %vm2967 = vcmask 1045504
      %v2968 = vrot.slane %v2948, 2
      %v2969 = vrot.slane %v2949, 2
      %v2970 = vsel %vm2967, %v2968, %v2969
      %v2971 = vrot.slane %v2950, 2
      %v2972 = vsel %vm2967, %v2969, %v2971
      %v2973 = vrot.slane %v2951, 2
      %v2974 = vsel %vm2967, %v2971, %v2973
      %v2975 = vrot.slane %v2952, 2
      %v2976 = vsel %vm2967, %v2973, %v2975
      %v2977 = vrot.slane %v2953, 2
      %v2978 = vsel %vm2967, %v2975, %v2977
      %v2979 = vrot.slane %v2954, 2
      %v2980 = vsel %vm2967, %v2977, %v2979
      %v2981 = vrot.slane %v2955, 2
      %v2982 = vsel %vm2967, %v2979, %v2981
      %v2983 = vrot.slane %v2956, 2
      %v2984 = vsel %vm2967, %v2981, %v2983
      %v2985 = vrot.slane %v2957, 2
      %v2986 = vsel %vm2967, %v2983, %v2985
      %v2987 = vrot.slane %v2958, 2
      %v2988 = vsel %vm2967, %v2985, %v2987
      %v2989 = vrot.slane %v2959, 2
      %v2990 = vsel %vm2967, %v2987, %v2989
      %v2991 = vrot.slane %v2960, 2
      %v2992 = vsel %vm2967, %v2989, %v2991
      %v2993 = vrot.slane %v2961, 2
      %v2994 = vsel %vm2967, %v2991, %v2993
      %v2995 = vrot.slane %v2962, 2
      %v2996 = vsel %vm2967, %v2993, %v2995
      %v2997 = vrot.slane %v2963, 2
      %v2998 = vsel %vm2967, %v2995, %v2997
      %v2999 = vrot.slane %v2964, 2
      %v3000 = vsel %vm2967, %v2997, %v2999
      %v3001 = vrot.slane %v2965, 2
      %v3002 = vsel %vm2967, %v2999, %v3001
      %v3003 = vrot.slane %v2966, 2
      %v3004 = vsel %vm2967, %v3001, %v3003
      %v3006 = vsel %vm272, %v2970, 0
      %v3009 = vsel %vm272, %v2972, 0
      %v3012 = vsel %vm272, %v2974, 0
      %v3015 = vsel %vm272, %v2976, 0
      %v3018 = vsel %vm272, %v2978, 0
      %v3021 = vsel %vm272, %v2980, 0
      %v3024 = vsel %vm272, %v2982, 0
      %v3027 = vsel %vm272, %v2984, 0
      %v3030 = vsel %vm272, %v2986, 0
      %v3033 = vsel %vm272, %v2988, 0
      %v3036 = vsel %vm272, %v2990, 0
      %v3039 = vsel %vm272, %v2992, 0
      %v3042 = vsel %vm272, %v2994, 0
      %v3045 = vsel %vm272, %v2996, 0
      %v3048 = vsel %vm272, %v2998, 0
      %v3051 = vsel %vm272, %v3000, 0
      %v3054 = vsel %vm272, %v3002, 0
      %v3057 = vsel %vm272, %v3004, 0
      %v3060 = vsel %vm327, %v2873, 0
      %3062 = vmatprep.subr.bf16.mxu0 0
      %3063 = vmatpush1.bf16.msra.mxu0 %v3060
      %3064 = vmatprep.subr.bf16.mxu0 0
      %3065 = vmatpush1.bf16.msra.mxu0 0
      %3066 = vmatprep.subr.bf16.mxu0 0
      %3067 = vmatpush1.bf16.msra.mxu0 0
      %3068 = vmatprep.subr.bf16.mxu0 0
      %3069 = vmatpush1.bf16.msra.mxu0 0
      %3070 = vmatprep.subr.bf16.mxu0 0
      %3071 = vmatpush1.bf16.msra.mxu0 0
      %3072 = vmatprep.subr.bf16.mxu0 0
      %3073 = vmatpush1.bf16.msra.mxu0 0
      %3074 = vmatprep.subr.bf16.mxu0 0
      %3075 = vmatpush1.bf16.msra.mxu0 0
      %3076 = vmatprep.subr.bf16.mxu0 0
      %3077 = vmatpush1.bf16.msra.mxu0 0
      %3078 = vmatprep.subr.bf16.mxu0 0
      %3079 = vmatpush1.bf16.msra.mxu0 0
      %3080 = vmatprep.subr.bf16.mxu0 0
      %3081 = vmatpush1.bf16.msra.mxu0 0
      %3082 = vmatprep.subr.bf16.mxu0 0
      %3083 = vmatpush1.bf16.msra.mxu0 0
      %3084 = vmatprep.subr.bf16.mxu0 0
      %3085 = vmatpush1.bf16.msra.mxu0 0
      %3086 = vmatprep.subr.bf16.mxu0 0
      %3087 = vmatpush1.bf16.msra.mxu0 0
      %3088 = vmatprep.subr.bf16.mxu0 0
      %3089 = vmatpush1.bf16.msra.mxu0 0
      %3090 = vmatprep.subr.bf16.mxu0 0
      %3091 = vmatpush1.bf16.msra.mxu0 0
      %3092 = vmatprep.subr.bf16.mxu0 0
      %3093 = vmatpush1.bf16.msra.mxu0 0
      %3094 = vmatprep.mubr.bf16.mxu0 0
      %3095 = vmatmul.mubr.bf16.gmra.mrb[0].mxu0 %v3006
      %v3096 = vpop.f32.mrb[0].mxu0
      %v3097 = vadd.f32 0.0, %v3096
      %v3098 = vpop.f32.mrb[0].mxu0
      %v3099 = vpop.f32.mrb[0].mxu0
      %v3100 = vadd.f32 0.0, %v3099
      %v3101 = vpop.f32.mrb[0].mxu0
      %3102 = vmatprep.mubr.bf16.mxu0 0
      %3103 = vmatmul.mubr.bf16.gmra.mrb[0].mxu0 %v3009
      %v3104 = vpop.f32.mrb[0].mxu0
      %v3105 = vadd.f32 0.0, %v3104
      %v3106 = vpop.f32.mrb[0].mxu0
      %v3107 = vpop.f32.mrb[0].mxu0
      %v3108 = vadd.f32 0.0, %v3107
      %v3109 = vpop.f32.mrb[0].mxu0
      %3110 = vmatprep.mubr.bf16.mxu0 0
      %3111 = vmatmul.mubr.bf16.gmra.mrb[0].mxu0 %v3012
      %v3112 = vpop.f32.mrb[0].mxu0
      %v3113 = vadd.f32 0.0, %v3112
      %v3114 = vpop.f32.mrb[0].mxu0
      %v3115 = vpop.f32.mrb[0].mxu0
      %v3116 = vadd.f32 0.0, %v3115
      %v3117 = vpop.f32.mrb[0].mxu0
      %3118 = vmatprep.mubr.bf16.mxu0 0
      %3119 = vmatmul.mubr.bf16.gmra.mrb[0].mxu0 %v3015
      %v3120 = vpop.f32.mrb[0].mxu0
      %v3121 = vadd.f32 0.0, %v3120
      %v3122 = vpop.f32.mrb[0].mxu0
      %v3123 = vpop.f32.mrb[0].mxu0
      %v3124 = vadd.f32 0.0, %v3123
      %v3125 = vpop.f32.mrb[0].mxu0
      %3126 = vmatprep.mubr.bf16.mxu0 0
      %3127 = vmatmul.mubr.bf16.gmra.mrb[0].mxu0 %v3018
      %v3128 = vpop.f32.mrb[0].mxu0
      %v3129 = vadd.f32 0.0, %v3128
      %v3130 = vpop.f32.mrb[0].mxu0
      %v3131 = vpop.f32.mrb[0].mxu0
      %v3132 = vadd.f32 0.0, %v3131
      %v3133 = vpop.f32.mrb[0].mxu0
      %3134 = vmatprep.mubr.bf16.mxu0 0
      %3135 = vmatmul.mubr.bf16.gmra.mrb[0].mxu0 %v3021
      %v3136 = vpop.f32.mrb[0].mxu0
      %v3137 = vadd.f32 0.0, %v3136
      %v3138 = vpop.f32.mrb[0].mxu0
      %v3139 = vpop.f32.mrb[0].mxu0
      %v3140 = vadd.f32 0.0, %v3139
      %v3141 = vpop.f32.mrb[0].mxu0
      %3142 = vmatprep.mubr.bf16.mxu0 0
      %3143 = vmatmul.mubr.bf16.gmra.mrb[0].mxu0 %v3024
      %v3144 = vpop.f32.mrb[0].mxu0
      %v3145 = vadd.f32 0.0, %v3144
      %v3146 = vpop.f32.mrb[0].mxu0
      %v3147 = vpop.f32.mrb[0].mxu0
      %v3148 = vadd.f32 0.0, %v3147
      %v3149 = vpop.f32.mrb[0].mxu0
      %3150 = vmatprep.mubr.bf16.mxu0 0
      %3151 = vmatmul.mubr.bf16.gmra.mrb[0].mxu0 %v3027
      %v3152 = vpop.f32.mrb[0].mxu0
      %v3153 = vadd.f32 0.0, %v3152
      %v3154 = vpop.f32.mrb[0].mxu0
      %v3155 = vpop.f32.mrb[0].mxu0
      %v3156 = vadd.f32 0.0, %v3155
      %v3157 = vpop.f32.mrb[0].mxu0
      %3158 = vmatprep.mubr.bf16.mxu0 0
      %3159 = vmatmul.mubr.bf16.gmra.mrb[0].mxu0 %v3030
      %v3160 = vpop.f32.mrb[0].mxu0
      %v3161 = vadd.f32 0.0, %v3160
      %v3162 = vpop.f32.mrb[0].mxu0
      %v3163 = vpop.f32.mrb[0].mxu0
      %v3164 = vadd.f32 0.0, %v3163
      %v3165 = vpop.f32.mrb[0].mxu0
      %3166 = vmatprep.mubr.bf16.mxu0 0
      %3167 = vmatmul.mubr.bf16.gmra.mrb[0].mxu0 %v3033
      %v3168 = vpop.f32.mrb[0].mxu0
      %v3169 = vadd.f32 0.0, %v3168
      %v3170 = vpop.f32.mrb[0].mxu0
      %v3171 = vpop.f32.mrb[0].mxu0
      %v3172 = vadd.f32 0.0, %v3171
      %v3173 = vpop.f32.mrb[0].mxu0
      %3174 = vmatprep.mubr.bf16.mxu0 0
      %3175 = vmatmul.mubr.bf16.gmra.mrb[0].mxu0 %v3036
      %v3176 = vpop.f32.mrb[0].mxu0
      %v3177 = vadd.f32 0.0, %v3176
      %v3178 = vpop.f32.mrb[0].mxu0
      %v3179 = vpop.f32.mrb[0].mxu0
      %v3180 = vadd.f32 0.0, %v3179
      %v3181 = vpop.f32.mrb[0].mxu0
      %3182 = vmatprep.mubr.bf16.mxu0 0
      %3183 = vmatmul.mubr.bf16.gmra.mrb[0].mxu0 %v3039
      %v3184 = vpop.f32.mrb[0].mxu0
      %v3185 = vadd.f32 0.0, %v3184
      %v3186 = vpop.f32.mrb[0].mxu0
      %v3187 = vpop.f32.mrb[0].mxu0
      %v3188 = vadd.f32 0.0, %v3187
      %v3189 = vpop.f32.mrb[0].mxu0
      %3190 = vmatprep.mubr.bf16.mxu0 0
      %3191 = vmatmul.mubr.bf16.gmra.mrb[0].mxu0 %v3042
      %v3192 = vpop.f32.mrb[0].mxu0
      %v3193 = vadd.f32 0.0, %v3192
      %v3194 = vpop.f32.mrb[0].mxu0
      %v3195 = vpop.f32.mrb[0].mxu0
      %v3196 = vadd.f32 0.0, %v3195
      %v3197 = vpop.f32.mrb[0].mxu0
      %3198 = vmatprep.mubr.bf16.mxu0 0
      %3199 = vmatmul.mubr.bf16.gmra.mrb[0].mxu0 %v3045
      %v3200 = vpop.f32.mrb[0].mxu0
      %v3201 = vadd.f32 0.0, %v3200
      %v3202 = vpop.f32.mrb[0].mxu0
      %v3203 = vpop.f32.mrb[0].mxu0
      %v3204 = vadd.f32 0.0, %v3203
      %v3205 = vpop.f32.mrb[0].mxu0
      %3206 = vmatprep.mubr.bf16.mxu0 0
      %3207 = vmatmul.mubr.bf16.gmra.mrb[0].mxu0 %v3048
      %v3208 = vpop.f32.mrb[0].mxu0
      %v3209 = vadd.f32 0.0, %v3208
      %v3210 = vpop.f32.mrb[0].mxu0
      %v3211 = vpop.f32.mrb[0].mxu0
      %v3212 = vadd.f32 0.0, %v3211
      %v3213 = vpop.f32.mrb[0].mxu0
      %3214 = vmatprep.mubr.bf16.mxu0 0
      %3215 = vmatmul.mubr.bf16.gmra.mrb[0].mxu0 %v3051
      %v3216 = vpop.f32.mrb[0].mxu0
      %v3217 = vadd.f32 0.0, %v3216
      %v3218 = vpop.f32.mrb[0].mxu0
      %v3219 = vpop.f32.mrb[0].mxu0
      %v3220 = vadd.f32 0.0, %v3219
      %v3221 = vpop.f32.mrb[0].mxu0
      %3222 = vmatprep.mubr.bf16.mxu0 0
      %3223 = vmatmul.mubr.bf16.gmra.mrb[0].mxu0 %v3054
      %v3224 = vpop.f32.mrb[0].mxu0
      %v3225 = vadd.f32 0.0, %v3224
      %v3226 = vpop.f32.mrb[0].mxu0
      %v3227 = vpop.f32.mrb[0].mxu0
      %v3228 = vadd.f32 0.0, %v3227
      %v3229 = vpop.f32.mrb[0].mxu0
      %3230 = vmatprep.mubr.bf16.mxu0 0
      %3231 = vmatmul.mubr.bf16.gmra.mrb[0].mxu0 %v3057
      %v3232 = vpop.f32.mrb[0].mxu0
      %v3233 = vadd.f32 0.0, %v3232
      %v3234 = vpop.f32.mrb[0].mxu0
      %v3235 = vpop.f32.mrb[0].mxu0
      %v3236 = vadd.f32 0.0, %v3235
      %v3237 = vpop.f32.mrb[0].mxu0
      %3238 = vdwg.mxu0
      %v3239 = vld [vmem:[#allocation2] sm:$0xff]
      %v3240 = vld [vmem:[#allocation2 + $0x8] sm:$0xff]
      %v3241 = vld [vmem:[#allocation2 + $0x10] sm:$0xff]
      %v3242 = vld [vmem:[#allocation2 + $0x18] sm:$0xff]
      %v3243 = vld [vmem:[#allocation2 + $0x20] sm:$0xff]
      %v3244 = vld [vmem:[#allocation2 + $0x28] sm:$0xff]
      %v3245 = vld [vmem:[#allocation2 + $0x30] sm:$0xff]
      %v3246 = vld [vmem:[#allocation2 + $0x38] sm:$0xff]
      %v3247 = vld [vmem:[#allocation2 + $0x40] sm:$0xff]
      %v3248 = vld [vmem:[#allocation2 + $0x48] sm:$0xff]
      %v3249 = vld [vmem:[#allocation2 + $0x50] sm:$0xff]
      %v3250 = vld [vmem:[#allocation2 + $0x58] sm:$0xff]
      %v3251 = vld [vmem:[#allocation2 + $0x60] sm:$0xff]
      %v3252 = vld [vmem:[#allocation2 + $0x68] sm:$0xff]
      %v3253 = vld [vmem:[#allocation2 + $0x70] sm:$0xff]
      %v3254 = vld [vmem:[#allocation2 + $0x78] sm:$0xff]
      %v3255 = vld [vmem:[#allocation2 + $0x80] sm:$0xff]
      %v3256 = vld [vmem:[#allocation2 + $0x88] sm:$0xff]
      %v3257 = vld [vmem:[#allocation2 + $0x90] sm:$0xff]
      %v3258 = vld [vmem:[#allocation2 + $0x98] sm:$0xff]
      %v3259 = vld [vmem:[#allocation2 + $0xa0] sm:$0xff]
      %v3260 = vld [vmem:[#allocation2 + $0xa8] sm:$0xff]
      %v3261 = vld [vmem:[#allocation2 + $0xb0] sm:$0xff]
      %v3262 = vld [vmem:[#allocation2 + $0xb8] sm:$0xff]
      %v3263 = vld [vmem:[#allocation2 + $0xc0] sm:$0xff]
      %v3264 = vld [vmem:[#allocation2 + $0xc8] sm:$0xff]
      %v3265 = vld [vmem:[#allocation2 + $0xd0] sm:$0xff]
      %v3266 = vld [vmem:[#allocation2 + $0xd8] sm:$0xff]
      %v3267 = vld [vmem:[#allocation2 + $0xe0] sm:$0xff]
      %v3268 = vld [vmem:[#allocation2 + $0xe8] sm:$0xff]
      %v3269 = vld [vmem:[#allocation2 + $0xf0] sm:$0xff]
      %v3270 = vld [vmem:[#allocation2 + $0xf8] sm:$0xff]
      %v3271 = vld [vmem:[#allocation2 + $0x100] sm:$0xff]
      %v3272 = vld [vmem:[#allocation2 + $0x108] sm:$0xff]
      %v3273 = vld [vmem:[#allocation2 + $0x110] sm:$0xff]
      %v3274 = vld [vmem:[#allocation2 + $0x118] sm:$0xff]
      %v3275 = vadd.f32 %v3239, %v3097
      %v3276 = vadd.f32 %v3240, %v3100
      %v3277 = vadd.f32 %v3241, %v3105
      %v3278 = vadd.f32 %v3242, %v3108
      %v3279 = vadd.f32 %v3243, %v3113
      %v3280 = vadd.f32 %v3244, %v3116
      %v3281 = vadd.f32 %v3245, %v3121
      %v3282 = vadd.f32 %v3246, %v3124
      %v3283 = vadd.f32 %v3247, %v3129
      %v3284 = vadd.f32 %v3248, %v3132
      %v3285 = vadd.f32 %v3249, %v3137
      %v3286 = vadd.f32 %v3250, %v3140
      %v3287 = vadd.f32 %v3251, %v3145
      %v3288 = vadd.f32 %v3252, %v3148
      %v3289 = vadd.f32 %v3253, %v3153
      %v3290 = vadd.f32 %v3254, %v3156
      %v3291 = vadd.f32 %v3255, %v3161
      %v3292 = vadd.f32 %v3256, %v3164
      %v3293 = vadd.f32 %v3257, %v3169
      %v3294 = vadd.f32 %v3258, %v3172
      %v3295 = vadd.f32 %v3259, %v3177
      %v3296 = vadd.f32 %v3260, %v3180
      %v3297 = vadd.f32 %v3261, %v3185
      %v3298 = vadd.f32 %v3262, %v3188
      %v3299 = vadd.f32 %v3263, %v3193
      %v3300 = vadd.f32 %v3264, %v3196
      %v3301 = vadd.f32 %v3265, %v3201
      %v3302 = vadd.f32 %v3266, %v3204
      %v3303 = vadd.f32 %v3267, %v3209
      %v3304 = vadd.f32 %v3268, %v3212
      %v3305 = vadd.f32 %v3269, %v3217
      %v3306 = vadd.f32 %v3270, %v3220
      %v3307 = vadd.f32 %v3271, %v3225
      %v3308 = vadd.f32 %v3272, %v3228
      %v3309 = vadd.f32 %v3273, %v3233
      %v3310 = vadd.f32 %v3274, %v3236
      %3311 = vst [vmem:[#allocation2] sm:$0xff] %v3275
      %3312 = vst [vmem:[#allocation2 + $0x8] sm:$0xff] %v3276
      %3313 = vst [vmem:[#allocation2 + $0x10] sm:$0xff] %v3277
      %3314 = vst [vmem:[#allocation2 + $0x18] sm:$0xff] %v3278
      %3315 = vst [vmem:[#allocation2 + $0x20] sm:$0xff] %v3279
      %3316 = vst [vmem:[#allocation2 + $0x28] sm:$0xff] %v3280
      %3317 = vst [vmem:[#allocation2 + $0x30] sm:$0xff] %v3281
      %3318 = vst [vmem:[#allocation2 + $0x38] sm:$0xff] %v3282
      %3319 = vst [vmem:[#allocation2 + $0x40] sm:$0xff] %v3283
      %3320 = vst [vmem:[#allocation2 + $0x48] sm:$0xff] %v3284
      %3321 = vst [vmem:[#allocation2 + $0x50] sm:$0xff] %v3285
      %3322 = vst [vmem:[#allocation2 + $0x58] sm:$0xff] %v3286
      %3323 = vst [vmem:[#allocation2 + $0x60] sm:$0xff] %v3287
      %3324 = vst [vmem:[#allocation2 + $0x68] sm:$0xff] %v3288
      %3325 = vst [vmem:[#allocation2 + $0x70] sm:$0xff] %v3289
      %3326 = vst [vmem:[#allocation2 + $0x78] sm:$0xff] %v3290
      %3327 = vst [vmem:[#allocation2 + $0x80] sm:$0xff] %v3291
      %3328 = vst [vmem:[#allocation2 + $0x88] sm:$0xff] %v3292
      %3329 = vst [vmem:[#allocation2 + $0x90] sm:$0xff] %v3293
      %3330 = vst [vmem:[#allocation2 + $0x98] sm:$0xff] %v3294
      %3331 = vst [vmem:[#allocation2 + $0xa0] sm:$0xff] %v3295
      %3332 = vst [vmem:[#allocation2 + $0xa8] sm:$0xff] %v3296
      %3333 = vst [vmem:[#allocation2 + $0xb0] sm:$0xff] %v3297
      %3334 = vst [vmem:[#allocation2 + $0xb8] sm:$0xff] %v3298
      %3335 = vst [vmem:[#allocation2 + $0xc0] sm:$0xff] %v3299
      %3336 = vst [vmem:[#allocation2 + $0xc8] sm:$0xff] %v3300
      %3337 = vst [vmem:[#allocation2 + $0xd0] sm:$0xff] %v3301
      %3338 = vst [vmem:[#allocation2 + $0xd8] sm:$0xff] %v3302
      %3339 = vst [vmem:[#allocation2 + $0xe0] sm:$0xff] %v3303
      %3340 = vst [vmem:[#allocation2 + $0xe8] sm:$0xff] %v3304
      %3341 = vst [vmem:[#allocation2 + $0xf0] sm:$0xff] %v3305
      %3342 = vst [vmem:[#allocation2 + $0xf8] sm:$0xff] %v3306
      %3343 = vst [vmem:[#allocation2 + $0x100] sm:$0xff] %v3307
      %3344 = vst [vmem:[#allocation2 + $0x108] sm:$0xff] %v3308
      %3345 = vst [vmem:[#allocation2 + $0x110] sm:$0xff] %v3309
      %3346 = vst [vmem:[#allocation2 + $0x118] sm:$0xff] %v3310
      %v3347 = vld [vmem:[%s138 + $0x10] sm:$0xc]
      %v3348 = vld [vmem:[%s138 + $0x14] sm:$0xf]
      %v3349 = vld [vmem:[%s138 + $0x18] sm:$0xf]
      %v3350 = vld [vmem:[%s138 + $0x1c] sm:$0xf]
      %v3351 = vld [vmem:[%s138 + $0x20] sm:$0xf]
      %v3352 = vld [vmem:[%s138 + $0x24] sm:$0xf]
      %v3353 = vld [vmem:[%s138 + $0x28] sm:$0xf]
      %v3354 = vld [vmem:[%s138 + $0x2c] sm:$0xf]
      %v3355 = vld [vmem:[%s138 + $0x30] sm:$0xf]
      %v3356 = vld [vmem:[%s138 + $0x34] sm:$0xf]
      %v3357 = vld [vmem:[%s138 + $0x38] sm:$0xf]
      %v3358 = vld [vmem:[%s138 + $0x3c] sm:$0xf]
      %v3359 = vld [vmem:[%s138 + $0x40] sm:$0xf]
      %v3360 = vld [vmem:[%s138 + $0x44] sm:$0xf]
      %v3361 = vld [vmem:[%s138 + $0x48] sm:$0xf]
      %v3362 = vld [vmem:[%s138 + $0x4c] sm:$0xf]
      %v3363 = vld [vmem:[%s138 + $0x50] sm:$0xf]
      %v3364 = vld [vmem:[%s138 + $0x54] sm:$0xf]
      %v3365 = vld [vmem:[%s138 + $0x58] sm:$0xf]
      %v3366 = vld [vmem:[%s138 + $0x5c] sm:$0xf]
      %v3367 = vld [vmem:[%s138 + $0x60] sm:$0xf]
      %v3368 = vld [vmem:[%s138 + $0x64] sm:$0xf]
      %v3369 = vld [vmem:[%s138 + $0x68] sm:$0xf]
      %v3370 = vld [vmem:[%s138 + $0x6c] sm:$0xf]
      %v3371 = vld [vmem:[%s138 + $0x70] sm:$0xf]
      %v3372 = vld [vmem:[%s138 + $0x74] sm:$0xf]
      %v3373 = vld [vmem:[%s138 + $0x78] sm:$0xf]
      %v3374 = vld [vmem:[%s138 + $0x7c] sm:$0xf]
      %v3375 = vld [vmem:[%s138 + $0x80] sm:$0xf]
      %v3376 = vld [vmem:[%s138 + $0x84] sm:$0xf]
      %v3377 = vld [vmem:[%s138 + $0x88] sm:$0xf]
      %v3378 = vld [vmem:[%s138 + $0x8c] sm:$0xf]
      %v3379 = vld [vmem:[%s138 + $0x90] sm:$0xf]
      %v3380 = vld [vmem:[%s138 + $0x94] sm:$0xf]
      %v3381 = vld [vmem:[%s138 + $0x98] sm:$0xf]
      %v3382 = vld [vmem:[%s138 + $0x9c] sm:$0xf]
      %v3383 = vld [vmem:[%s138 + $0xa0] sm:$0x3]
      %s3384 = scalar_lea.vmem %s1, 12
      %v3385 = vld [vmem:[%s3384] sm:$0x3]
      %v3423 = vunpack.c.l.b16 %v3347
      %v3424 = vunpack.c.l.b16 %v3348
      %v3425 = vunpack.c.l.b16 %v3349
      %v3426 = vunpack.c.l.b16 %v3350
      %v3427 = vunpack.c.l.b16 %v3351
      %v3428 = vunpack.c.l.b16 %v3352
      %v3429 = vunpack.c.l.b16 %v3353
      %v3430 = vunpack.c.l.b16 %v3354
      %v3431 = vunpack.c.l.b16 %v3355
      %v3432 = vunpack.c.l.b16 %v3356
      %v3433 = vunpack.c.l.b16 %v3357
      %v3434 = vunpack.c.l.b16 %v3358
      %v3435 = vunpack.c.l.b16 %v3359
      %v3436 = vunpack.c.l.b16 %v3360
      %v3437 = vunpack.c.l.b16 %v3361
      %v3438 = vunpack.c.l.b16 %v3362
      %v3439 = vunpack.c.l.b16 %v3363
      %v3440 = vunpack.c.l.b16 %v3364
      %v3441 = vunpack.c.l.b16 %v3365
      %v3442 = vunpack.c.l.b16 %v3366
      %v3443 = vunpack.c.l.b16 %v3367
      %v3444 = vunpack.c.l.b16 %v3368
      %v3445 = vunpack.c.l.b16 %v3369
      %v3446 = vunpack.c.l.b16 %v3370
      %v3447 = vunpack.c.l.b16 %v3371
      %v3448 = vunpack.c.l.b16 %v3372
      %v3449 = vunpack.c.l.b16 %v3373
      %v3450 = vunpack.c.l.b16 %v3374
      %v3451 = vunpack.c.l.b16 %v3375
      %v3452 = vunpack.c.l.b16 %v3376
      %v3453 = vunpack.c.l.b16 %v3377
      %v3454 = vunpack.c.l.b16 %v3378
      %v3455 = vunpack.c.l.b16 %v3379
      %v3456 = vunpack.c.l.b16 %v3380
      %v3457 = vunpack.c.l.b16 %v3381
      %v3458 = vunpack.c.l.b16 %v3382
      %v3459 = vunpack.c.l.b16 %v3383
      %v3460 = vpack.c.b16 %v3424, %v3423
      %v3461 = vpack.c.b16 %v3426, %v3425
      %v3462 = vpack.c.b16 %v3428, %v3427
      %v3463 = vpack.c.b16 %v3430, %v3429
      %v3464 = vpack.c.b16 %v3432, %v3431
      %v3465 = vpack.c.b16 %v3434, %v3433
      %v3466 = vpack.c.b16 %v3436, %v3435
      %v3467 = vpack.c.b16 %v3438, %v3437
      %v3468 = vpack.c.b16 %v3440, %v3439
      %v3469 = vpack.c.b16 %v3442, %v3441
      %v3470 = vpack.c.b16 %v3444, %v3443
      %v3471 = vpack.c.b16 %v3446, %v3445
      %v3472 = vpack.c.b16 %v3448, %v3447
      %v3473 = vpack.c.b16 %v3450, %v3449
      %v3474 = vpack.c.b16 %v3452, %v3451
      %v3475 = vpack.c.b16 %v3454, %v3453
      %v3476 = vpack.c.b16 %v3456, %v3455
      %v3477 = vpack.c.b16 %v3458, %v3457
      %v3478 = vpack.c.b16 %v3459, %v3459
      %v3479 = vrot.slane %v3460, 2
      %v3480 = vrot.slane %v3461, 2
      %v3481 = vsel %vm2967, %v3479, %v3480
      %v3482 = vrot.slane %v3462, 2
      %v3483 = vsel %vm2967, %v3480, %v3482
      %v3484 = vrot.slane %v3463, 2
      %v3485 = vsel %vm2967, %v3482, %v3484
      %v3486 = vrot.slane %v3464, 2
      %v3487 = vsel %vm2967, %v3484, %v3486
      %v3488 = vrot.slane %v3465, 2
      %v3489 = vsel %vm2967, %v3486, %v3488
      %v3490 = vrot.slane %v3466, 2
      %v3491 = vsel %vm2967, %v3488, %v3490
      %v3492 = vrot.slane %v3467, 2
      %v3493 = vsel %vm2967, %v3490, %v3492
      %v3494 = vrot.slane %v3468, 2
      %v3495 = vsel %vm2967, %v3492, %v3494
      %v3496 = vrot.slane %v3469, 2
      %v3497 = vsel %vm2967, %v3494, %v3496
      %v3498 = vrot.slane %v3470, 2
      %v3499 = vsel %vm2967, %v3496, %v3498
      %v3500 = vrot.slane %v3471, 2
      %v3501 = vsel %vm2967, %v3498, %v3500
      %v3502 = vrot.slane %v3472, 2
      %v3503 = vsel %vm2967, %v3500, %v3502
      %v3504 = vrot.slane %v3473, 2
      %v3505 = vsel %vm2967, %v3502, %v3504
      %v3506 = vrot.slane %v3474, 2
      %v3507 = vsel %vm2967, %v3504, %v3506
      %v3508 = vrot.slane %v3475, 2
      %v3509 = vsel %vm2967, %v3506, %v3508
      %v3510 = vrot.slane %v3476, 2
      %v3511 = vsel %vm2967, %v3508, %v3510
      %v3512 = vrot.slane %v3477, 2
      %v3513 = vsel %vm2967, %v3510, %v3512
      %v3514 = vrot.slane %v3478, 2
      %v3515 = vsel %vm2967, %v3512, %v3514
      %v3517 = vsel %vm272, %v3481, 0
      %v3520 = vsel %vm272, %v3483, 0
      %v3523 = vsel %vm272, %v3485, 0
      %v3526 = vsel %vm272, %v3487, 0
      %v3529 = vsel %vm272, %v3489, 0
      %v3532 = vsel %vm272, %v3491, 0
      %v3535 = vsel %vm272, %v3493, 0
      %v3538 = vsel %vm272, %v3495, 0
      %v3541 = vsel %vm272, %v3497, 0
      %v3544 = vsel %vm272, %v3499, 0
      %v3547 = vsel %vm272, %v3501, 0
      %v3550 = vsel %vm272, %v3503, 0
      %v3553 = vsel %vm272, %v3505, 0
      %v3556 = vsel %vm272, %v3507, 0
      %v3559 = vsel %vm272, %v3509, 0
      %v3562 = vsel %vm272, %v3511, 0
      %v3565 = vsel %vm272, %v3513, 0
      %v3568 = vsel %vm272, %v3515, 0
      %v3571 = vsel %vm327, %v3385, 0
      %3573 = vmatprep.subr.bf16.mxu0 0
      %3574 = vmatpush1.bf16.msra.mxu0 %v3571
      %3575 = vmatprep.subr.bf16.mxu0 0
      %3576 = vmatpush1.bf16.msra.mxu0 0
      %3577 = vmatprep.subr.bf16.mxu0 0
      %3578 = vmatpush1.bf16.msra.mxu0 0
      %3579 = vmatprep.subr.bf16.mxu0 0
      %3580 = vmatpush1.bf16.msra.mxu0 0
      %3581 = vmatprep.subr.bf16.mxu0 0
      %3582 = vmatpush1.bf16.msra.mxu0 0
      %3583 = vmatprep.subr.bf16.mxu0 0
      %3584 = vmatpush1.bf16.msra.mxu0 0
      %3585 = vmatprep.subr.bf16.mxu0 0
      %3586 = vmatpush1.bf16.msra.mxu0 0
      %3587 = vmatprep.subr.bf16.mxu0 0
      %3588 = vmatpush1.bf16.msra.mxu0 0
      %3589 = vmatprep.subr.bf16.mxu0 0
      %3590 = vmatpush1.bf16.msra.mxu0 0
      %3591 = vmatprep.subr.bf16.mxu0 0
      %3592 = vmatpush1.bf16.msra.mxu0 0
      %3593 = vmatprep.subr.bf16.mxu0 0
      %3594 = vmatpush1.bf16.msra.mxu0 0
      %3595 = vmatprep.subr.bf16.mxu0 0
      %3596 = vmatpush1.bf16.msra.mxu0 0
      %3597 = vmatprep.subr.bf16.mxu0 0
      %3598 = vmatpush1.bf16.msra.mxu0 0
      %3599 = vmatprep.subr.bf16.mxu0 0
      %3600 = vmatpush1.bf16.msra.mxu0 0
      %3601 = vmatprep.subr.bf16.mxu0 0
      %3602 = vmatpush1.bf16.msra.mxu0 0
      %3603 = vmatprep.subr.bf16.mxu0 0
      %3604 = vmatpush1.bf16.msra.mxu0 0
      %3605 = vmatprep.mubr.bf16.mxu0 0
      %3606 = vmatmul.mubr.bf16.gmra.mrb[0].mxu0 %v3517
      %v3607 = vpop.f32.mrb[0].mxu0
      %v3608 = vadd.f32 0.0, %v3607
      %v3609 = vpop.f32.mrb[0].mxu0
      %v3610 = vpop.f32.mrb[0].mxu0
      %v3611 = vadd.f32 0.0, %v3610
      %v3612 = vpop.f32.mrb[0].mxu0
      %3613 = vmatprep.mubr.bf16.mxu0 0
      %3614 = vmatmul.mubr.bf16.gmra.mrb[0].mxu0 %v3520
      %v3615 = vpop.f32.mrb[0].mxu0
      %v3616 = vadd.f32 0.0, %v3615
      %v3617 = vpop.f32.mrb[0].mxu0
      %v3618 = vpop.f32.mrb[0].mxu0
      %v3619 = vadd.f32 0.0, %v3618
      %v3620 = vpop.f32.mrb[0].mxu0
      %3621 = vmatprep.mubr.bf16.mxu0 0
      %3622 = vmatmul.mubr.bf16.gmra.mrb[0].mxu0 %v3523
      %v3623 = vpop.f32.mrb[0].mxu0
      %v3624 = vadd.f32 0.0, %v3623
      %v3625 = vpop.f32.mrb[0].mxu0
      %v3626 = vpop.f32.mrb[0].mxu0
      %v3627 = vadd.f32 0.0, %v3626
      %v3628 = vpop.f32.mrb[0].mxu0
      %3629 = vmatprep.mubr.bf16.mxu0 0
      %3630 = vmatmul.mubr.bf16.gmra.mrb[0].mxu0 %v3526
      %v3631 = vpop.f32.mrb[0].mxu0
      %v3632 = vadd.f32 0.0, %v3631
      %v3633 = vpop.f32.mrb[0].mxu0
      %v3634 = vpop.f32.mrb[0].mxu0
      %v3635 = vadd.f32 0.0, %v3634
      %v3636 = vpop.f32.mrb[0].mxu0
      %3637 = vmatprep.mubr.bf16.mxu0 0
      %3638 = vmatmul.mubr.bf16.gmra.mrb[0].mxu0 %v3529
      %v3639 = vpop.f32.mrb[0].mxu0
      %v3640 = vadd.f32 0.0, %v3639
      %v3641 = vpop.f32.mrb[0].mxu0
      %v3642 = vpop.f32.mrb[0].mxu0
      %v3643 = vadd.f32 0.0, %v3642
      %v3644 = vpop.f32.mrb[0].mxu0
      %3645 = vmatprep.mubr.bf16.mxu0 0
      %3646 = vmatmul.mubr.bf16.gmra.mrb[0].mxu0 %v3532
      %v3647 = vpop.f32.mrb[0].mxu0
      %v3648 = vadd.f32 0.0, %v3647
      %v3649 = vpop.f32.mrb[0].mxu0
      %v3650 = vpop.f32.mrb[0].mxu0
      %v3651 = vadd.f32 0.0, %v3650
      %v3652 = vpop.f32.mrb[0].mxu0
      %3653 = vmatprep.mubr.bf16.mxu0 0
      %3654 = vmatmul.mubr.bf16.gmra.mrb[0].mxu0 %v3535
      %v3655 = vpop.f32.mrb[0].mxu0
      %v3656 = vadd.f32 0.0, %v3655
      %v3657 = vpop.f32.mrb[0].mxu0
      %v3658 = vpop.f32.mrb[0].mxu0
      %v3659 = vadd.f32 0.0, %v3658
      %v3660 = vpop.f32.mrb[0].mxu0
      %3661 = vmatprep.mubr.bf16.mxu0 0
      %3662 = vmatmul.mubr.bf16.gmra.mrb[0].mxu0 %v3538
      %v3663 = vpop.f32.mrb[0].mxu0
      %v3664 = vadd.f32 0.0, %v3663
      %v3665 = vpop.f32.mrb[0].mxu0
      %v3666 = vpop.f32.mrb[0].mxu0
      %v3667 = vadd.f32 0.0, %v3666
      %v3668 = vpop.f32.mrb[0].mxu0
      %3669 = vmatprep.mubr.bf16.mxu0 0
      %3670 = vmatmul.mubr.bf16.gmra.mrb[0].mxu0 %v3541
      %v3671 = vpop.f32.mrb[0].mxu0
      %v3672 = vadd.f32 0.0, %v3671
      %v3673 = vpop.f32.mrb[0].mxu0
      %v3674 = vpop.f32.mrb[0].mxu0
      %v3675 = vadd.f32 0.0, %v3674
      %v3676 = vpop.f32.mrb[0].mxu0
      %3677 = vmatprep.mubr.bf16.mxu0 0
      %3678 = vmatmul.mubr.bf16.gmra.mrb[0].mxu0 %v3544
      %v3679 = vpop.f32.mrb[0].mxu0
      %v3680 = vadd.f32 0.0, %v3679
      %v3681 = vpop.f32.mrb[0].mxu0
      %v3682 = vpop.f32.mrb[0].mxu0
      %v3683 = vadd.f32 0.0, %v3682
      %v3684 = vpop.f32.mrb[0].mxu0
      %3685 = vmatprep.mubr.bf16.mxu0 0
      %3686 = vmatmul.mubr.bf16.gmra.mrb[0].mxu0 %v3547
      %v3687 = vpop.f32.mrb[0].mxu0
      %v3688 = vadd.f32 0.0, %v3687
      %v3689 = vpop.f32.mrb[0].mxu0
      %v3690 = vpop.f32.mrb[0].mxu0
      %v3691 = vadd.f32 0.0, %v3690
      %v3692 = vpop.f32.mrb[0].mxu0
      %3693 = vmatprep.mubr.bf16.mxu0 0
      %3694 = vmatmul.mubr.bf16.gmra.mrb[0].mxu0 %v3550
      %v3695 = vpop.f32.mrb[0].mxu0
      %v3696 = vadd.f32 0.0, %v3695
      %v3697 = vpop.f32.mrb[0].mxu0
      %v3698 = vpop.f32.mrb[0].mxu0
      %v3699 = vadd.f32 0.0, %v3698
      %v3700 = vpop.f32.mrb[0].mxu0
      %3701 = vmatprep.mubr.bf16.mxu0 0
      %3702 = vmatmul.mubr.bf16.gmra.mrb[0].mxu0 %v3553
      %v3703 = vpop.f32.mrb[0].mxu0
      %v3704 = vadd.f32 0.0, %v3703
      %v3705 = vpop.f32.mrb[0].mxu0
      %v3706 = vpop.f32.mrb[0].mxu0
      %v3707 = vadd.f32 0.0, %v3706
      %v3708 = vpop.f32.mrb[0].mxu0
      %3709 = vmatprep.mubr.bf16.mxu0 0
      %3710 = vmatmul.mubr.bf16.gmra.mrb[0].mxu0 %v3556
      %v3711 = vpop.f32.mrb[0].mxu0
      %v3712 = vadd.f32 0.0, %v3711
      %v3713 = vpop.f32.mrb[0].mxu0
      %v3714 = vpop.f32.mrb[0].mxu0
      %v3715 = vadd.f32 0.0, %v3714
      %v3716 = vpop.f32.mrb[0].mxu0
      %3717 = vmatprep.mubr.bf16.mxu0 0
      %3718 = vmatmul.mubr.bf16.gmra.mrb[0].mxu0 %v3559
      %v3719 = vpop.f32.mrb[0].mxu0
      %v3720 = vadd.f32 0.0, %v3719
      %v3721 = vpop.f32.mrb[0].mxu0
      %v3722 = vpop.f32.mrb[0].mxu0
      %v3723 = vadd.f32 0.0, %v3722
      %v3724 = vpop.f32.mrb[0].mxu0
      %3725 = vmatprep.mubr.bf16.mxu0 0
      %3726 = vmatmul.mubr.bf16.gmra.mrb[0].mxu0 %v3562
      %v3727 = vpop.f32.mrb[0].mxu0
      %v3728 = vadd.f32 0.0, %v3727
      %v3729 = vpop.f32.mrb[0].mxu0
      %v3730 = vpop.f32.mrb[0].mxu0
      %v3731 = vadd.f32 0.0, %v3730
      %v3732 = vpop.f32.mrb[0].mxu0
      %3733 = vmatprep.mubr.bf16.mxu0 0
      %3734 = vmatmul.mubr.bf16.gmra.mrb[0].mxu0 %v3565
      %v3735 = vpop.f32.mrb[0].mxu0
      %v3736 = vadd.f32 0.0, %v3735
      %v3737 = vpop.f32.mrb[0].mxu0
      %v3738 = vpop.f32.mrb[0].mxu0
      %v3739 = vadd.f32 0.0, %v3738
      %v3740 = vpop.f32.mrb[0].mxu0
      %3741 = vmatprep.mubr.bf16.mxu0 0
      %3742 = vmatmul.mubr.bf16.gmra.mrb[0].mxu0 %v3568
      %v3743 = vpop.f32.mrb[0].mxu0
      %v3744 = vadd.f32 0.0, %v3743
      %v3745 = vpop.f32.mrb[0].mxu0
      %v3746 = vpop.f32.mrb[0].mxu0
      %v3747 = vadd.f32 0.0, %v3746
      %v3748 = vpop.f32.mrb[0].mxu0
      %3749 = vdwg.mxu0
      %v3750 = vld [vmem:[#allocation2] sm:$0xff]
      %v3751 = vld [vmem:[#allocation2 + $0x8] sm:$0xff]
      %v3752 = vld [vmem:[#allocation2 + $0x10] sm:$0xff]
      %v3753 = vld [vmem:[#allocation2 + $0x18] sm:$0xff]
      %v3754 = vld [vmem:[#allocation2 + $0x20] sm:$0xff]
      %v3755 = vld [vmem:[#allocation2 + $0x28] sm:$0xff]
      %v3756 = vld [vmem:[#allocation2 + $0x30] sm:$0xff]
      %v3757 = vld [vmem:[#allocation2 + $0x38] sm:$0xff]
      %v3758 = vld [vmem:[#allocation2 + $0x40] sm:$0xff]
      %v3759 = vld [vmem:[#allocation2 + $0x48] sm:$0xff]
      %v3760 = vld [vmem:[#allocation2 + $0x50] sm:$0xff]
      %v3761 = vld [vmem:[#allocation2 + $0x58] sm:$0xff]
      %v3762 = vld [vmem:[#allocation2 + $0x60] sm:$0xff]
      %v3763 = vld [vmem:[#allocation2 + $0x68] sm:$0xff]
      %v3764 = vld [vmem:[#allocation2 + $0x70] sm:$0xff]
      %v3765 = vld [vmem:[#allocation2 + $0x78] sm:$0xff]
      %v3766 = vld [vmem:[#allocation2 + $0x80] sm:$0xff]
      %v3767 = vld [vmem:[#allocation2 + $0x88] sm:$0xff]
      %v3768 = vld [vmem:[#allocation2 + $0x90] sm:$0xff]
      %v3769 = vld [vmem:[#allocation2 + $0x98] sm:$0xff]
      %v3770 = vld [vmem:[#allocation2 + $0xa0] sm:$0xff]
      %v3771 = vld [vmem:[#allocation2 + $0xa8] sm:$0xff]
      %v3772 = vld [vmem:[#allocation2 + $0xb0] sm:$0xff]
      %v3773 = vld [vmem:[#allocation2 + $0xb8] sm:$0xff]
      %v3774 = vld [vmem:[#allocation2 + $0xc0] sm:$0xff]
      %v3775 = vld [vmem:[#allocation2 + $0xc8] sm:$0xff]
      %v3776 = vld [vmem:[#allocation2 + $0xd0] sm:$0xff]
      %v3777 = vld [vmem:[#allocation2 + $0xd8] sm:$0xff]
      %v3778 = vld [vmem:[#allocation2 + $0xe0] sm:$0xff]
      %v3779 = vld [vmem:[#allocation2 + $0xe8] sm:$0xff]
      %v3780 = vld [vmem:[#allocation2 + $0xf0] sm:$0xff]
      %v3781 = vld [vmem:[#allocation2 + $0xf8] sm:$0xff]
      %v3782 = vld [vmem:[#allocation2 + $0x100] sm:$0xff]
      %v3783 = vld [vmem:[#allocation2 + $0x108] sm:$0xff]
      %v3784 = vld [vmem:[#allocation2 + $0x110] sm:$0xff]
      %v3785 = vld [vmem:[#allocation2 + $0x118] sm:$0xff]
      %v3786 = vadd.f32 %v3750, %v3608
      %v3787 = vadd.f32 %v3751, %v3611
      %v3788 = vadd.f32 %v3752, %v3616
      %v3789 = vadd.f32 %v3753, %v3619
      %v3790 = vadd.f32 %v3754, %v3624
      %v3791 = vadd.f32 %v3755, %v3627
      %v3792 = vadd.f32 %v3756, %v3632
      %v3793 = vadd.f32 %v3757, %v3635
      %v3794 = vadd.f32 %v3758, %v3640
      %v3795 = vadd.f32 %v3759, %v3643
      %v3796 = vadd.f32 %v3760, %v3648
      %v3797 = vadd.f32 %v3761, %v3651
      %v3798 = vadd.f32 %v3762, %v3656
      %v3799 = vadd.f32 %v3763, %v3659
      %v3800 = vadd.f32 %v3764, %v3664
      %v3801 = vadd.f32 %v3765, %v3667
      %v3802 = vadd.f32 %v3766, %v3672
      %v3803 = vadd.f32 %v3767, %v3675
      %v3804 = vadd.f32 %v3768, %v3680
      %v3805 = vadd.f32 %v3769, %v3683
      %v3806 = vadd.f32 %v3770, %v3688
      %v3807 = vadd.f32 %v3771, %v3691
      %v3808 = vadd.f32 %v3772, %v3696
      %v3809 = vadd.f32 %v3773, %v3699
      %v3810 = vadd.f32 %v3774, %v3704
      %v3811 = vadd.f32 %v3775, %v3707
      %v3812 = vadd.f32 %v3776, %v3712
      %v3813 = vadd.f32 %v3777, %v3715
      %v3814 = vadd.f32 %v3778, %v3720
      %v3815 = vadd.f32 %v3779, %v3723
      %v3816 = vadd.f32 %v3780, %v3728
      %v3817 = vadd.f32 %v3781, %v3731
      %v3818 = vadd.f32 %v3782, %v3736
      %v3819 = vadd.f32 %v3783, %v3739
      %v3820 = vadd.f32 %v3784, %v3744
      %v3821 = vadd.f32 %v3785, %v3747
      %3822 = vst [vmem:[#allocation2] sm:$0xff] %v3786
      %3823 = vst [vmem:[#allocation2 + $0x8] sm:$0xff] %v3787
      %3824 = vst [vmem:[#allocation2 + $0x10] sm:$0xff] %v3788
      %3825 = vst [vmem:[#allocation2 + $0x18] sm:$0xff] %v3789
      %3826 = vst [vmem:[#allocation2 + $0x20] sm:$0xff] %v3790
      %3827 = vst [vmem:[#allocation2 + $0x28] sm:$0xff] %v3791
      %3828 = vst [vmem:[#allocation2 + $0x30] sm:$0xff] %v3792
      %3829 = vst [vmem:[#allocation2 + $0x38] sm:$0xff] %v3793
      %3830 = vst [vmem:[#allocation2 + $0x40] sm:$0xff] %v3794
      %3831 = vst [vmem:[#allocation2 + $0x48] sm:$0xff] %v3795
      %3832 = vst [vmem:[#allocation2 + $0x50] sm:$0xff] %v3796
      %3833 = vst [vmem:[#allocation2 + $0x58] sm:$0xff] %v3797
      %3834 = vst [vmem:[#allocation2 + $0x60] sm:$0xff] %v3798
      %3835 = vst [vmem:[#allocation2 + $0x68] sm:$0xff] %v3799
      %3836 = vst [vmem:[#allocation2 + $0x70] sm:$0xff] %v3800
      %3837 = vst [vmem:[#allocation2 + $0x78] sm:$0xff] %v3801
      %3838 = vst [vmem:[#allocation2 + $0x80] sm:$0xff] %v3802
      %3839 = vst [vmem:[#allocation2 + $0x88] sm:$0xff] %v3803
      %3840 = vst [vmem:[#allocation2 + $0x90] sm:$0xff] %v3804
      %3841 = vst [vmem:[#allocation2 + $0x98] sm:$0xff] %v3805
      %3842 = vst [vmem:[#allocation2 + $0xa0] sm:$0xff] %v3806
      %3843 = vst [vmem:[#allocation2 + $0xa8] sm:$0xff] %v3807
      %3844 = vst [vmem:[#allocation2 + $0xb0] sm:$0xff] %v3808
      %3845 = vst [vmem:[#allocation2 + $0xb8] sm:$0xff] %v3809
      %3846 = vst [vmem:[#allocation2 + $0xc0] sm:$0xff] %v3810
      %3847 = vst [vmem:[#allocation2 + $0xc8] sm:$0xff] %v3811
      %3848 = vst [vmem:[#allocation2 + $0xd0] sm:$0xff] %v3812
      %3849 = vst [vmem:[#allocation2 + $0xd8] sm:$0xff] %v3813
      %3850 = vst [vmem:[#allocation2 + $0xe0] sm:$0xff] %v3814
      %3851 = vst [vmem:[#allocation2 + $0xe8] sm:$0xff] %v3815
      %3852 = vst [vmem:[#allocation2 + $0xf0] sm:$0xff] %v3816
      %3853 = vst [vmem:[#allocation2 + $0xf8] sm:$0xff] %v3817
      %3854 = vst [vmem:[#allocation2 + $0x100] sm:$0xff] %v3818
      %3855 = vst [vmem:[#allocation2 + $0x108] sm:$0xff] %v3819
      %3856 = vst [vmem:[#allocation2 + $0x110] sm:$0xff] %v3820
      %3857 = vst [vmem:[#allocation2 + $0x118] sm:$0xff] %v3821
      %v3858 = vld [vmem:[%s138 + $0x10] sm:$0xc]
      %v3859 = vld [vmem:[%s138 + $0x14] sm:$0xf]
      %v3860 = vld [vmem:[%s138 + $0x18] sm:$0xf]
      %v3861 = vld [vmem:[%s138 + $0x1c] sm:$0xf]
      %v3862 = vld [vmem:[%s138 + $0x20] sm:$0xf]
      %v3863 = vld [vmem:[%s138 + $0x24] sm:$0xf]
      %v3864 = vld [vmem:[%s138 + $0x28] sm:$0xf]
      %v3865 = vld [vmem:[%s138 + $0x2c] sm:$0xf]
      %v3866 = vld [vmem:[%s138 + $0x30] sm:$0xf]
      %v3867 = vld [vmem:[%s138 + $0x34] sm:$0xf]
      %v3868 = vld [vmem:[%s138 + $0x38] sm:$0xf]
      %v3869 = vld [vmem:[%s138 + $0x3c] sm:$0xf]
      %v3870 = vld [vmem:[%s138 + $0x40] sm:$0xf]
      %v3871 = vld [vmem:[%s138 + $0x44] sm:$0xf]
      %v3872 = vld [vmem:[%s138 + $0x48] sm:$0xf]
      %v3873 = vld [vmem:[%s138 + $0x4c] sm:$0xf]
      %v3874 = vld [vmem:[%s138 + $0x50] sm:$0xf]
      %v3875 = vld [vmem:[%s138 + $0x54] sm:$0xf]
      %v3876 = vld [vmem:[%s138 + $0x58] sm:$0xf]
      %v3877 = vld [vmem:[%s138 + $0x5c] sm:$0xf]
      %v3878 = vld [vmem:[%s138 + $0x60] sm:$0xf]
      %v3879 = vld [vmem:[%s138 + $0x64] sm:$0xf]
      %v3880 = vld [vmem:[%s138 + $0x68] sm:$0xf]
      %v3881 = vld [vmem:[%s138 + $0x6c] sm:$0xf]
      %v3882 = vld [vmem:[%s138 + $0x70] sm:$0xf]
      %v3883 = vld [vmem:[%s138 + $0x74] sm:$0xf]
      %v3884 = vld [vmem:[%s138 + $0x78] sm:$0xf]
      %v3885 = vld [vmem:[%s138 + $0x7c] sm:$0xf]
      %v3886 = vld [vmem:[%s138 + $0x80] sm:$0xf]
      %v3887 = vld [vmem:[%s138 + $0x84] sm:$0xf]
      %v3888 = vld [vmem:[%s138 + $0x88] sm:$0xf]
      %v3889 = vld [vmem:[%s138 + $0x8c] sm:$0xf]
      %v3890 = vld [vmem:[%s138 + $0x90] sm:$0xf]
      %v3891 = vld [vmem:[%s138 + $0x94] sm:$0xf]
      %v3892 = vld [vmem:[%s138 + $0x98] sm:$0xf]
      %v3893 = vld [vmem:[%s138 + $0x9c] sm:$0xf]
      %v3894 = vld [vmem:[%s138 + $0xa0] sm:$0x7]
      %s3895 = scalar_lea.vmem %s1, 14
      %v3896 = vld [vmem:[%s3895] sm:$0x3]
      %v3934 = vunpack.c.l.b16 %v3858
      %v3935 = vunpack.c.l.b16 %v3859
      %v3936 = vunpack.c.l.b16 %v3860
      %v3937 = vunpack.c.l.b16 %v3861
      %v3938 = vunpack.c.l.b16 %v3862
      %v3939 = vunpack.c.l.b16 %v3863
      %v3940 = vunpack.c.l.b16 %v3864
      %v3941 = vunpack.c.l.b16 %v3865
      %v3942 = vunpack.c.l.b16 %v3866
      %v3943 = vunpack.c.l.b16 %v3867
      %v3944 = vunpack.c.l.b16 %v3868
      %v3945 = vunpack.c.l.b16 %v3869
      %v3946 = vunpack.c.l.b16 %v3870
      %v3947 = vunpack.c.l.b16 %v3871
      %v3948 = vunpack.c.l.b16 %v3872
      %v3949 = vunpack.c.l.b16 %v3873
      %v3950 = vunpack.c.l.b16 %v3874
      %v3951 = vunpack.c.l.b16 %v3875
      %v3952 = vunpack.c.l.b16 %v3876
      %v3953 = vunpack.c.l.b16 %v3877
      %v3954 = vunpack.c.l.b16 %v3878
      %v3955 = vunpack.c.l.b16 %v3879
      %v3956 = vunpack.c.l.b16 %v3880
      %v3957 = vunpack.c.l.b16 %v3881
      %v3958 = vunpack.c.l.b16 %v3882
      %v3959 = vunpack.c.l.b16 %v3883
      %v3960 = vunpack.c.l.b16 %v3884
      %v3961 = vunpack.c.l.b16 %v3885
      %v3962 = vunpack.c.l.b16 %v3886
      %v3963 = vunpack.c.l.b16 %v3887
      %v3964 = vunpack.c.l.b16 %v3888
      %v3965 = vunpack.c.l.b16 %v3889
      %v3966 = vunpack.c.l.b16 %v3890
      %v3967 = vunpack.c.l.b16 %v3891
      %v3968 = vunpack.c.l.b16 %v3892
      %v3969 = vunpack.c.l.b16 %v3893
      %v3970 = vunpack.c.l.b16 %v3894
      %v3971 = vpack.c.b16 %v3935, %v3934
      %v3972 = vpack.c.b16 %v3937, %v3936
      %v3973 = vpack.c.b16 %v3939, %v3938
      %v3974 = vpack.c.b16 %v3941, %v3940
      %v3975 = vpack.c.b16 %v3943, %v3942
      %v3976 = vpack.c.b16 %v3945, %v3944
      %v3977 = vpack.c.b16 %v3947, %v3946
      %v3978 = vpack.c.b16 %v3949, %v3948
      %v3979 = vpack.c.b16 %v3951, %v3950
      %v3980 = vpack.c.b16 %v3953, %v3952
      %v3981 = vpack.c.b16 %v3955, %v3954
      %v3982 = vpack.c.b16 %v3957, %v3956
      %v3983 = vpack.c.b16 %v3959, %v3958
      %v3984 = vpack.c.b16 %v3961, %v3960
      %v3985 = vpack.c.b16 %v3963, %v3962
      %v3986 = vpack.c.b16 %v3965, %v3964
      %v3987 = vpack.c.b16 %v3967, %v3966
      %v3988 = vpack.c.b16 %v3969, %v3968
      %v3989 = vpack.c.b16 %v3970, %v3970
      %vm3990 = vsmask.f32 5376
      %v3992 = vshrl.u32 %v3971, 16
      %v3994 = vrot.slane %v3992, 2
      %v3995 = vshll.u32 %v3971, 16
      %v3997 = vrot.slane %v3995, 3
      %v3998 = vor.u32 %v3994, %v3997
      %v4000 = vshrl.u32 %v3972, 16
      %v4002 = vrot.slane %v4000, 2
      %v4003 = vshll.u32 %v3972, 16
      %v4005 = vrot.slane %v4003, 3
      %v4006 = vor.u32 %v4002, %v4005
      %v4007 = vsel %vm3990, %v3998, %v4006
      %v4009 = vshrl.u32 %v3973, 16
      %v4011 = vrot.slane %v4009, 2
      %v4012 = vshll.u32 %v3973, 16
      %v4014 = vrot.slane %v4012, 3
      %v4015 = vor.u32 %v4011, %v4014
      %v4016 = vsel %vm3990, %v4006, %v4015
      %v4018 = vshrl.u32 %v3974, 16
      %v4020 = vrot.slane %v4018, 2
      %v4021 = vshll.u32 %v3974, 16
      %v4023 = vrot.slane %v4021, 3
      %v4024 = vor.u32 %v4020, %v4023
      %v4025 = vsel %vm3990, %v4015, %v4024
      %v4027 = vshrl.u32 %v3975, 16
      %v4029 = vrot.slane %v4027, 2
      %v4030 = vshll.u32 %v3975, 16
      %v4032 = vrot.slane %v4030, 3
      %v4033 = vor.u32 %v4029, %v4032
      %v4034 = vsel %vm3990, %v4024, %v4033
      %v4036 = vshrl.u32 %v3976, 16
      %v4038 = vrot.slane %v4036, 2
      %v4039 = vshll.u32 %v3976, 16
      %v4041 = vrot.slane %v4039, 3
      %v4042 = vor.u32 %v4038, %v4041
      %v4043 = vsel %vm3990, %v4033, %v4042
      %v4045 = vshrl.u32 %v3977, 16
      %v4047 = vrot.slane %v4045, 2
      %v4048 = vshll.u32 %v3977, 16
      %v4050 = vrot.slane %v4048, 3
      %v4051 = vor.u32 %v4047, %v4050
      %v4052 = vsel %vm3990, %v4042, %v4051
      %v4054 = vshrl.u32 %v3978, 16
      %v4056 = vrot.slane %v4054, 2
      %v4057 = vshll.u32 %v3978, 16
      %v4059 = vrot.slane %v4057, 3
      %v4060 = vor.u32 %v4056, %v4059
      %v4061 = vsel %vm3990, %v4051, %v4060
      %v4063 = vshrl.u32 %v3979, 16
      %v4065 = vrot.slane %v4063, 2
      %v4066 = vshll.u32 %v3979, 16
      %v4068 = vrot.slane %v4066, 3
      %v4069 = vor.u32 %v4065, %v4068
      %v4070 = vsel %vm3990, %v4060, %v4069
      %v4072 = vshrl.u32 %v3980, 16
      %v4074 = vrot.slane %v4072, 2
      %v4075 = vshll.u32 %v3980, 16
      %v4077 = vrot.slane %v4075, 3
      %v4078 = vor.u32 %v4074, %v4077
      %v4079 = vsel %vm3990, %v4069, %v4078
      %v4081 = vshrl.u32 %v3981, 16
      %v4083 = vrot.slane %v4081, 2
      %v4084 = vshll.u32 %v3981, 16
      %v4086 = vrot.slane %v4084, 3
      %v4087 = vor.u32 %v4083, %v4086
      %v4088 = vsel %vm3990, %v4078, %v4087
      %v4090 = vshrl.u32 %v3982, 16
      %v4092 = vrot.slane %v4090, 2
      %v4093 = vshll.u32 %v3982, 16
      %v4095 = vrot.slane %v4093, 3
      %v4096 = vor.u32 %v4092, %v4095
      %v4097 = vsel %vm3990, %v4087, %v4096
      %v4099 = vshrl.u32 %v3983, 16
      %v4101 = vrot.slane %v4099, 2
      %v4102 = vshll.u32 %v3983, 16
      %v4104 = vrot.slane %v4102, 3
      %v4105 = vor.u32 %v4101, %v4104
      %v4106 = vsel %vm3990, %v4096, %v4105
      %v4108 = vshrl.u32 %v3984, 16
      %v4110 = vrot.slane %v4108, 2
      %v4111 = vshll.u32 %v3984, 16
      %v4113 = vrot.slane %v4111, 3
      %v4114 = vor.u32 %v4110, %v4113
      %v4115 = vsel %vm3990, %v4105, %v4114
      %v4117 = vshrl.u32 %v3985, 16
      %v4119 = vrot.slane %v4117, 2
      %v4120 = vshll.u32 %v3985, 16
      %v4122 = vrot.slane %v4120, 3
      %v4123 = vor.u32 %v4119, %v4122
      %v4124 = vsel %vm3990, %v4114, %v4123
      %v4126 = vshrl.u32 %v3986, 16
      %v4128 = vrot.slane %v4126, 2
      %v4129 = vshll.u32 %v3986, 16
      %v4131 = vrot.slane %v4129, 3
      %v4132 = vor.u32 %v4128, %v4131
      %v4133 = vsel %vm3990, %v4123, %v4132
      %v4135 = vshrl.u32 %v3987, 16
      %v4137 = vrot.slane %v4135, 2
      %v4138 = vshll.u32 %v3987, 16
      %v4140 = vrot.slane %v4138, 3
      %v4141 = vor.u32 %v4137, %v4140
      %v4142 = vsel %vm3990, %v4132, %v4141
      %v4144 = vshrl.u32 %v3988, 16
      %v4146 = vrot.slane %v4144, 2
      %v4147 = vshll.u32 %v3988, 16
      %v4149 = vrot.slane %v4147, 3
      %v4150 = vor.u32 %v4146, %v4149
      %v4151 = vsel %vm3990, %v4141, %v4150
      %v4153 = vshrl.u32 %v3989, 16
      %v4155 = vrot.slane %v4153, 2
      %v4156 = vshll.u32 %v3989, 16
      %v4158 = vrot.slane %v4156, 3
      %v4159 = vor.u32 %v4155, %v4158
      %v4160 = vsel %vm3990, %v4150, %v4159
      %v4162 = vsel %vm272, %v4007, 0
      %v4165 = vsel %vm272, %v4016, 0
      %v4168 = vsel %vm272, %v4025, 0
      %v4171 = vsel %vm272, %v4034, 0
      %v4174 = vsel %vm272, %v4043, 0
      %v4177 = vsel %vm272, %v4052, 0
      %v4180 = vsel %vm272, %v4061, 0
      %v4183 = vsel %vm272, %v4070, 0
      %v4186 = vsel %vm272, %v4079, 0
      %v4189 = vsel %vm272, %v4088, 0
      %v4192 = vsel %vm272, %v4097, 0
      %v4195 = vsel %vm272, %v4106, 0
      %v4198 = vsel %vm272, %v4115, 0
      %v4201 = vsel %vm272, %v4124, 0
      %v4204 = vsel %vm272, %v4133, 0
      %v4207 = vsel %vm272, %v4142, 0
      %v4210 = vsel %vm272, %v4151, 0
      %v4213 = vsel %vm272, %v4160, 0
      %v4216 = vsel %vm327, %v3896, 0
      %4218 = vmatprep.subr.bf16.mxu0 0
      %4219 = vmatpush1.bf16.msra.mxu0 %v4216
      %4220 = vmatprep.subr.bf16.mxu0 0
      %4221 = vmatpush1.bf16.msra.mxu0 0
      %4222 = vmatprep.subr.bf16.mxu0 0
      %4223 = vmatpush1.bf16.msra.mxu0 0
      %4224 = vmatprep.subr.bf16.mxu0 0
      %4225 = vmatpush1.bf16.msra.mxu0 0
      %4226 = vmatprep.subr.bf16.mxu0 0
      %4227 = vmatpush1.bf16.msra.mxu0 0
      %4228 = vmatprep.subr.bf16.mxu0 0
      %4229 = vmatpush1.bf16.msra.mxu0 0
      %4230 = vmatprep.subr.bf16.mxu0 0
      %4231 = vmatpush1.bf16.msra.mxu0 0
      %4232 = vmatprep.subr.bf16.mxu0 0
      %4233 = vmatpush1.bf16.msra.mxu0 0
      %4234 = vmatprep.subr.bf16.mxu0 0
      %4235 = vmatpush1.bf16.msra.mxu0 0
      %4236 = vmatprep.subr.bf16.mxu0 0
      %4237 = vmatpush1.bf16.msra.mxu0 0
      %4238 = vmatprep.subr.bf16.mxu0 0
      %4239 = vmatpush1.bf16.msra.mxu0 0
      %4240 = vmatprep.subr.bf16.mxu0 0
      %4241 = vmatpush1.bf16.msra.mxu0 0
      %4242 = vmatprep.subr.bf16.mxu0 0
      %4243 = vmatpush1.bf16.msra.mxu0 0
      %4244 = vmatprep.subr.bf16.mxu0 0
      %4245 = vmatpush1.bf16.msra.mxu0 0
      %4246 = vmatprep.subr.bf16.mxu0 0
      %4247 = vmatpush1.bf16.msra.mxu0 0
      %4248 = vmatprep.subr.bf16.mxu0 0
      %4249 = vmatpush1.bf16.msra.mxu0 0
      %4250 = vmatprep.mubr.bf16.mxu0 0
      %4251 = vmatmul.mubr.bf16.gmra.mrb[0].mxu0 %v4162
      %v4252 = vpop.f32.mrb[0].mxu0
      %v4253 = vadd.f32 0.0, %v4252
      %v4254 = vpop.f32.mrb[0].mxu0
      %v4255 = vpop.f32.mrb[0].mxu0
      %v4256 = vadd.f32 0.0, %v4255
      %v4257 = vpop.f32.mrb[0].mxu0
      %4258 = vmatprep.mubr.bf16.mxu0 0
      %4259 = vmatmul.mubr.bf16.gmra.mrb[0].mxu0 %v4165
      %v4260 = vpop.f32.mrb[0].mxu0
      %v4261 = vadd.f32 0.0, %v4260
      %v4262 = vpop.f32.mrb[0].mxu0
      %v4263 = vpop.f32.mrb[0].mxu0
      %v4264 = vadd.f32 0.0, %v4263
      %v4265 = vpop.f32.mrb[0].mxu0
      %4266 = vmatprep.mubr.bf16.mxu0 0
      %4267 = vmatmul.mubr.bf16.gmra.mrb[0].mxu0 %v4168
      %v4268 = vpop.f32.mrb[0].mxu0
      %v4269 = vadd.f32 0.0, %v4268
      %v4270 = vpop.f32.mrb[0].mxu0
      %v4271 = vpop.f32.mrb[0].mxu0
      %v4272 = vadd.f32 0.0, %v4271
      %v4273 = vpop.f32.mrb[0].mxu0
      %4274 = vmatprep.mubr.bf16.mxu0 0
      %4275 = vmatmul.mubr.bf16.gmra.mrb[0].mxu0 %v4171
      %v4276 = vpop.f32.mrb[0].mxu0
      %v4277 = vadd.f32 0.0, %v4276
      %v4278 = vpop.f32.mrb[0].mxu0
      %v4279 = vpop.f32.mrb[0].mxu0
      %v4280 = vadd.f32 0.0, %v4279
      %v4281 = vpop.f32.mrb[0].mxu0
      %4282 = vmatprep.mubr.bf16.mxu0 0
      %4283 = vmatmul.mubr.bf16.gmra.mrb[0].mxu0 %v4174
      %v4284 = vpop.f32.mrb[0].mxu0
      %v4285 = vadd.f32 0.0, %v4284
      %v4286 = vpop.f32.mrb[0].mxu0
      %v4287 = vpop.f32.mrb[0].mxu0
      %v4288 = vadd.f32 0.0, %v4287
      %v4289 = vpop.f32.mrb[0].mxu0
      %4290 = vmatprep.mubr.bf16.mxu0 0
      %4291 = vmatmul.mubr.bf16.gmra.mrb[0].mxu0 %v4177
      %v4292 = vpop.f32.mrb[0].mxu0
      %v4293 = vadd.f32 0.0, %v4292
      %v4294 = vpop.f32.mrb[0].mxu0
      %v4295 = vpop.f32.mrb[0].mxu0
      %v4296 = vadd.f32 0.0, %v4295
      %v4297 = vpop.f32.mrb[0].mxu0
      %4298 = vmatprep.mubr.bf16.mxu0 0
      %4299 = vmatmul.mubr.bf16.gmra.mrb[0].mxu0 %v4180
      %v4300 = vpop.f32.mrb[0].mxu0
      %v4301 = vadd.f32 0.0, %v4300
      %v4302 = vpop.f32.mrb[0].mxu0
      %v4303 = vpop.f32.mrb[0].mxu0
      %v4304 = vadd.f32 0.0, %v4303
      %v4305 = vpop.f32.mrb[0].mxu0
      %4306 = vmatprep.mubr.bf16.mxu0 0
      %4307 = vmatmul.mubr.bf16.gmra.mrb[0].mxu0 %v4183
      %v4308 = vpop.f32.mrb[0].mxu0
      %v4309 = vadd.f32 0.0, %v4308
      %v4310 = vpop.f32.mrb[0].mxu0
      %v4311 = vpop.f32.mrb[0].mxu0
      %v4312 = vadd.f32 0.0, %v4311
      %v4313 = vpop.f32.mrb[0].mxu0
      %4314 = vmatprep.mubr.bf16.mxu0 0
      %4315 = vmatmul.mubr.bf16.gmra.mrb[0].mxu0 %v4186
      %v4316 = vpop.f32.mrb[0].mxu0
      %v4317 = vadd.f32 0.0, %v4316
      %v4318 = vpop.f32.mrb[0].mxu0
      %v4319 = vpop.f32.mrb[0].mxu0
      %v4320 = vadd.f32 0.0, %v4319
      %v4321 = vpop.f32.mrb[0].mxu0
      %4322 = vmatprep.mubr.bf16.mxu0 0
      %4323 = vmatmul.mubr.bf16.gmra.mrb[0].mxu0 %v4189
      %v4324 = vpop.f32.mrb[0].mxu0
      %v4325 = vadd.f32 0.0, %v4324
      %v4326 = vpop.f32.mrb[0].mxu0
      %v4327 = vpop.f32.mrb[0].mxu0
      %v4328 = vadd.f32 0.0, %v4327
      %v4329 = vpop.f32.mrb[0].mxu0
      %4330 = vmatprep.mubr.bf16.mxu0 0
      %4331 = vmatmul.mubr.bf16.gmra.mrb[0].mxu0 %v4192
      %v4332 = vpop.f32.mrb[0].mxu0
      %v4333 = vadd.f32 0.0, %v4332
      %v4334 = vpop.f32.mrb[0].mxu0
      %v4335 = vpop.f32.mrb[0].mxu0
      %v4336 = vadd.f32 0.0, %v4335
      %v4337 = vpop.f32.mrb[0].mxu0
      %4338 = vmatprep.mubr.bf16.mxu0 0
      %4339 = vmatmul.mubr.bf16.gmra.mrb[0].mxu0 %v4195
      %v4340 = vpop.f32.mrb[0].mxu0
      %v4341 = vadd.f32 0.0, %v4340
      %v4342 = vpop.f32.mrb[0].mxu0
      %v4343 = vpop.f32.mrb[0].mxu0
      %v4344 = vadd.f32 0.0, %v4343
      %v4345 = vpop.f32.mrb[0].mxu0
      %4346 = vmatprep.mubr.bf16.mxu0 0
      %4347 = vmatmul.mubr.bf16.gmra.mrb[0].mxu0 %v4198
      %v4348 = vpop.f32.mrb[0].mxu0
      %v4349 = vadd.f32 0.0, %v4348
      %v4350 = vpop.f32.mrb[0].mxu0
      %v4351 = vpop.f32.mrb[0].mxu0
      %v4352 = vadd.f32 0.0, %v4351
      %v4353 = vpop.f32.mrb[0].mxu0
      %4354 = vmatprep.mubr.bf16.mxu0 0
      %4355 = vmatmul.mubr.bf16.gmra.mrb[0].mxu0 %v4201
      %v4356 = vpop.f32.mrb[0].mxu0
      %v4357 = vadd.f32 0.0, %v4356
      %v4358 = vpop.f32.mrb[0].mxu0
      %v4359 = vpop.f32.mrb[0].mxu0
      %v4360 = vadd.f32 0.0, %v4359
      %v4361 = vpop.f32.mrb[0].mxu0
      %4362 = vmatprep.mubr.bf16.mxu0 0
      %4363 = vmatmul.mubr.bf16.gmra.mrb[0].mxu0 %v4204
      %v4364 = vpop.f32.mrb[0].mxu0
      %v4365 = vadd.f32 0.0, %v4364
      %v4366 = vpop.f32.mrb[0].mxu0
      %v4367 = vpop.f32.mrb[0].mxu0
      %v4368 = vadd.f32 0.0, %v4367
      %v4369 = vpop.f32.mrb[0].mxu0
      %4370 = vmatprep.mubr.bf16.mxu0 0
      %4371 = vmatmul.mubr.bf16.gmra.mrb[0].mxu0 %v4207
      %v4372 = vpop.f32.mrb[0].mxu0
      %v4373 = vadd.f32 0.0, %v4372
      %v4374 = vpop.f32.mrb[0].mxu0
      %v4375 = vpop.f32.mrb[0].mxu0
      %v4376 = vadd.f32 0.0, %v4375
      %v4377 = vpop.f32.mrb[0].mxu0
      %4378 = vmatprep.mubr.bf16.mxu0 0
      %4379 = vmatmul.mubr.bf16.gmra.mrb[0].mxu0 %v4210
      %v4380 = vpop.f32.mrb[0].mxu0
      %v4381 = vadd.f32 0.0, %v4380
      %v4382 = vpop.f32.mrb[0].mxu0
      %v4383 = vpop.f32.mrb[0].mxu0
      %v4384 = vadd.f32 0.0, %v4383
      %v4385 = vpop.f32.mrb[0].mxu0
      %4386 = vmatprep.mubr.bf16.mxu0 0
      %4387 = vmatmul.mubr.bf16.gmra.mrb[0].mxu0 %v4213
      %v4388 = vpop.f32.mrb[0].mxu0
      %v4389 = vadd.f32 0.0, %v4388
      %v4390 = vpop.f32.mrb[0].mxu0
      %v4391 = vpop.f32.mrb[0].mxu0
      %v4392 = vadd.f32 0.0, %v4391
      %v4393 = vpop.f32.mrb[0].mxu0
      %4394 = vdwg.mxu0
      %v4395 = vld [vmem:[#allocation2] sm:$0xff]
      %v4396 = vld [vmem:[#allocation2 + $0x8] sm:$0xff]
      %v4397 = vld [vmem:[#allocation2 + $0x10] sm:$0xff]
      %v4398 = vld [vmem:[#allocation2 + $0x18] sm:$0xff]
      %v4399 = vld [vmem:[#allocation2 + $0x20] sm:$0xff]
      %v4400 = vld [vmem:[#allocation2 + $0x28] sm:$0xff]
      %v4401 = vld [vmem:[#allocation2 + $0x30] sm:$0xff]
      %v4402 = vld [vmem:[#allocation2 + $0x38] sm:$0xff]
      %v4403 = vld [vmem:[#allocation2 + $0x40] sm:$0xff]
      %v4404 = vld [vmem:[#allocation2 + $0x48] sm:$0xff]
      %v4405 = vld [vmem:[#allocation2 + $0x50] sm:$0xff]
      %v4406 = vld [vmem:[#allocation2 + $0x58] sm:$0xff]
      %v4407 = vld [vmem:[#allocation2 + $0x60] sm:$0xff]
      %v4408 = vld [vmem:[#allocation2 + $0x68] sm:$0xff]
      %v4409 = vld [vmem:[#allocation2 + $0x70] sm:$0xff]
      %v4410 = vld [vmem:[#allocation2 + $0x78] sm:$0xff]
      %v4411 = vld [vmem:[#allocation2 + $0x80] sm:$0xff]
      %v4412 = vld [vmem:[#allocation2 + $0x88] sm:$0xff]
      %v4413 = vld [vmem:[#allocation2 + $0x90] sm:$0xff]
      %v4414 = vld [vmem:[#allocation2 + $0x98] sm:$0xff]
      %v4415 = vld [vmem:[#allocation2 + $0xa0] sm:$0xff]
      %v4416 = vld [vmem:[#allocation2 + $0xa8] sm:$0xff]
      %v4417 = vld [vmem:[#allocation2 + $0xb0] sm:$0xff]
      %v4418 = vld [vmem:[#allocation2 + $0xb8] sm:$0xff]
      %v4419 = vld [vmem:[#allocation2 + $0xc0] sm:$0xff]
      %v4420 = vld [vmem:[#allocation2 + $0xc8] sm:$0xff]
      %v4421 = vld [vmem:[#allocation2 + $0xd0] sm:$0xff]
      %v4422 = vld [vmem:[#allocation2 + $0xd8] sm:$0xff]
      %v4423 = vld [vmem:[#allocation2 + $0xe0] sm:$0xff]
      %v4424 = vld [vmem:[#allocation2 + $0xe8] sm:$0xff]
      %v4425 = vld [vmem:[#allocation2 + $0xf0] sm:$0xff]
      %v4426 = vld [vmem:[#allocation2 + $0xf8] sm:$0xff]
      %v4427 = vld [vmem:[#allocation2 + $0x100] sm:$0xff]
      %v4428 = vld [vmem:[#allocation2 + $0x108] sm:$0xff]
      %v4429 = vld [vmem:[#allocation2 + $0x110] sm:$0xff]
      %v4430 = vld [vmem:[#allocation2 + $0x118] sm:$0xff]
      %v4431 = vadd.f32 %v4395, %v4253
      %v4432 = vadd.f32 %v4396, %v4256
      %v4433 = vadd.f32 %v4397, %v4261
      %v4434 = vadd.f32 %v4398, %v4264
      %v4435 = vadd.f32 %v4399, %v4269
      %v4436 = vadd.f32 %v4400, %v4272
      %v4437 = vadd.f32 %v4401, %v4277
      %v4438 = vadd.f32 %v4402, %v4280
      %v4439 = vadd.f32 %v4403, %v4285
      %v4440 = vadd.f32 %v4404, %v4288
      %v4441 = vadd.f32 %v4405, %v4293
      %v4442 = vadd.f32 %v4406, %v4296
      %v4443 = vadd.f32 %v4407, %v4301
      %v4444 = vadd.f32 %v4408, %v4304
      %v4445 = vadd.f32 %v4409, %v4309
      %v4446 = vadd.f32 %v4410, %v4312
      %v4447 = vadd.f32 %v4411, %v4317
      %v4448 = vadd.f32 %v4412, %v4320
      %v4449 = vadd.f32 %v4413, %v4325
      %v4450 = vadd.f32 %v4414, %v4328
      %v4451 = vadd.f32 %v4415, %v4333
      %v4452 = vadd.f32 %v4416, %v4336
      %v4453 = vadd.f32 %v4417, %v4341
      %v4454 = vadd.f32 %v4418, %v4344
      %v4455 = vadd.f32 %v4419, %v4349
      %v4456 = vadd.f32 %v4420, %v4352
      %v4457 = vadd.f32 %v4421, %v4357
      %v4458 = vadd.f32 %v4422, %v4360
      %v4459 = vadd.f32 %v4423, %v4365
      %v4460 = vadd.f32 %v4424, %v4368
      %v4461 = vadd.f32 %v4425, %v4373
      %v4462 = vadd.f32 %v4426, %v4376
      %v4463 = vadd.f32 %v4427, %v4381
      %v4464 = vadd.f32 %v4428, %v4384
      %v4465 = vadd.f32 %v4429, %v4389
      %v4466 = vadd.f32 %v4430, %v4392
      %4467 = vst [vmem:[#allocation2] sm:$0xff] %v4431
      %4468 = vst [vmem:[#allocation2 + $0x8] sm:$0xff] %v4432
      %4469 = vst [vmem:[#allocation2 + $0x10] sm:$0xff] %v4433
      %4470 = vst [vmem:[#allocation2 + $0x18] sm:$0xff] %v4434
      %4471 = vst [vmem:[#allocation2 + $0x20] sm:$0xff] %v4435
      %4472 = vst [vmem:[#allocation2 + $0x28] sm:$0xff] %v4436
      %4473 = vst [vmem:[#allocation2 + $0x30] sm:$0xff] %v4437
      %4474 = vst [vmem:[#allocation2 + $0x38] sm:$0xff] %v4438
      %4475 = vst [vmem:[#allocation2 + $0x40] sm:$0xff] %v4439
      %4476 = vst [vmem:[#allocation2 + $0x48] sm:$0xff] %v4440
      %4477 = vst [vmem:[#allocation2 + $0x50] sm:$0xff] %v4441
      %4478 = vst [vmem:[#allocation2 + $0x58] sm:$0xff] %v4442
      %4479 = vst [vmem:[#allocation2 + $0x60] sm:$0xff] %v4443
      %4480 = vst [vmem:[#allocation2 + $0x68] sm:$0xff] %v4444
      %4481 = vst [vmem:[#allocation2 + $0x70] sm:$0xff] %v4445
      %4482 = vst [vmem:[#allocation2 + $0x78] sm:$0xff] %v4446
      %4483 = vst [vmem:[#allocation2 + $0x80] sm:$0xff] %v4447
      %4484 = vst [vmem:[#allocation2 + $0x88] sm:$0xff] %v4448
      %4485 = vst [vmem:[#allocation2 + $0x90] sm:$0xff] %v4449
      %4486 = vst [vmem:[#allocation2 + $0x98] sm:$0xff] %v4450
      %4487 = vst [vmem:[#allocation2 + $0xa0] sm:$0xff] %v4451
      %4488 = vst [vmem:[#allocation2 + $0xa8] sm:$0xff] %v4452
      %4489 = vst [vmem:[#allocation2 + $0xb0] sm:$0xff] %v4453
      %4490 = vst [vmem:[#allocation2 + $0xb8] sm:$0xff] %v4454
      %4491 = vst [vmem:[#allocation2 + $0xc0] sm:$0xff] %v4455
      %4492 = vst [vmem:[#allocation2 + $0xc8] sm:$0xff] %v4456
      %4493 = vst [vmem:[#allocation2 + $0xd0] sm:$0xff] %v4457
      %4494 = vst [vmem:[#allocation2 + $0xd8] sm:$0xff] %v4458
      %4495 = vst [vmem:[#allocation2 + $0xe0] sm:$0xff] %v4459
      %4496 = vst [vmem:[#allocation2 + $0xe8] sm:$0xff] %v4460
      %4497 = vst [vmem:[#allocation2 + $0xf0] sm:$0xff] %v4461
      %4498 = vst [vmem:[#allocation2 + $0xf8] sm:$0xff] %v4462
      %4499 = vst [vmem:[#allocation2 + $0x100] sm:$0xff] %v4463
      %4500 = vst [vmem:[#allocation2 + $0x108] sm:$0xff] %v4464
      %4501 = vst [vmem:[#allocation2 + $0x110] sm:$0xff] %v4465
      %4502 = vst [vmem:[#allocation2 + $0x118] sm:$0xff] %v4466
      %v4503 = vld [vmem:[%s138 + $0x10] sm:$0x8]
      %v4504 = vld [vmem:[%s138 + $0x14] sm:$0xf]
      %v4505 = vld [vmem:[%s138 + $0x18] sm:$0xf]
      %v4506 = vld [vmem:[%s138 + $0x1c] sm:$0xf]
      %v4507 = vld [vmem:[%s138 + $0x20] sm:$0xf]
      %v4508 = vld [vmem:[%s138 + $0x24] sm:$0xf]
      %v4509 = vld [vmem:[%s138 + $0x28] sm:$0xf]
      %v4510 = vld [vmem:[%s138 + $0x2c] sm:$0xf]
      %v4511 = vld [vmem:[%s138 + $0x30] sm:$0xf]
      %v4512 = vld [vmem:[%s138 + $0x34] sm:$0xf]
      %v4513 = vld [vmem:[%s138 + $0x38] sm:$0xf]
      %v4514 = vld [vmem:[%s138 + $0x3c] sm:$0xf]
      %v4515 = vld [vmem:[%s138 + $0x40] sm:$0xf]
      %v4516 = vld [vmem:[%s138 + $0x44] sm:$0xf]
      %v4517 = vld [vmem:[%s138 + $0x48] sm:$0xf]
      %v4518 = vld [vmem:[%s138 + $0x4c] sm:$0xf]
      %v4519 = vld [vmem:[%s138 + $0x50] sm:$0xf]
      %v4520 = vld [vmem:[%s138 + $0x54] sm:$0xf]
      %v4521 = vld [vmem:[%s138 + $0x58] sm:$0xf]
      %v4522 = vld [vmem:[%s138 + $0x5c] sm:$0xf]
      %v4523 = vld [vmem:[%s138 + $0x60] sm:$0xf]
      %v4524 = vld [vmem:[%s138 + $0x64] sm:$0xf]
      %v4525 = vld [vmem:[%s138 + $0x68] sm:$0xf]
      %v4526 = vld [vmem:[%s138 + $0x6c] sm:$0xf]
      %v4527 = vld [vmem:[%s138 + $0x70] sm:$0xf]
      %v4528 = vld [vmem:[%s138 + $0x74] sm:$0xf]
      %v4529 = vld [vmem:[%s138 + $0x78] sm:$0xf]
      %v4530 = vld [vmem:[%s138 + $0x7c] sm:$0xf]
      %v4531 = vld [vmem:[%s138 + $0x80] sm:$0xf]
      %v4532 = vld [vmem:[%s138 + $0x84] sm:$0xf]
      %v4533 = vld [vmem:[%s138 + $0x88] sm:$0xf]
      %v4534 = vld [vmem:[%s138 + $0x8c] sm:$0xf]
      %v4535 = vld [vmem:[%s138 + $0x90] sm:$0xf]
      %v4536 = vld [vmem:[%s138 + $0x94] sm:$0xf]
      %v4537 = vld [vmem:[%s138 + $0x98] sm:$0xf]
      %v4538 = vld [vmem:[%s138 + $0x9c] sm:$0xf]
      %v4539 = vld [vmem:[%s138 + $0xa0] sm:$0x7]
      %s4540 = scalar_lea.vmem %s1, 16
      %v4541 = vld [vmem:[%s4540] sm:$0x3]
      %v4579 = vunpack.c.l.b16 %v4503
      %v4580 = vunpack.c.l.b16 %v4504
      %v4581 = vunpack.c.l.b16 %v4505
      %v4582 = vunpack.c.l.b16 %v4506
      %v4583 = vunpack.c.l.b16 %v4507
      %v4584 = vunpack.c.l.b16 %v4508
      %v4585 = vunpack.c.l.b16 %v4509
      %v4586 = vunpack.c.l.b16 %v4510
      %v4587 = vunpack.c.l.b16 %v4511
      %v4588 = vunpack.c.l.b16 %v4512
      %v4589 = vunpack.c.l.b16 %v4513
      %v4590 = vunpack.c.l.b16 %v4514
      %v4591 = vunpack.c.l.b16 %v4515
      %v4592 = vunpack.c.l.b16 %v4516
      %v4593 = vunpack.c.l.b16 %v4517
      %v4594 = vunpack.c.l.b16 %v4518
      %v4595 = vunpack.c.l.b16 %v4519
      %v4596 = vunpack.c.l.b16 %v4520
      %v4597 = vunpack.c.l.b16 %v4521
      %v4598 = vunpack.c.l.b16 %v4522
      %v4599 = vunpack.c.l.b16 %v4523
      %v4600 = vunpack.c.l.b16 %v4524
      %v4601 = vunpack.c.l.b16 %v4525
      %v4602 = vunpack.c.l.b16 %v4526
      %v4603 = vunpack.c.l.b16 %v4527
      %v4604 = vunpack.c.l.b16 %v4528
      %v4605 = vunpack.c.l.b16 %v4529
      %v4606 = vunpack.c.l.b16 %v4530
      %v4607 = vunpack.c.l.b16 %v4531
      %v4608 = vunpack.c.l.b16 %v4532
      %v4609 = vunpack.c.l.b16 %v4533
      %v4610 = vunpack.c.l.b16 %v4534
      %v4611 = vunpack.c.l.b16 %v4535
      %v4612 = vunpack.c.l.b16 %v4536
      %v4613 = vunpack.c.l.b16 %v4537
      %v4614 = vunpack.c.l.b16 %v4538
      %v4615 = vunpack.c.l.b16 %v4539
      %v4616 = vpack.c.b16 %v4580, %v4579
      %v4617 = vpack.c.b16 %v4582, %v4581
      %v4618 = vpack.c.b16 %v4584, %v4583
      %v4619 = vpack.c.b16 %v4586, %v4585
      %v4620 = vpack.c.b16 %v4588, %v4587
      %v4621 = vpack.c.b16 %v4590, %v4589
      %v4622 = vpack.c.b16 %v4592, %v4591
      %v4623 = vpack.c.b16 %v4594, %v4593
      %v4624 = vpack.c.b16 %v4596, %v4595
      %v4625 = vpack.c.b16 %v4598, %v4597
      %v4626 = vpack.c.b16 %v4600, %v4599
      %v4627 = vpack.c.b16 %v4602, %v4601
      %v4628 = vpack.c.b16 %v4604, %v4603
      %v4629 = vpack.c.b16 %v4606, %v4605
      %v4630 = vpack.c.b16 %v4608, %v4607
      %v4631 = vpack.c.b16 %v4610, %v4609
      %v4632 = vpack.c.b16 %v4612, %v4611
      %v4633 = vpack.c.b16 %v4614, %v4613
      %v4634 = vpack.c.b16 %v4615, %v4615
      %vm4635 = vcmask 1044480
      %v4636 = vrot.slane %v4616, 3
      %v4637 = vrot.slane %v4617, 3
      %v4638 = vsel %vm4635, %v4636, %v4637
      %v4639 = vrot.slane %v4618, 3
      %v4640 = vsel %vm4635, %v4637, %v4639
      %v4641 = vrot.slane %v4619, 3
      %v4642 = vsel %vm4635, %v4639, %v4641
      %v4643 = vrot.slane %v4620, 3
      %v4644 = vsel %vm4635, %v4641, %v4643
      %v4645 = vrot.slane %v4621, 3
      %v4646 = vsel %vm4635, %v4643, %v4645
      %v4647 = vrot.slane %v4622, 3
      %v4648 = vsel %vm4635, %v4645, %v4647
      %v4649 = vrot.slane %v4623, 3
      %v4650 = vsel %vm4635, %v4647, %v4649
      %v4651 = vrot.slane %v4624, 3
      %v4652 = vsel %vm4635, %v4649, %v4651
      %v4653 = vrot.slane %v4625, 3
      %v4654 = vsel %vm4635, %v4651, %v4653
      %v4655 = vrot.slane %v4626, 3
      %v4656 = vsel %vm4635, %v4653, %v4655
      %v4657 = vrot.slane %v4627, 3
      %v4658 = vsel %vm4635, %v4655, %v4657
      %v4659 = vrot.slane %v4628, 3
      %v4660 = vsel %vm4635, %v4657, %v4659
      %v4661 = vrot.slane %v4629, 3
      %v4662 = vsel %vm4635, %v4659, %v4661
      %v4663 = vrot.slane %v4630, 3
      %v4664 = vsel %vm4635, %v4661, %v4663
      %v4665 = vrot.slane %v4631, 3
      %v4666 = vsel %vm4635, %v4663, %v4665
      %v4667 = vrot.slane %v4632, 3
      %v4668 = vsel %vm4635, %v4665, %v4667
      %v4669 = vrot.slane %v4633, 3
      %v4670 = vsel %vm4635, %v4667, %v4669
      %v4671 = vrot.slane %v4634, 3
      %v4672 = vsel %vm4635, %v4669, %v4671
      %v4674 = vsel %vm272, %v4638, 0
      %v4677 = vsel %vm272, %v4640, 0
      %v4680 = vsel %vm272, %v4642, 0
      %v4683 = vsel %vm272, %v4644, 0
      %v4686 = vsel %vm272, %v4646, 0
      %v4689 = vsel %vm272, %v4648, 0
      %v4692 = vsel %vm272, %v4650, 0
      %v4695 = vsel %vm272, %v4652, 0
      %v4698 = vsel %vm272, %v4654, 0
      %v4701 = vsel %vm272, %v4656, 0
      %v4704 = vsel %vm272, %v4658, 0
      %v4707 = vsel %vm272, %v4660, 0
      %v4710 = vsel %vm272, %v4662, 0
      %v4713 = vsel %vm272, %v4664, 0
      %v4716 = vsel %vm272, %v4666, 0
      %v4719 = vsel %vm272, %v4668, 0
      %v4722 = vsel %vm272, %v4670, 0
      %v4725 = vsel %vm272, %v4672, 0
      %v4728 = vsel %vm327, %v4541, 0
      %4730 = vmatprep.subr.bf16.mxu0 0
      %4731 = vmatpush1.bf16.msra.mxu0 %v4728
      %4732 = vmatprep.subr.bf16.mxu0 0
      %4733 = vmatpush1.bf16.msra.mxu0 0
      %4734 = vmatprep.subr.bf16.mxu0 0
      %4735 = vmatpush1.bf16.msra.mxu0 0
      %4736 = vmatprep.subr.bf16.mxu0 0
      %4737 = vmatpush1.bf16.msra.mxu0 0
      %4738 = vmatprep.subr.bf16.mxu0 0
      %4739 = vmatpush1.bf16.msra.mxu0 0
      %4740 = vmatprep.subr.bf16.mxu0 0
      %4741 = vmatpush1.bf16.msra.mxu0 0
      %4742 = vmatprep.subr.bf16.mxu0 0
      %4743 = vmatpush1.bf16.msra.mxu0 0
      %4744 = vmatprep.subr.bf16.mxu0 0
      %4745 = vmatpush1.bf16.msra.mxu0 0
      %4746 = vmatprep.subr.bf16.mxu0 0
      %4747 = vmatpush1.bf16.msra.mxu0 0
      %4748 = vmatprep.subr.bf16.mxu0 0
      %4749 = vmatpush1.bf16.msra.mxu0 0
      %4750 = vmatprep.subr.bf16.mxu0 0
      %4751 = vmatpush1.bf16.msra.mxu0 0
      %4752 = vmatprep.subr.bf16.mxu0 0
      %4753 = vmatpush1.bf16.msra.mxu0 0
      %4754 = vmatprep.subr.bf16.mxu0 0
      %4755 = vmatpush1.bf16.msra.mxu0 0
      %4756 = vmatprep.subr.bf16.mxu0 0
      %4757 = vmatpush1.bf16.msra.mxu0 0
      %4758 = vmatprep.subr.bf16.mxu0 0
      %4759 = vmatpush1.bf16.msra.mxu0 0
      %4760 = vmatprep.subr.bf16.mxu0 0
      %4761 = vmatpush1.bf16.msra.mxu0 0
      %4762 = vmatprep.mubr.bf16.mxu0 0
      %4763 = vmatmul.mubr.bf16.gmra.mrb[0].mxu0 %v4674
      %v4764 = vpop.f32.mrb[0].mxu0
      %v4765 = vadd.f32 0.0, %v4764
      %v4766 = vpop.f32.mrb[0].mxu0
      %v4767 = vpop.f32.mrb[0].mxu0
      %v4768 = vadd.f32 0.0, %v4767
      %v4769 = vpop.f32.mrb[0].mxu0
      %4770 = vmatprep.mubr.bf16.mxu0 0
      %4771 = vmatmul.mubr.bf16.gmra.mrb[0].mxu0 %v4677
      %v4772 = vpop.f32.mrb[0].mxu0
      %v4773 = vadd.f32 0.0, %v4772
      %v4774 = vpop.f32.mrb[0].mxu0
      %v4775 = vpop.f32.mrb[0].mxu0
      %v4776 = vadd.f32 0.0, %v4775
      %v4777 = vpop.f32.mrb[0].mxu0
      %4778 = vmatprep.mubr.bf16.mxu0 0
      %4779 = vmatmul.mubr.bf16.gmra.mrb[0].mxu0 %v4680
      %v4780 = vpop.f32.mrb[0].mxu0
      %v4781 = vadd.f32 0.0, %v4780
      %v4782 = vpop.f32.mrb[0].mxu0
      %v4783 = vpop.f32.mrb[0].mxu0
      %v4784 = vadd.f32 0.0, %v4783
      %v4785 = vpop.f32.mrb[0].mxu0
      %4786 = vmatprep.mubr.bf16.mxu0 0
      %4787 = vmatmul.mubr.bf16.gmra.mrb[0].mxu0 %v4683
      %v4788 = vpop.f32.mrb[0].mxu0
      %v4789 = vadd.f32 0.0, %v4788
      %v4790 = vpop.f32.mrb[0].mxu0
      %v4791 = vpop.f32.mrb[0].mxu0
      %v4792 = vadd.f32 0.0, %v4791
      %v4793 = vpop.f32.mrb[0].mxu0
      %4794 = vmatprep.mubr.bf16.mxu0 0
      %4795 = vmatmul.mubr.bf16.gmra.mrb[0].mxu0 %v4686
      %v4796 = vpop.f32.mrb[0].mxu0
      %v4797 = vadd.f32 0.0, %v4796
      %v4798 = vpop.f32.mrb[0].mxu0
      %v4799 = vpop.f32.mrb[0].mxu0
      %v4800 = vadd.f32 0.0, %v4799
      %v4801 = vpop.f32.mrb[0].mxu0
      %4802 = vmatprep.mubr.bf16.mxu0 0
      %4803 = vmatmul.mubr.bf16.gmra.mrb[0].mxu0 %v4689
      %v4804 = vpop.f32.mrb[0].mxu0
      %v4805 = vadd.f32 0.0, %v4804
      %v4806 = vpop.f32.mrb[0].mxu0
      %v4807 = vpop.f32.mrb[0].mxu0
      %v4808 = vadd.f32 0.0, %v4807
      %v4809 = vpop.f32.mrb[0].mxu0
      %4810 = vmatprep.mubr.bf16.mxu0 0
      %4811 = vmatmul.mubr.bf16.gmra.mrb[0].mxu0 %v4692
      %v4812 = vpop.f32.mrb[0].mxu0
      %v4813 = vadd.f32 0.0, %v4812
      %v4814 = vpop.f32.mrb[0].mxu0
      %v4815 = vpop.f32.mrb[0].mxu0
      %v4816 = vadd.f32 0.0, %v4815
      %v4817 = vpop.f32.mrb[0].mxu0
      %4818 = vmatprep.mubr.bf16.mxu0 0
      %4819 = vmatmul.mubr.bf16.gmra.mrb[0].mxu0 %v4695
      %v4820 = vpop.f32.mrb[0].mxu0
      %v4821 = vadd.f32 0.0, %v4820
      %v4822 = vpop.f32.mrb[0].mxu0
      %v4823 = vpop.f32.mrb[0].mxu0
      %v4824 = vadd.f32 0.0, %v4823
      %v4825 = vpop.f32.mrb[0].mxu0
      %4826 = vmatprep.mubr.bf16.mxu0 0
      %4827 = vmatmul.mubr.bf16.gmra.mrb[0].mxu0 %v4698
      %v4828 = vpop.f32.mrb[0].mxu0
      %v4829 = vadd.f32 0.0, %v4828
      %v4830 = vpop.f32.mrb[0].mxu0
      %v4831 = vpop.f32.mrb[0].mxu0
      %v4832 = vadd.f32 0.0, %v4831
      %v4833 = vpop.f32.mrb[0].mxu0
      %4834 = vmatprep.mubr.bf16.mxu0 0
      %4835 = vmatmul.mubr.bf16.gmra.mrb[0].mxu0 %v4701
      %v4836 = vpop.f32.mrb[0].mxu0
      %v4837 = vadd.f32 0.0, %v4836
      %v4838 = vpop.f32.mrb[0].mxu0
      %v4839 = vpop.f32.mrb[0].mxu0
      %v4840 = vadd.f32 0.0, %v4839
      %v4841 = vpop.f32.mrb[0].mxu0
      %4842 = vmatprep.mubr.bf16.mxu0 0
      %4843 = vmatmul.mubr.bf16.gmra.mrb[0].mxu0 %v4704
      %v4844 = vpop.f32.mrb[0].mxu0
      %v4845 = vadd.f32 0.0, %v4844
      %v4846 = vpop.f32.mrb[0].mxu0
      %v4847 = vpop.f32.mrb[0].mxu0
      %v4848 = vadd.f32 0.0, %v4847
      %v4849 = vpop.f32.mrb[0].mxu0
      %4850 = vmatprep.mubr.bf16.mxu0 0
      %4851 = vmatmul.mubr.bf16.gmra.mrb[0].mxu0 %v4707
      %v4852 = vpop.f32.mrb[0].mxu0
      %v4853 = vadd.f32 0.0, %v4852
      %v4854 = vpop.f32.mrb[0].mxu0
      %v4855 = vpop.f32.mrb[0].mxu0
      %v4856 = vadd.f32 0.0, %v4855
      %v4857 = vpop.f32.mrb[0].mxu0
      %4858 = vmatprep.mubr.bf16.mxu0 0
      %4859 = vmatmul.mubr.bf16.gmra.mrb[0].mxu0 %v4710
      %v4860 = vpop.f32.mrb[0].mxu0
      %v4861 = vadd.f32 0.0, %v4860
      %v4862 = vpop.f32.mrb[0].mxu0
      %v4863 = vpop.f32.mrb[0].mxu0
      %v4864 = vadd.f32 0.0, %v4863
      %v4865 = vpop.f32.mrb[0].mxu0
      %4866 = vmatprep.mubr.bf16.mxu0 0
      %4867 = vmatmul.mubr.bf16.gmra.mrb[0].mxu0 %v4713
      %v4868 = vpop.f32.mrb[0].mxu0
      %v4869 = vadd.f32 0.0, %v4868
      %v4870 = vpop.f32.mrb[0].mxu0
      %v4871 = vpop.f32.mrb[0].mxu0
      %v4872 = vadd.f32 0.0, %v4871
      %v4873 = vpop.f32.mrb[0].mxu0
      %4874 = vmatprep.mubr.bf16.mxu0 0
      %4875 = vmatmul.mubr.bf16.gmra.mrb[0].mxu0 %v4716
      %v4876 = vpop.f32.mrb[0].mxu0
      %v4877 = vadd.f32 0.0, %v4876
      %v4878 = vpop.f32.mrb[0].mxu0
      %v4879 = vpop.f32.mrb[0].mxu0
      %v4880 = vadd.f32 0.0, %v4879
      %v4881 = vpop.f32.mrb[0].mxu0
      %4882 = vmatprep.mubr.bf16.mxu0 0
      %4883 = vmatmul.mubr.bf16.gmra.mrb[0].mxu0 %v4719
      %v4884 = vpop.f32.mrb[0].mxu0
      %v4885 = vadd.f32 0.0, %v4884
      %v4886 = vpop.f32.mrb[0].mxu0
      %v4887 = vpop.f32.mrb[0].mxu0
      %v4888 = vadd.f32 0.0, %v4887
      %v4889 = vpop.f32.mrb[0].mxu0
      %4890 = vmatprep.mubr.bf16.mxu0 0
      %4891 = vmatmul.mubr.bf16.gmra.mrb[0].mxu0 %v4722
      %v4892 = vpop.f32.mrb[0].mxu0
      %v4893 = vadd.f32 0.0, %v4892
      %v4894 = vpop.f32.mrb[0].mxu0
      %v4895 = vpop.f32.mrb[0].mxu0
      %v4896 = vadd.f32 0.0, %v4895
      %v4897 = vpop.f32.mrb[0].mxu0
      %4898 = vmatprep.mubr.bf16.mxu0 0
      %4899 = vmatmul.mubr.bf16.gmra.mrb[0].mxu0 %v4725
      %v4900 = vpop.f32.mrb[0].mxu0
      %v4901 = vadd.f32 0.0, %v4900
      %v4902 = vpop.f32.mrb[0].mxu0
      %v4903 = vpop.f32.mrb[0].mxu0
      %v4904 = vadd.f32 0.0, %v4903
      %v4905 = vpop.f32.mrb[0].mxu0
      %4906 = vdwg.mxu0
      %v4907 = vld [vmem:[#allocation2] sm:$0xff]
      %v4908 = vld [vmem:[#allocation2 + $0x8] sm:$0xff]
      %v4909 = vld [vmem:[#allocation2 + $0x10] sm:$0xff]
      %v4910 = vld [vmem:[#allocation2 + $0x18] sm:$0xff]
      %v4911 = vld [vmem:[#allocation2 + $0x20] sm:$0xff]
      %v4912 = vld [vmem:[#allocation2 + $0x28] sm:$0xff]
      %v4913 = vld [vmem:[#allocation2 + $0x30] sm:$0xff]
      %v4914 = vld [vmem:[#allocation2 + $0x38] sm:$0xff]
      %v4915 = vld [vmem:[#allocation2 + $0x40] sm:$0xff]
      %v4916 = vld [vmem:[#allocation2 + $0x48] sm:$0xff]
      %v4917 = vld [vmem:[#allocation2 + $0x50] sm:$0xff]
      %v4918 = vld [vmem:[#allocation2 + $0x58] sm:$0xff]
      %v4919 = vld [vmem:[#allocation2 + $0x60] sm:$0xff]
      %v4920 = vld [vmem:[#allocation2 + $0x68] sm:$0xff]
      %v4921 = vld [vmem:[#allocation2 + $0x70] sm:$0xff]
      %v4922 = vld [vmem:[#allocation2 + $0x78] sm:$0xff]
      %v4923 = vld [vmem:[#allocation2 + $0x80] sm:$0xff]
      %v4924 = vld [vmem:[#allocation2 + $0x88] sm:$0xff]
      %v4925 = vld [vmem:[#allocation2 + $0x90] sm:$0xff]
      %v4926 = vld [vmem:[#allocation2 + $0x98] sm:$0xff]
      %v4927 = vld [vmem:[#allocation2 + $0xa0] sm:$0xff]
      %v4928 = vld [vmem:[#allocation2 + $0xa8] sm:$0xff]
      %v4929 = vld [vmem:[#allocation2 + $0xb0] sm:$0xff]
      %v4930 = vld [vmem:[#allocation2 + $0xb8] sm:$0xff]
      %v4931 = vld [vmem:[#allocation2 + $0xc0] sm:$0xff]
      %v4932 = vld [vmem:[#allocation2 + $0xc8] sm:$0xff]
      %v4933 = vld [vmem:[#allocation2 + $0xd0] sm:$0xff]
      %v4934 = vld [vmem:[#allocation2 + $0xd8] sm:$0xff]
      %v4935 = vld [vmem:[#allocation2 + $0xe0] sm:$0xff]
      %v4936 = vld [vmem:[#allocation2 + $0xe8] sm:$0xff]
      %v4937 = vld [vmem:[#allocation2 + $0xf0] sm:$0xff]
      %v4938 = vld [vmem:[#allocation2 + $0xf8] sm:$0xff]
      %v4939 = vld [vmem:[#allocation2 + $0x100] sm:$0xff]
      %v4940 = vld [vmem:[#allocation2 + $0x108] sm:$0xff]
      %v4941 = vld [vmem:[#allocation2 + $0x110] sm:$0xff]
      %v4942 = vld [vmem:[#allocation2 + $0x118] sm:$0xff]
      %v4943 = vadd.f32 %v4907, %v4765
      %v4944 = vadd.f32 %v4908, %v4768
      %v4945 = vadd.f32 %v4909, %v4773
      %v4946 = vadd.f32 %v4910, %v4776
      %v4947 = vadd.f32 %v4911, %v4781
      %v4948 = vadd.f32 %v4912, %v4784
      %v4949 = vadd.f32 %v4913, %v4789
      %v4950 = vadd.f32 %v4914, %v4792
      %v4951 = vadd.f32 %v4915, %v4797
      %v4952 = vadd.f32 %v4916, %v4800
      %v4953 = vadd.f32 %v4917, %v4805
      %v4954 = vadd.f32 %v4918, %v4808
      %v4955 = vadd.f32 %v4919, %v4813
      %v4956 = vadd.f32 %v4920, %v4816
      %v4957 = vadd.f32 %v4921, %v4821
      %v4958 = vadd.f32 %v4922, %v4824
      %v4959 = vadd.f32 %v4923, %v4829
      %v4960 = vadd.f32 %v4924, %v4832
      %v4961 = vadd.f32 %v4925, %v4837
      %v4962 = vadd.f32 %v4926, %v4840
      %v4963 = vadd.f32 %v4927, %v4845
      %v4964 = vadd.f32 %v4928, %v4848
      %v4965 = vadd.f32 %v4929, %v4853
      %v4966 = vadd.f32 %v4930, %v4856
      %v4967 = vadd.f32 %v4931, %v4861
      %v4968 = vadd.f32 %v4932, %v4864
      %v4969 = vadd.f32 %v4933, %v4869
      %v4970 = vadd.f32 %v4934, %v4872
      %v4971 = vadd.f32 %v4935, %v4877
      %v4972 = vadd.f32 %v4936, %v4880
      %v4973 = vadd.f32 %v4937, %v4885
      %v4974 = vadd.f32 %v4938, %v4888
      %v4975 = vadd.f32 %v4939, %v4893
      %v4976 = vadd.f32 %v4940, %v4896
      %v4977 = vadd.f32 %v4941, %v4901
      %v4978 = vadd.f32 %v4942, %v4904
      %4979 = vst [vmem:[#allocation2] sm:$0xff] %v4943
      %4980 = vst [vmem:[#allocation2 + $0x8] sm:$0xff] %v4944
      %4981 = vst [vmem:[#allocation2 + $0x10] sm:$0xff] %v4945
      %4982 = vst [vmem:[#allocation2 + $0x18] sm:$0xff] %v4946
      %4983 = vst [vmem:[#allocation2 + $0x20] sm:$0xff] %v4947
      %4984 = vst [vmem:[#allocation2 + $0x28] sm:$0xff] %v4948
      %4985 = vst [vmem:[#allocation2 + $0x30] sm:$0xff] %v4949
      %4986 = vst [vmem:[#allocation2 + $0x38] sm:$0xff] %v4950
      %4987 = vst [vmem:[#allocation2 + $0x40] sm:$0xff] %v4951
      %4988 = vst [vmem:[#allocation2 + $0x48] sm:$0xff] %v4952
      %4989 = vst [vmem:[#allocation2 + $0x50] sm:$0xff] %v4953
      %4990 = vst [vmem:[#allocation2 + $0x58] sm:$0xff] %v4954
      %4991 = vst [vmem:[#allocation2 + $0x60] sm:$0xff] %v4955
      %4992 = vst [vmem:[#allocation2 + $0x68] sm:$0xff] %v4956
      %4993 = vst [vmem:[#allocation2 + $0x70] sm:$0xff] %v4957
      %4994 = vst [vmem:[#allocation2 + $0x78] sm:$0xff] %v4958
      %4995 = vst [vmem:[#allocation2 + $0x80] sm:$0xff] %v4959
      %4996 = vst [vmem:[#allocation2 + $0x88] sm:$0xff] %v4960
      %4997 = vst [vmem:[#allocation2 + $0x90] sm:$0xff] %v4961
      %4998 = vst [vmem:[#allocation2 + $0x98] sm:$0xff] %v4962
      %4999 = vst [vmem:[#allocation2 + $0xa0] sm:$0xff] %v4963
      %5000 = vst [vmem:[#allocation2 + $0xa8] sm:$0xff] %v4964
      %5001 = vst [vmem:[#allocation2 + $0xb0] sm:$0xff] %v4965
      %5002 = vst [vmem:[#allocation2 + $0xb8] sm:$0xff] %v4966
      %5003 = vst [vmem:[#allocation2 + $0xc0] sm:$0xff] %v4967
      %5004 = vst [vmem:[#allocation2 + $0xc8] sm:$0xff] %v4968
      %5005 = vst [vmem:[#allocation2 + $0xd0] sm:$0xff] %v4969
      %5006 = vst [vmem:[#allocation2 + $0xd8] sm:$0xff] %v4970
      %5007 = vst [vmem:[#allocation2 + $0xe0] sm:$0xff] %v4971
      %5008 = vst [vmem:[#allocation2 + $0xe8] sm:$0xff] %v4972
      %5009 = vst [vmem:[#allocation2 + $0xf0] sm:$0xff] %v4973
      %5010 = vst [vmem:[#allocation2 + $0xf8] sm:$0xff] %v4974
      %5011 = vst [vmem:[#allocation2 + $0x100] sm:$0xff] %v4975
      %5012 = vst [vmem:[#allocation2 + $0x108] sm:$0xff] %v4976
      %5013 = vst [vmem:[#allocation2 + $0x110] sm:$0xff] %v4977
      %5014 = vst [vmem:[#allocation2 + $0x118] sm:$0xff] %v4978
      %v5015 = vld [vmem:[#allocation2] sm:$0xff]
      %v5016 = vld [vmem:[#allocation2 + $0x8] sm:$0xff]
      %v5017 = vld [vmem:[#allocation2 + $0x10] sm:$0xff]
      %v5018 = vld [vmem:[#allocation2 + $0x18] sm:$0xff]
      %v5019 = vld [vmem:[#allocation2 + $0x20] sm:$0xff]
      %v5020 = vld [vmem:[#allocation2 + $0x28] sm:$0xff]
      %v5021 = vld [vmem:[#allocation2 + $0x30] sm:$0xff]
      %v5022 = vld [vmem:[#allocation2 + $0x38] sm:$0xff]
      %v5023 = vld [vmem:[#allocation2 + $0x40] sm:$0xff]
      %v5024 = vld [vmem:[#allocation2 + $0x48] sm:$0xff]
      %v5025 = vld [vmem:[#allocation2 + $0x50] sm:$0xff]
      %v5026 = vld [vmem:[#allocation2 + $0x58] sm:$0xff]
      %v5027 = vld [vmem:[#allocation2 + $0x60] sm:$0xff]
      %v5028 = vld [vmem:[#allocation2 + $0x68] sm:$0xff]
      %v5029 = vld [vmem:[#allocation2 + $0x70] sm:$0xff]
      %v5030 = vld [vmem:[#allocation2 + $0x78] sm:$0xff]
      %v5031 = vld [vmem:[#allocation2 + $0x80] sm:$0xff]
      %v5032 = vld [vmem:[#allocation2 + $0x88] sm:$0xff]
      %v5033 = vld [vmem:[#allocation2 + $0x90] sm:$0xff]
      %v5034 = vld [vmem:[#allocation2 + $0x98] sm:$0xff]
      %v5035 = vld [vmem:[#allocation2 + $0xa0] sm:$0xff]
      %v5036 = vld [vmem:[#allocation2 + $0xa8] sm:$0xff]
      %v5037 = vld [vmem:[#allocation2 + $0xb0] sm:$0xff]
      %v5038 = vld [vmem:[#allocation2 + $0xb8] sm:$0xff]
      %v5039 = vld [vmem:[#allocation2 + $0xc0] sm:$0xff]
      %v5040 = vld [vmem:[#allocation2 + $0xc8] sm:$0xff]
      %v5041 = vld [vmem:[#allocation2 + $0xd0] sm:$0xff]
      %v5042 = vld [vmem:[#allocation2 + $0xd8] sm:$0xff]
      %v5043 = vld [vmem:[#allocation2 + $0xe0] sm:$0xff]
      %v5044 = vld [vmem:[#allocation2 + $0xe8] sm:$0xff]
      %v5045 = vld [vmem:[#allocation2 + $0xf0] sm:$0xff]
      %v5046 = vld [vmem:[#allocation2 + $0xf8] sm:$0xff]
      %v5047 = vld [vmem:[#allocation2 + $0x100] sm:$0xff]
      %v5048 = vld [vmem:[#allocation2 + $0x108] sm:$0xff]
      %v5049 = vld [vmem:[#allocation2 + $0x110] sm:$0xff]
      %v5050 = vld [vmem:[#allocation2 + $0x118] sm:$0xff]
      %v5051 = vlaneseq
      %v5052 = vshrl.u32 %v5051, 7
      %v5053 = vadd.s32 %v5052, 8
      %v5054 = vadd.s32 %v5052, 16
      %v5055 = vadd.s32 %v5052, 24
      %v5056 = vadd.s32 %v5052, 32
      %v5057 = vadd.s32 %v5052, 40
      %v5058 = vadd.s32 %v5052, 48
      %v5059 = vadd.s32 %v5052, 56
      %v5060 = vadd.s32 %v5052, 64
      %v5061 = vadd.s32 %v5052, 72
      %v5062 = vadd.s32 %v5052, 80
      %v5063 = vadd.s32 %v5052, 88
      %v5064 = vadd.s32 %v5052, 96
      %v5065 = vadd.s32 %v5052, 104
      %v5066 = vadd.s32 %v5052, 112
      %v5067 = vadd.s32 %v5052, 120
      %v5068 = vadd.s32 %v5052, 128
      %v5069 = vadd.s32 %v5052, 136
      %v5070 = vadd.s32 %v5052, 144
      %v5071 = vadd.s32 %v5052, 152
      %v5072 = vadd.s32 %v5052, 160
      %v5073 = vadd.s32 %v5052, 168
      %v5074 = vadd.s32 %v5052, 176
      %v5075 = vadd.s32 %v5052, 184
      %v5076 = vadd.s32 %v5052, 192
      %v5077 = vadd.s32 %v5052, 200
      %v5078 = vadd.s32 %v5052, 208
      %v5079 = vadd.s32 %v5052, 216
      %v5080 = vadd.s32 %v5052, 224
      %v5081 = vadd.s32 %v5052, 232
      %v5082 = vadd.s32 %v5052, 240
      %v5083 = vadd.s32 %v5052, 248
      %v5084 = vadd.s32 %v5052, 256
      %v5085 = vadd.s32 %v5052, 264
      %v5086 = vadd.s32 %v5052, 272
      %v5087 = vadd.s32 %v5052, 280
      %vm5088 = vcmp.lt.s32.totalorder %v5052, 0
      %v5089 = vsub.s32 0, %v5052
      %v5090 = vsel %vm5088, %v5089, %v5052
      %v5091 = vmul.u32.u64.compose %v5090, 3817748708
      %v5092 = vextract.low.u32 %v5091
      %v5093 = vextract.high.u32 %v5091
      %v5094 = vshrl.u32 %v5093, 4
      %v5095 = vmul.u32 %v5094, 18
      %v5096 = vsub.s32 %v5090, %v5095
      %v5097 = vsub.s32 0, %v5096
      %v5098 = vsel %vm5088, %v5097, %v5096
      %vm5099 = vcmp.lt.s32.totalorder %v5053, 0
      %v5100 = vsub.s32 0, %v5053
      %v5101 = vsel %vm5099, %v5100, %v5053
      %v5102 = vmul.u32.u64.compose %v5101, 3817748708
      %v5103 = vextract.low.u32 %v5102
      %v5104 = vextract.high.u32 %v5102
      %v5105 = vshrl.u32 %v5104, 4
      %v5106 = vmul.u32 %v5105, 18
      %v5107 = vsub.s32 %v5101, %v5106
      %v5108 = vsub.s32 0, %v5107
      %v5109 = vsel %vm5099, %v5108, %v5107
      %vm5110 = vcmp.lt.s32.totalorder %v5054, 0
      %v5111 = vsub.s32 0, %v5054
      %v5112 = vsel %vm5110, %v5111, %v5054
      %v5113 = vmul.u32.u64.compose %v5112, 3817748708
      %v5114 = vextract.low.u32 %v5113
      %v5115 = vextract.high.u32 %v5113
      %v5116 = vshrl.u32 %v5115, 4
      %v5117 = vmul.u32 %v5116, 18
      %v5118 = vsub.s32 %v5112, %v5117
      %v5119 = vsub.s32 0, %v5118
      %v5120 = vsel %vm5110, %v5119, %v5118
      %vm5121 = vcmp.lt.s32.totalorder %v5055, 0
      %v5122 = vsub.s32 0, %v5055
      %v5123 = vsel %vm5121, %v5122, %v5055
      %v5124 = vmul.u32.u64.compose %v5123, 3817748708
      %v5125 = vextract.low.u32 %v5124
      %v5126 = vextract.high.u32 %v5124
      %v5127 = vshrl.u32 %v5126, 4
      %v5128 = vmul.u32 %v5127, 18
      %v5129 = vsub.s32 %v5123, %v5128
      %v5130 = vsub.s32 0, %v5129
      %v5131 = vsel %vm5121, %v5130, %v5129
      %vm5132 = vcmp.lt.s32.totalorder %v5056, 0
      %v5133 = vsub.s32 0, %v5056
      %v5134 = vsel %vm5132, %v5133, %v5056
      %v5135 = vmul.u32.u64.compose %v5134, 3817748708
      %v5136 = vextract.low.u32 %v5135
      %v5137 = vextract.high.u32 %v5135
      %v5138 = vshrl.u32 %v5137, 4
      %v5139 = vmul.u32 %v5138, 18
      %v5140 = vsub.s32 %v5134, %v5139
      %v5141 = vsub.s32 0, %v5140
      %v5142 = vsel %vm5132, %v5141, %v5140
      %vm5143 = vcmp.lt.s32.totalorder %v5057, 0
      %v5144 = vsub.s32 0, %v5057
      %v5145 = vsel %vm5143, %v5144, %v5057
      %v5146 = vmul.u32.u64.compose %v5145, 3817748708
      %v5147 = vextract.low.u32 %v5146
      %v5148 = vextract.high.u32 %v5146
      %v5149 = vshrl.u32 %v5148, 4
      %v5150 = vmul.u32 %v5149, 18
      %v5151 = vsub.s32 %v5145, %v5150
      %v5152 = vsub.s32 0, %v5151
      %v5153 = vsel %vm5143, %v5152, %v5151
      %vm5154 = vcmp.lt.s32.totalorder %v5058, 0
      %v5155 = vsub.s32 0, %v5058
      %v5156 = vsel %vm5154, %v5155, %v5058
      %v5157 = vmul.u32.u64.compose %v5156, 3817748708
      %v5158 = vextract.low.u32 %v5157
      %v5159 = vextract.high.u32 %v5157
      %v5160 = vshrl.u32 %v5159, 4
      %v5161 = vmul.u32 %v5160, 18
      %v5162 = vsub.s32 %v5156, %v5161
      %v5163 = vsub.s32 0, %v5162
      %v5164 = vsel %vm5154, %v5163, %v5162
      %vm5165 = vcmp.lt.s32.totalorder %v5059, 0
      %v5166 = vsub.s32 0, %v5059
      %v5167 = vsel %vm5165, %v5166, %v5059
      %v5168 = vmul.u32.u64.compose %v5167, 3817748708
      %v5169 = vextract.low.u32 %v5168
      %v5170 = vextract.high.u32 %v5168
      %v5171 = vshrl.u32 %v5170, 4
      %v5172 = vmul.u32 %v5171, 18
      %v5173 = vsub.s32 %v5167, %v5172
      %v5174 = vsub.s32 0, %v5173
      %v5175 = vsel %vm5165, %v5174, %v5173
      %vm5176 = vcmp.lt.s32.totalorder %v5060, 0
      %v5177 = vsub.s32 0, %v5060
      %v5178 = vsel %vm5176, %v5177, %v5060
      %v5179 = vmul.u32.u64.compose %v5178, 3817748708
      %v5180 = vextract.low.u32 %v5179
      %v5181 = vextract.high.u32 %v5179
      %v5182 = vshrl.u32 %v5181, 4
      %v5183 = vmul.u32 %v5182, 18
      %v5184 = vsub.s32 %v5178, %v5183
      %v5185 = vsub.s32 0, %v5184
      %v5186 = vsel %vm5176, %v5185, %v5184
      %vm5187 = vcmp.lt.s32.totalorder %v5061, 0
      %v5188 = vsub.s32 0, %v5061
      %v5189 = vsel %vm5187, %v5188, %v5061
      %v5190 = vmul.u32.u64.compose %v5189, 3817748708
      %v5191 = vextract.low.u32 %v5190
      %v5192 = vextract.high.u32 %v5190
      %v5193 = vshrl.u32 %v5192, 4
      %v5194 = vmul.u32 %v5193, 18
      %v5195 = vsub.s32 %v5189, %v5194
      %v5196 = vsub.s32 0, %v5195
      %v5197 = vsel %vm5187, %v5196, %v5195
      %vm5198 = vcmp.lt.s32.totalorder %v5062, 0
      %v5199 = vsub.s32 0, %v5062
      %v5200 = vsel %vm5198, %v5199, %v5062
      %v5201 = vmul.u32.u64.compose %v5200, 3817748708
      %v5202 = vextract.low.u32 %v5201
      %v5203 = vextract.high.u32 %v5201
      %v5204 = vshrl.u32 %v5203, 4
      %v5205 = vmul.u32 %v5204, 18
      %v5206 = vsub.s32 %v5200, %v5205
      %v5207 = vsub.s32 0, %v5206
      %v5208 = vsel %vm5198, %v5207, %v5206
      %vm5209 = vcmp.lt.s32.totalorder %v5063, 0
      %v5210 = vsub.s32 0, %v5063
      %v5211 = vsel %vm5209, %v5210, %v5063
      %v5212 = vmul.u32.u64.compose %v5211, 3817748708
      %v5213 = vextract.low.u32 %v5212
      %v5214 = vextract.high.u32 %v5212
      %v5215 = vshrl.u32 %v5214, 4
      %v5216 = vmul.u32 %v5215, 18
      %v5217 = vsub.s32 %v5211, %v5216
      %v5218 = vsub.s32 0, %v5217
      %v5219 = vsel %vm5209, %v5218, %v5217
      %vm5220 = vcmp.lt.s32.totalorder %v5064, 0
      %v5221 = vsub.s32 0, %v5064
      %v5222 = vsel %vm5220, %v5221, %v5064
      %v5223 = vmul.u32.u64.compose %v5222, 3817748708
      %v5224 = vextract.low.u32 %v5223
      %v5225 = vextract.high.u32 %v5223
      %v5226 = vshrl.u32 %v5225, 4
      %v5227 = vmul.u32 %v5226, 18
      %v5228 = vsub.s32 %v5222, %v5227
      %v5229 = vsub.s32 0, %v5228
      %v5230 = vsel %vm5220, %v5229, %v5228
      %vm5231 = vcmp.lt.s32.totalorder %v5065, 0
      %v5232 = vsub.s32 0, %v5065
      %v5233 = vsel %vm5231, %v5232, %v5065
      %v5234 = vmul.u32.u64.compose %v5233, 3817748708
      %v5235 = vextract.low.u32 %v5234
      %v5236 = vextract.high.u32 %v5234
      %v5237 = vshrl.u32 %v5236, 4
      %v5238 = vmul.u32 %v5237, 18
      %v5239 = vsub.s32 %v5233, %v5238
      %v5240 = vsub.s32 0, %v5239
      %v5241 = vsel %vm5231, %v5240, %v5239
      %vm5242 = vcmp.lt.s32.totalorder %v5066, 0
      %v5243 = vsub.s32 0, %v5066
      %v5244 = vsel %vm5242, %v5243, %v5066
      %v5245 = vmul.u32.u64.compose %v5244, 3817748708
      %v5246 = vextract.low.u32 %v5245
      %v5247 = vextract.high.u32 %v5245
      %v5248 = vshrl.u32 %v5247, 4
      %v5249 = vmul.u32 %v5248, 18
      %v5250 = vsub.s32 %v5244, %v5249
      %v5251 = vsub.s32 0, %v5250
      %v5252 = vsel %vm5242, %v5251, %v5250
      %vm5253 = vcmp.lt.s32.totalorder %v5067, 0
      %v5254 = vsub.s32 0, %v5067
      %v5255 = vsel %vm5253, %v5254, %v5067
      %v5256 = vmul.u32.u64.compose %v5255, 3817748708
      %v5257 = vextract.low.u32 %v5256
      %v5258 = vextract.high.u32 %v5256
      %v5259 = vshrl.u32 %v5258, 4
      %v5260 = vmul.u32 %v5259, 18
      %v5261 = vsub.s32 %v5255, %v5260
      %v5262 = vsub.s32 0, %v5261
      %v5263 = vsel %vm5253, %v5262, %v5261
      %vm5264 = vcmp.lt.s32.totalorder %v5068, 0
      %v5265 = vsub.s32 0, %v5068
      %v5266 = vsel %vm5264, %v5265, %v5068
      %v5267 = vmul.u32.u64.compose %v5266, 3817748708
      %v5268 = vextract.low.u32 %v5267
      %v5269 = vextract.high.u32 %v5267
      %v5270 = vshrl.u32 %v5269, 4
      %v5271 = vmul.u32 %v5270, 18
      %v5272 = vsub.s32 %v5266, %v5271
      %v5273 = vsub.s32 0, %v5272
      %v5274 = vsel %vm5264, %v5273, %v5272
      %vm5275 = vcmp.lt.s32.totalorder %v5069, 0
      %v5276 = vsub.s32 0, %v5069
      %v5277 = vsel %vm5275, %v5276, %v5069
      %v5278 = vmul.u32.u64.compose %v5277, 3817748708
      %v5279 = vextract.low.u32 %v5278
      %v5280 = vextract.high.u32 %v5278
      %v5281 = vshrl.u32 %v5280, 4
      %v5282 = vmul.u32 %v5281, 18
      %v5283 = vsub.s32 %v5277, %v5282
      %v5284 = vsub.s32 0, %v5283
      %v5285 = vsel %vm5275, %v5284, %v5283
      %vm5286 = vcmp.lt.s32.totalorder %v5070, 0
      %v5287 = vsub.s32 0, %v5070
      %v5288 = vsel %vm5286, %v5287, %v5070
      %v5289 = vmul.u32.u64.compose %v5288, 3817748708
      %v5290 = vextract.low.u32 %v5289
      %v5291 = vextract.high.u32 %v5289
      %v5292 = vshrl.u32 %v5291, 4
      %v5293 = vmul.u32 %v5292, 18
      %v5294 = vsub.s32 %v5288, %v5293
      %v5295 = vsub.s32 0, %v5294
      %v5296 = vsel %vm5286, %v5295, %v5294
      %vm5297 = vcmp.lt.s32.totalorder %v5071, 0
      %v5298 = vsub.s32 0, %v5071
      %v5299 = vsel %vm5297, %v5298, %v5071
      %v5300 = vmul.u32.u64.compose %v5299, 3817748708
      %v5301 = vextract.low.u32 %v5300
      %v5302 = vextract.high.u32 %v5300
      %v5303 = vshrl.u32 %v5302, 4
      %v5304 = vmul.u32 %v5303, 18
      %v5305 = vsub.s32 %v5299, %v5304
      %v5306 = vsub.s32 0, %v5305
      %v5307 = vsel %vm5297, %v5306, %v5305
      %vm5308 = vcmp.lt.s32.totalorder %v5072, 0
      %v5309 = vsub.s32 0, %v5072
      %v5310 = vsel %vm5308, %v5309, %v5072
      %v5311 = vmul.u32.u64.compose %v5310, 3817748708
      %v5312 = vextract.low.u32 %v5311
      %v5313 = vextract.high.u32 %v5311
      %v5314 = vshrl.u32 %v5313, 4
      %v5315 = vmul.u32 %v5314, 18
      %v5316 = vsub.s32 %v5310, %v5315
      %v5317 = vsub.s32 0, %v5316
      %v5318 = vsel %vm5308, %v5317, %v5316
      %vm5319 = vcmp.lt.s32.totalorder %v5073, 0
      %v5320 = vsub.s32 0, %v5073
      %v5321 = vsel %vm5319, %v5320, %v5073
      %v5322 = vmul.u32.u64.compose %v5321, 3817748708
      %v5323 = vextract.low.u32 %v5322
      %v5324 = vextract.high.u32 %v5322
      %v5325 = vshrl.u32 %v5324, 4
      %v5326 = vmul.u32 %v5325, 18
      %v5327 = vsub.s32 %v5321, %v5326
      %v5328 = vsub.s32 0, %v5327
      %v5329 = vsel %vm5319, %v5328, %v5327
      %vm5330 = vcmp.lt.s32.totalorder %v5074, 0
      %v5331 = vsub.s32 0, %v5074
      %v5332 = vsel %vm5330, %v5331, %v5074
      %v5333 = vmul.u32.u64.compose %v5332, 3817748708
      %v5334 = vextract.low.u32 %v5333
      %v5335 = vextract.high.u32 %v5333
      %v5336 = vshrl.u32 %v5335, 4
      %v5337 = vmul.u32 %v5336, 18
      %v5338 = vsub.s32 %v5332, %v5337
      %v5339 = vsub.s32 0, %v5338
      %v5340 = vsel %vm5330, %v5339, %v5338
      %vm5341 = vcmp.lt.s32.totalorder %v5075, 0
      %v5342 = vsub.s32 0, %v5075
      %v5343 = vsel %vm5341, %v5342, %v5075
      %v5344 = vmul.u32.u64.compose %v5343, 3817748708
      %v5345 = vextract.low.u32 %v5344
      %v5346 = vextract.high.u32 %v5344
      %v5347 = vshrl.u32 %v5346, 4
      %v5348 = vmul.u32 %v5347, 18
      %v5349 = vsub.s32 %v5343, %v5348
      %v5350 = vsub.s32 0, %v5349
      %v5351 = vsel %vm5341, %v5350, %v5349
      %vm5352 = vcmp.lt.s32.totalorder %v5076, 0
      %v5353 = vsub.s32 0, %v5076
      %v5354 = vsel %vm5352, %v5353, %v5076
      %v5355 = vmul.u32.u64.compose %v5354, 3817748708
      %v5356 = vextract.low.u32 %v5355
      %v5357 = vextract.high.u32 %v5355
      %v5358 = vshrl.u32 %v5357, 4
      %v5359 = vmul.u32 %v5358, 18
      %v5360 = vsub.s32 %v5354, %v5359
      %v5361 = vsub.s32 0, %v5360
      %v5362 = vsel %vm5352, %v5361, %v5360
      %vm5363 = vcmp.lt.s32.totalorder %v5077, 0
      %v5364 = vsub.s32 0, %v5077
      %v5365 = vsel %vm5363, %v5364, %v5077
      %v5366 = vmul.u32.u64.compose %v5365, 3817748708
      %v5367 = vextract.low.u32 %v5366
      %v5368 = vextract.high.u32 %v5366
      %v5369 = vshrl.u32 %v5368, 4
      %v5370 = vmul.u32 %v5369, 18
      %v5371 = vsub.s32 %v5365, %v5370
      %v5372 = vsub.s32 0, %v5371
      %v5373 = vsel %vm5363, %v5372, %v5371
      %vm5374 = vcmp.lt.s32.totalorder %v5078, 0
      %v5375 = vsub.s32 0, %v5078
      %v5376 = vsel %vm5374, %v5375, %v5078
      %v5377 = vmul.u32.u64.compose %v5376, 3817748708
      %v5378 = vextract.low.u32 %v5377
      %v5379 = vextract.high.u32 %v5377
      %v5380 = vshrl.u32 %v5379, 4
      %v5381 = vmul.u32 %v5380, 18
      %v5382 = vsub.s32 %v5376, %v5381
      %v5383 = vsub.s32 0, %v5382
      %v5384 = vsel %vm5374, %v5383, %v5382
      %vm5385 = vcmp.lt.s32.totalorder %v5079, 0
      %v5386 = vsub.s32 0, %v5079
      %v5387 = vsel %vm5385, %v5386, %v5079
      %v5388 = vmul.u32.u64.compose %v5387, 3817748708
      %v5389 = vextract.low.u32 %v5388
      %v5390 = vextract.high.u32 %v5388
      %v5391 = vshrl.u32 %v5390, 4
      %v5392 = vmul.u32 %v5391, 18
      %v5393 = vsub.s32 %v5387, %v5392
      %v5394 = vsub.s32 0, %v5393
      %v5395 = vsel %vm5385, %v5394, %v5393
      %vm5396 = vcmp.lt.s32.totalorder %v5080, 0
      %v5397 = vsub.s32 0, %v5080
      %v5398 = vsel %vm5396, %v5397, %v5080
      %v5399 = vmul.u32.u64.compose %v5398, 3817748708
      %v5400 = vextract.low.u32 %v5399
      %v5401 = vextract.high.u32 %v5399
      %v5402 = vshrl.u32 %v5401, 4
      %v5403 = vmul.u32 %v5402, 18
      %v5404 = vsub.s32 %v5398, %v5403
      %v5405 = vsub.s32 0, %v5404
      %v5406 = vsel %vm5396, %v5405, %v5404
      %vm5407 = vcmp.lt.s32.totalorder %v5081, 0
      %v5408 = vsub.s32 0, %v5081
      %v5409 = vsel %vm5407, %v5408, %v5081
      %v5410 = vmul.u32.u64.compose %v5409, 3817748708
      %v5411 = vextract.low.u32 %v5410
      %v5412 = vextract.high.u32 %v5410
      %v5413 = vshrl.u32 %v5412, 4
      %v5414 = vmul.u32 %v5413, 18
      %v5415 = vsub.s32 %v5409, %v5414
      %v5416 = vsub.s32 0, %v5415
      %v5417 = vsel %vm5407, %v5416, %v5415
      %vm5418 = vcmp.lt.s32.totalorder %v5082, 0
      %v5419 = vsub.s32 0, %v5082
      %v5420 = vsel %vm5418, %v5419, %v5082
      %v5421 = vmul.u32.u64.compose %v5420, 3817748708
      %v5422 = vextract.low.u32 %v5421
      %v5423 = vextract.high.u32 %v5421
      %v5424 = vshrl.u32 %v5423, 4
      %v5425 = vmul.u32 %v5424, 18
      %v5426 = vsub.s32 %v5420, %v5425
      %v5427 = vsub.s32 0, %v5426
      %v5428 = vsel %vm5418, %v5427, %v5426
      %vm5429 = vcmp.lt.s32.totalorder %v5083, 0
      %v5430 = vsub.s32 0, %v5083
      %v5431 = vsel %vm5429, %v5430, %v5083
      %v5432 = vmul.u32.u64.compose %v5431, 3817748708
      %v5433 = vextract.low.u32 %v5432
      %v5434 = vextract.high.u32 %v5432
      %v5435 = vshrl.u32 %v5434, 4
      %v5436 = vmul.u32 %v5435, 18
      %v5437 = vsub.s32 %v5431, %v5436
      %v5438 = vsub.s32 0, %v5437
      %v5439 = vsel %vm5429, %v5438, %v5437
      %vm5440 = vcmp.lt.s32.totalorder %v5084, 0
      %v5441 = vsub.s32 0, %v5084
      %v5442 = vsel %vm5440, %v5441, %v5084
      %v5443 = vmul.u32.u64.compose %v5442, 3817748708
      %v5444 = vextract.low.u32 %v5443
      %v5445 = vextract.high.u32 %v5443
      %v5446 = vshrl.u32 %v5445, 4
      %v5447 = vmul.u32 %v5446, 18
      %v5448 = vsub.s32 %v5442, %v5447
      %v5449 = vsub.s32 0, %v5448
      %v5450 = vsel %vm5440, %v5449, %v5448
      %vm5451 = vcmp.lt.s32.totalorder %v5085, 0
      %v5452 = vsub.s32 0, %v5085
      %v5453 = vsel %vm5451, %v5452, %v5085
      %v5454 = vmul.u32.u64.compose %v5453, 3817748708
      %v5455 = vextract.low.u32 %v5454
      %v5456 = vextract.high.u32 %v5454
      %v5457 = vshrl.u32 %v5456, 4
      %v5458 = vmul.u32 %v5457, 18
      %v5459 = vsub.s32 %v5453, %v5458
      %v5460 = vsub.s32 0, %v5459
      %v5461 = vsel %vm5451, %v5460, %v5459
      %vm5462 = vcmp.lt.s32.totalorder %v5086, 0
      %v5463 = vsub.s32 0, %v5086
      %v5464 = vsel %vm5462, %v5463, %v5086
      %v5465 = vmul.u32.u64.compose %v5464, 3817748708
      %v5466 = vextract.low.u32 %v5465
      %v5467 = vextract.high.u32 %v5465
      %v5468 = vshrl.u32 %v5467, 4
      %v5469 = vmul.u32 %v5468, 18
      %v5470 = vsub.s32 %v5464, %v5469
      %v5471 = vsub.s32 0, %v5470
      %v5472 = vsel %vm5462, %v5471, %v5470
      %vm5473 = vcmp.lt.s32.totalorder %v5087, 0
      %v5474 = vsub.s32 0, %v5087
      %v5475 = vsel %vm5473, %v5474, %v5087
      %v5476 = vmul.u32.u64.compose %v5475, 3817748708
      %v5477 = vextract.low.u32 %v5476
      %v5478 = vextract.high.u32 %v5476
      %v5479 = vshrl.u32 %v5478, 4
      %v5480 = vmul.u32 %v5479, 18
      %v5481 = vsub.s32 %v5475, %v5480
      %v5482 = vsub.s32 0, %v5481
      %v5483 = vsel %vm5473, %v5482, %v5481
      %vm5484 = vcmp.ne.s32.totalorder %v5098, 0
      %vm5485 = vcmp.ne.s32.totalorder %v5109, 0
      %vm5486 = vcmp.ne.s32.totalorder %v5120, 0
      %vm5487 = vcmp.ne.s32.totalorder %v5131, 0
      %vm5488 = vcmp.ne.s32.totalorder %v5142, 0
      %vm5489 = vcmp.ne.s32.totalorder %v5153, 0
      %vm5490 = vcmp.ne.s32.totalorder %v5164, 0
      %vm5491 = vcmp.ne.s32.totalorder %v5175, 0
      %vm5492 = vcmp.ne.s32.totalorder %v5186, 0
      %vm5493 = vcmp.ne.s32.totalorder %v5197, 0
      %vm5494 = vcmp.ne.s32.totalorder %v5208, 0
      %vm5495 = vcmp.ne.s32.totalorder %v5219, 0
      %vm5496 = vcmp.ne.s32.totalorder %v5230, 0
      %vm5497 = vcmp.ne.s32.totalorder %v5241, 0
      %vm5498 = vcmp.ne.s32.totalorder %v5252, 0
      %vm5499 = vcmp.ne.s32.totalorder %v5263, 0
      %vm5500 = vcmp.ne.s32.totalorder %v5274, 0
      %vm5501 = vcmp.ne.s32.totalorder %v5285, 0
      %vm5502 = vcmp.ne.s32.totalorder %v5296, 0
      %vm5503 = vcmp.ne.s32.totalorder %v5307, 0
      %vm5504 = vcmp.ne.s32.totalorder %v5318, 0
      %vm5505 = vcmp.ne.s32.totalorder %v5329, 0
      %vm5506 = vcmp.ne.s32.totalorder %v5340, 0
      %vm5507 = vcmp.ne.s32.totalorder %v5351, 0
      %vm5508 = vcmp.ne.s32.totalorder %v5362, 0
      %vm5509 = vcmp.ne.s32.totalorder %v5373, 0
      %vm5510 = vcmp.ne.s32.totalorder %v5384, 0
      %vm5511 = vcmp.ne.s32.totalorder %v5395, 0
      %vm5512 = vcmp.ne.s32.totalorder %v5406, 0
      %vm5513 = vcmp.ne.s32.totalorder %v5417, 0
      %vm5514 = vcmp.ne.s32.totalorder %v5428, 0
      %vm5515 = vcmp.ne.s32.totalorder %v5439, 0
      %vm5516 = vcmp.ne.s32.totalorder %v5450, 0
      %vm5517 = vcmp.ne.s32.totalorder %v5461, 0
      %vm5518 = vcmp.ne.s32.totalorder %v5472, 0
      %vm5519 = vcmp.ne.s32.totalorder %v5483, 0
      %vm5520 = vcmp.lt.s32.totalorder %v5098, 0
      %vm5521 = vcmp.lt.s32.totalorder %v5109, 0
      %vm5522 = vcmp.lt.s32.totalorder %v5120, 0
      %vm5523 = vcmp.lt.s32.totalorder %v5131, 0
      %vm5524 = vcmp.lt.s32.totalorder %v5142, 0
      %vm5525 = vcmp.lt.s32.totalorder %v5153, 0
      %vm5526 = vcmp.lt.s32.totalorder %v5164, 0
      %vm5527 = vcmp.lt.s32.totalorder %v5175, 0
      %vm5528 = vcmp.lt.s32.totalorder %v5186, 0
      %vm5529 = vcmp.lt.s32.totalorder %v5197, 0
      %vm5530 = vcmp.lt.s32.totalorder %v5208, 0
      %vm5531 = vcmp.lt.s32.totalorder %v5219, 0
      %vm5532 = vcmp.lt.s32.totalorder %v5230, 0
      %vm5533 = vcmp.lt.s32.totalorder %v5241, 0
      %vm5534 = vcmp.lt.s32.totalorder %v5252, 0
      %vm5535 = vcmp.lt.s32.totalorder %v5263, 0
      %vm5536 = vcmp.lt.s32.totalorder %v5274, 0
      %vm5537 = vcmp.lt.s32.totalorder %v5285, 0
      %vm5538 = vcmp.lt.s32.totalorder %v5296, 0
      %vm5539 = vcmp.lt.s32.totalorder %v5307, 0
      %vm5540 = vcmp.lt.s32.totalorder %v5318, 0
      %vm5541 = vcmp.lt.s32.totalorder %v5329, 0
      %vm5542 = vcmp.lt.s32.totalorder %v5340, 0
      %vm5543 = vcmp.lt.s32.totalorder %v5351, 0
      %vm5544 = vcmp.lt.s32.totalorder %v5362, 0
      %vm5545 = vcmp.lt.s32.totalorder %v5373, 0
      %vm5546 = vcmp.lt.s32.totalorder %v5384, 0
      %vm5547 = vcmp.lt.s32.totalorder %v5395, 0
      %vm5548 = vcmp.lt.s32.totalorder %v5406, 0
      %vm5549 = vcmp.lt.s32.totalorder %v5417, 0
      %vm5550 = vcmp.lt.s32.totalorder %v5428, 0
      %vm5551 = vcmp.lt.s32.totalorder %v5439, 0
      %vm5552 = vcmp.lt.s32.totalorder %v5450, 0
      %vm5553 = vcmp.lt.s32.totalorder %v5461, 0
      %vm5554 = vcmp.lt.s32.totalorder %v5472, 0
      %vm5555 = vcmp.lt.s32.totalorder %v5483, 0
      %vm5556 = vmand %vm5520, %vm5484
      %vm5557 = vmand %vm5521, %vm5485
      %vm5558 = vmand %vm5522, %vm5486
      %vm5559 = vmand %vm5523, %vm5487
      %vm5560 = vmand %vm5524, %vm5488
      %vm5561 = vmand %vm5525, %vm5489
      %vm5562 = vmand %vm5526, %vm5490
      %vm5563 = vmand %vm5527, %vm5491
      %vm5564 = vmand %vm5528, %vm5492
      %vm5565 = vmand %vm5529, %vm5493
      %vm5566 = vmand %vm5530, %vm5494
      %vm5567 = vmand %vm5531, %vm5495
      %vm5568 = vmand %vm5532, %vm5496
      %vm5569 = vmand %vm5533, %vm5497
      %vm5570 = vmand %vm5534, %vm5498
      %vm5571 = vmand %vm5535, %vm5499
      %vm5572 = vmand %vm5536, %vm5500
      %vm5573 = vmand %vm5537, %vm5501
      %vm5574 = vmand %vm5538, %vm5502
      %vm5575 = vmand %vm5539, %vm5503
      %vm5576 = vmand %vm5540, %vm5504
      %vm5577 = vmand %vm5541, %vm5505
      %vm5578 = vmand %vm5542, %vm5506
      %vm5579 = vmand %vm5543, %vm5507
      %vm5580 = vmand %vm5544, %vm5508
      %vm5581 = vmand %vm5545, %vm5509
      %vm5582 = vmand %vm5546, %vm5510
      %vm5583 = vmand %vm5547, %vm5511
      %vm5584 = vmand %vm5548, %vm5512
      %vm5585 = vmand %vm5549, %vm5513
      %vm5586 = vmand %vm5550, %vm5514
      %vm5587 = vmand %vm5551, %vm5515
      %vm5588 = vmand %vm5552, %vm5516
      %vm5589 = vmand %vm5553, %vm5517
      %vm5590 = vmand %vm5554, %vm5518
      %vm5591 = vmand %vm5555, %vm5519
      %v5592 = vadd.s32 %v5098, 18
      %v5593 = vadd.s32 %v5109, 18
      %v5594 = vadd.s32 %v5120, 18
      %v5595 = vadd.s32 %v5131, 18
      %v5596 = vadd.s32 %v5142, 18
      %v5597 = vadd.s32 %v5153, 18
      %v5598 = vadd.s32 %v5164, 18
      %v5599 = vadd.s32 %v5175, 18
      %v5600 = vadd.s32 %v5186, 18
      %v5601 = vadd.s32 %v5197, 18
      %v5602 = vadd.s32 %v5208, 18
      %v5603 = vadd.s32 %v5219, 18
      %v5604 = vadd.s32 %v5230, 18
      %v5605 = vadd.s32 %v5241, 18
      %v5606 = vadd.s32 %v5252, 18
      %v5607 = vadd.s32 %v5263, 18
      %v5608 = vadd.s32 %v5274, 18
      %v5609 = vadd.s32 %v5285, 18
      %v5610 = vadd.s32 %v5296, 18
      %v5611 = vadd.s32 %v5307, 18
      %v5612 = vadd.s32 %v5318, 18
      %v5613 = vadd.s32 %v5329, 18
      %v5614 = vadd.s32 %v5340, 18
      %v5615 = vadd.s32 %v5351, 18
      %v5616 = vadd.s32 %v5362, 18
      %v5617 = vadd.s32 %v5373, 18
      %v5618 = vadd.s32 %v5384, 18
      %v5619 = vadd.s32 %v5395, 18
      %v5620 = vadd.s32 %v5406, 18
      %v5621 = vadd.s32 %v5417, 18
      %v5622 = vadd.s32 %v5428, 18
      %v5623 = vadd.s32 %v5439, 18
      %v5624 = vadd.s32 %v5450, 18
      %v5625 = vadd.s32 %v5461, 18
      %v5626 = vadd.s32 %v5472, 18
      %v5627 = vadd.s32 %v5483, 18
      %v5628 = vsel %vm5556, %v5592, %v5098
      %v5629 = vsel %vm5557, %v5593, %v5109
      %v5630 = vsel %vm5558, %v5594, %v5120
      %v5631 = vsel %vm5559, %v5595, %v5131
      %v5632 = vsel %vm5560, %v5596, %v5142
      %v5633 = vsel %vm5561, %v5597, %v5153
      %v5634 = vsel %vm5562, %v5598, %v5164
      %v5635 = vsel %vm5563, %v5599, %v5175
      %v5636 = vsel %vm5564, %v5600, %v5186
      %v5637 = vsel %vm5565, %v5601, %v5197
      %v5638 = vsel %vm5566, %v5602, %v5208
      %v5639 = vsel %vm5567, %v5603, %v5219
      %v5640 = vsel %vm5568, %v5604, %v5230
      %v5641 = vsel %vm5569, %v5605, %v5241
      %v5642 = vsel %vm5570, %v5606, %v5252
      %v5643 = vsel %vm5571, %v5607, %v5263
      %v5644 = vsel %vm5572, %v5608, %v5274
      %v5645 = vsel %vm5573, %v5609, %v5285
      %v5646 = vsel %vm5574, %v5610, %v5296
      %v5647 = vsel %vm5575, %v5611, %v5307
      %v5648 = vsel %vm5576, %v5612, %v5318
      %v5649 = vsel %vm5577, %v5613, %v5329
      %v5650 = vsel %vm5578, %v5614, %v5340
      %v5651 = vsel %vm5579, %v5615, %v5351
      %v5652 = vsel %vm5580, %v5616, %v5362
      %v5653 = vsel %vm5581, %v5617, %v5373
      %v5654 = vsel %vm5582, %v5618, %v5384
      %v5655 = vsel %vm5583, %v5619, %v5395
      %v5656 = vsel %vm5584, %v5620, %v5406
      %v5657 = vsel %vm5585, %v5621, %v5417
      %v5658 = vsel %vm5586, %v5622, %v5428
      %v5659 = vsel %vm5587, %v5623, %v5439
      %v5660 = vsel %vm5588, %v5624, %v5450
      %v5661 = vsel %vm5589, %v5625, %v5461
      %v5662 = vsel %vm5590, %v5626, %v5472
      %v5663 = vsel %vm5591, %v5627, %v5483
      %vm5664 = vcmp.lt.s32.totalorder %v5628, 16
      %vm5665 = vcmp.lt.s32.totalorder %v5629, 16
      %vm5666 = vcmp.lt.s32.totalorder %v5630, 16
      %vm5667 = vcmp.lt.s32.totalorder %v5631, 16
      %vm5668 = vcmp.lt.s32.totalorder %v5632, 16
      %vm5669 = vcmp.lt.s32.totalorder %v5633, 16
      %vm5670 = vcmp.lt.s32.totalorder %v5634, 16
      %vm5671 = vcmp.lt.s32.totalorder %v5635, 16
      %vm5672 = vcmp.lt.s32.totalorder %v5636, 16
      %vm5673 = vcmp.lt.s32.totalorder %v5637, 16
      %vm5674 = vcmp.lt.s32.totalorder %v5638, 16
      %vm5675 = vcmp.lt.s32.totalorder %v5639, 16
      %vm5676 = vcmp.lt.s32.totalorder %v5640, 16
      %vm5677 = vcmp.lt.s32.totalorder %v5641, 16
      %vm5678 = vcmp.lt.s32.totalorder %v5642, 16
      %vm5679 = vcmp.lt.s32.totalorder %v5643, 16
      %vm5680 = vcmp.lt.s32.totalorder %v5644, 16
      %vm5681 = vcmp.lt.s32.totalorder %v5645, 16
      %vm5682 = vcmp.lt.s32.totalorder %v5646, 16
      %vm5683 = vcmp.lt.s32.totalorder %v5647, 16
      %vm5684 = vcmp.lt.s32.totalorder %v5648, 16
      %vm5685 = vcmp.lt.s32.totalorder %v5649, 16
      %vm5686 = vcmp.lt.s32.totalorder %v5650, 16
      %vm5687 = vcmp.lt.s32.totalorder %v5651, 16
      %vm5688 = vcmp.lt.s32.totalorder %v5652, 16
      %vm5689 = vcmp.lt.s32.totalorder %v5653, 16
      %vm5690 = vcmp.lt.s32.totalorder %v5654, 16
      %vm5691 = vcmp.lt.s32.totalorder %v5655, 16
      %vm5692 = vcmp.lt.s32.totalorder %v5656, 16
      %vm5693 = vcmp.lt.s32.totalorder %v5657, 16
      %vm5694 = vcmp.lt.s32.totalorder %v5658, 16
      %vm5695 = vcmp.lt.s32.totalorder %v5659, 16
      %vm5696 = vcmp.lt.s32.totalorder %v5660, 16
      %vm5697 = vcmp.lt.s32.totalorder %v5661, 16
      %vm5698 = vcmp.lt.s32.totalorder %v5662, 16
      %vm5699 = vcmp.lt.s32.totalorder %v5663, 16
      %v5700 = vsel %vm5664, 1, 0
      %v5701 = vsel %vm5665, 1, 0
      %v5702 = vsel %vm5666, 1, 0
      %v5703 = vsel %vm5667, 1, 0
      %v5704 = vsel %vm5668, 1, 0
      %v5705 = vsel %vm5669, 1, 0
      %v5706 = vsel %vm5670, 1, 0
      %v5707 = vsel %vm5671, 1, 0
      %v5708 = vsel %vm5672, 1, 0
      %v5709 = vsel %vm5673, 1, 0
      %v5710 = vsel %vm5674, 1, 0
      %v5711 = vsel %vm5675, 1, 0
      %v5712 = vsel %vm5676, 1, 0
      %v5713 = vsel %vm5677, 1, 0
      %v5714 = vsel %vm5678, 1, 0
      %v5715 = vsel %vm5679, 1, 0
      %v5716 = vsel %vm5680, 1, 0
      %v5717 = vsel %vm5681, 1, 0
      %v5718 = vsel %vm5682, 1, 0
      %v5719 = vsel %vm5683, 1, 0
      %v5720 = vsel %vm5684, 1, 0
      %v5721 = vsel %vm5685, 1, 0
      %v5722 = vsel %vm5686, 1, 0
      %v5723 = vsel %vm5687, 1, 0
      %v5724 = vsel %vm5688, 1, 0
      %v5725 = vsel %vm5689, 1, 0
      %v5726 = vsel %vm5690, 1, 0
      %v5727 = vsel %vm5691, 1, 0
      %v5728 = vsel %vm5692, 1, 0
      %v5729 = vsel %vm5693, 1, 0
      %v5730 = vsel %vm5694, 1, 0
      %v5731 = vsel %vm5695, 1, 0
      %v5732 = vsel %vm5696, 1, 0
      %v5733 = vsel %vm5697, 1, 0
      %v5734 = vsel %vm5698, 1, 0
      %v5735 = vsel %vm5699, 1, 0
      %vm5736 = vcmp.eq.s32.totalorder %v5700, 1
      %vm5737 = vcmp.eq.s32.totalorder %v5701, 1
      %vm5738 = vcmp.eq.s32.totalorder %v5702, 1
      %vm5739 = vcmp.eq.s32.totalorder %v5703, 1
      %vm5740 = vcmp.eq.s32.totalorder %v5704, 1
      %vm5741 = vcmp.eq.s32.totalorder %v5705, 1
      %vm5742 = vcmp.eq.s32.totalorder %v5706, 1
      %vm5743 = vcmp.eq.s32.totalorder %v5707, 1
      %vm5744 = vcmp.eq.s32.totalorder %v5708, 1
      %vm5745 = vcmp.eq.s32.totalorder %v5709, 1
      %vm5746 = vcmp.eq.s32.totalorder %v5710, 1
      %vm5747 = vcmp.eq.s32.totalorder %v5711, 1
      %vm5748 = vcmp.eq.s32.totalorder %v5712, 1
      %vm5749 = vcmp.eq.s32.totalorder %v5713, 1
      %vm5750 = vcmp.eq.s32.totalorder %v5714, 1
      %vm5751 = vcmp.eq.s32.totalorder %v5715, 1
      %vm5752 = vcmp.eq.s32.totalorder %v5716, 1
      %vm5753 = vcmp.eq.s32.totalorder %v5717, 1
      %vm5754 = vcmp.eq.s32.totalorder %v5718, 1
      %vm5755 = vcmp.eq.s32.totalorder %v5719, 1
      %vm5756 = vcmp.eq.s32.totalorder %v5720, 1
      %vm5757 = vcmp.eq.s32.totalorder %v5721, 1
      %vm5758 = vcmp.eq.s32.totalorder %v5722, 1
      %vm5759 = vcmp.eq.s32.totalorder %v5723, 1
      %vm5760 = vcmp.eq.s32.totalorder %v5724, 1
      %vm5761 = vcmp.eq.s32.totalorder %v5725, 1
      %vm5762 = vcmp.eq.s32.totalorder %v5726, 1
      %vm5763 = vcmp.eq.s32.totalorder %v5727, 1
      %vm5764 = vcmp.eq.s32.totalorder %v5728, 1
      %vm5765 = vcmp.eq.s32.totalorder %v5729, 1
      %vm5766 = vcmp.eq.s32.totalorder %v5730, 1
      %vm5767 = vcmp.eq.s32.totalorder %v5731, 1
      %vm5768 = vcmp.eq.s32.totalorder %v5732, 1
      %vm5769 = vcmp.eq.s32.totalorder %v5733, 1
      %vm5770 = vcmp.eq.s32.totalorder %v5734, 1
      %vm5771 = vcmp.eq.s32.totalorder %v5735, 1
      %v5772 = vsel %vm5736, %v5015, 0.0
      %v5773 = vsel %vm5737, %v5016, 0.0
      %v5774 = vsel %vm5738, %v5017, 0.0
      %v5775 = vsel %vm5739, %v5018, 0.0
      %v5776 = vsel %vm5740, %v5019, 0.0
      %v5777 = vsel %vm5741, %v5020, 0.0
      %v5778 = vsel %vm5742, %v5021, 0.0
      %v5779 = vsel %vm5743, %v5022, 0.0
      %v5780 = vsel %vm5744, %v5023, 0.0
      %v5781 = vsel %vm5745, %v5024, 0.0
      %v5782 = vsel %vm5746, %v5025, 0.0
      %v5783 = vsel %vm5747, %v5026, 0.0
      %v5784 = vsel %vm5748, %v5027, 0.0
      %v5785 = vsel %vm5749, %v5028, 0.0
      %v5786 = vsel %vm5750, %v5029, 0.0
      %v5787 = vsel %vm5751, %v5030, 0.0
      %v5788 = vsel %vm5752, %v5031, 0.0
      %v5789 = vsel %vm5753, %v5032, 0.0
      %v5790 = vsel %vm5754, %v5033, 0.0
      %v5791 = vsel %vm5755, %v5034, 0.0
      %v5792 = vsel %vm5756, %v5035, 0.0
      %v5793 = vsel %vm5757, %v5036, 0.0
      %v5794 = vsel %vm5758, %v5037, 0.0
      %v5795 = vsel %vm5759, %v5038, 0.0
      %v5796 = vsel %vm5760, %v5039, 0.0
      %v5797 = vsel %vm5761, %v5040, 0.0
      %v5798 = vsel %vm5762, %v5041, 0.0
      %v5799 = vsel %vm5763, %v5042, 0.0
      %v5800 = vsel %vm5764, %v5043, 0.0
      %v5801 = vsel %vm5765, %v5044, 0.0
      %v5802 = vsel %vm5766, %v5045, 0.0
      %v5803 = vsel %vm5767, %v5046, 0.0
      %v5804 = vsel %vm5768, %v5047, 0.0
      %v5805 = vsel %vm5769, %v5048, 0.0
      %v5806 = vsel %vm5770, %v5049, 0.0
      %v5807 = vsel %vm5771, %v5050, 0.0
      %v5808 = vadd.f32 %v5772, %v5773
      %v5809 = vadd.f32 %v5808, %v5774
      %v5810 = vadd.f32 %v5809, %v5775
      %v5811 = vadd.f32 %v5810, %v5776
      %v5812 = vadd.f32 %v5811, %v5777
      %v5813 = vadd.f32 %v5812, %v5778
      %v5814 = vadd.f32 %v5813, %v5779
      %v5815 = vadd.f32 %v5814, %v5780
      %v5816 = vadd.f32 %v5815, %v5781
      %v5817 = vadd.f32 %v5816, %v5782
      %v5818 = vadd.f32 %v5817, %v5783
      %v5819 = vadd.f32 %v5818, %v5784
      %v5820 = vadd.f32 %v5819, %v5785
      %v5821 = vadd.f32 %v5820, %v5786
      %v5822 = vadd.f32 %v5821, %v5787
      %v5823 = vadd.f32 %v5822, %v5788
      %v5824 = vadd.f32 %v5823, %v5789
      %v5825 = vadd.f32 %v5824, %v5790
      %v5826 = vadd.f32 %v5825, %v5791
      %v5827 = vadd.f32 %v5826, %v5792
      %v5828 = vadd.f32 %v5827, %v5793
      %v5829 = vadd.f32 %v5828, %v5794
      %v5830 = vadd.f32 %v5829, %v5795
      %v5831 = vadd.f32 %v5830, %v5796
      %v5832 = vadd.f32 %v5831, %v5797
      %v5833 = vadd.f32 %v5832, %v5798
      %v5834 = vadd.f32 %v5833, %v5799
      %v5835 = vadd.f32 %v5834, %v5800
      %v5836 = vadd.f32 %v5835, %v5801
      %v5837 = vadd.f32 %v5836, %v5802
      %v5838 = vadd.f32 %v5837, %v5803
      %v5839 = vadd.f32 %v5838, %v5804
      %v5840 = vadd.f32 %v5839, %v5805
      %v5841 = vadd.f32 %v5840, %v5806
      %v5842 = vadd.f32 %v5841, %v5807
      %v5843 = vrot.slane %v5842, 4
      %v5844 = vadd.f32 %v5842, %v5843
      %v5845 = vrot.slane %v5844, 2
      %v5846 = vadd.f32 %v5844, %v5845
      %v5847 = vrot.slane %v5846, 1
      %v5848 = vadd.f32 %v5846, %v5847
      %v5849 = vmul.f32 %v5772, %v5772
      %v5850 = vmul.f32 %v5773, %v5773
      %v5851 = vmul.f32 %v5774, %v5774
      %v5852 = vmul.f32 %v5775, %v5775
      %v5853 = vmul.f32 %v5776, %v5776
      %v5854 = vmul.f32 %v5777, %v5777
      %v5855 = vmul.f32 %v5778, %v5778
      %v5856 = vmul.f32 %v5779, %v5779
      %v5857 = vmul.f32 %v5780, %v5780
      %v5858 = vmul.f32 %v5781, %v5781
      %v5859 = vmul.f32 %v5782, %v5782
      %v5860 = vmul.f32 %v5783, %v5783
      %v5861 = vmul.f32 %v5784, %v5784
      %v5862 = vmul.f32 %v5785, %v5785
      %v5863 = vmul.f32 %v5786, %v5786
      %v5864 = vmul.f32 %v5787, %v5787
      %v5865 = vmul.f32 %v5788, %v5788
      %v5866 = vmul.f32 %v5789, %v5789
      %v5867 = vmul.f32 %v5790, %v5790
      %v5868 = vmul.f32 %v5791, %v5791
      %v5869 = vmul.f32 %v5792, %v5792
      %v5870 = vmul.f32 %v5793, %v5793
      %v5871 = vmul.f32 %v5794, %v5794
      %v5872 = vmul.f32 %v5795, %v5795
      %v5873 = vmul.f32 %v5796, %v5796
      %v5874 = vmul.f32 %v5797, %v5797
      %v5875 = vmul.f32 %v5798, %v5798
      %v5876 = vmul.f32 %v5799, %v5799
      %v5877 = vmul.f32 %v5800, %v5800
      %v5878 = vmul.f32 %v5801, %v5801
      %v5879 = vmul.f32 %v5802, %v5802
      %v5880 = vmul.f32 %v5803, %v5803
      %v5881 = vmul.f32 %v5804, %v5804
      %v5882 = vmul.f32 %v5805, %v5805
      %v5883 = vmul.f32 %v5806, %v5806
      %v5884 = vmul.f32 %v5807, %v5807
      %v5885 = vadd.f32 %v5849, %v5850
      %v5886 = vadd.f32 %v5885, %v5851
      %v5887 = vadd.f32 %v5886, %v5852
      %v5888 = vadd.f32 %v5887, %v5853
      %v5889 = vadd.f32 %v5888, %v5854
      %v5890 = vadd.f32 %v5889, %v5855
      %v5891 = vadd.f32 %v5890, %v5856
      %v5892 = vadd.f32 %v5891, %v5857
      %v5893 = vadd.f32 %v5892, %v5858
      %v5894 = vadd.f32 %v5893, %v5859
      %v5895 = vadd.f32 %v5894, %v5860
      %v5896 = vadd.f32 %v5895, %v5861
      %v5897 = vadd.f32 %v5896, %v5862
      %v5898 = vadd.f32 %v5897, %v5863
      %v5899 = vadd.f32 %v5898, %v5864
      %v5900 = vadd.f32 %v5899, %v5865
      %v5901 = vadd.f32 %v5900, %v5866
      %v5902 = vadd.f32 %v5901, %v5867
      %v5903 = vadd.f32 %v5902, %v5868
      %v5904 = vadd.f32 %v5903, %v5869
      %v5905 = vadd.f32 %v5904, %v5870
      %v5906 = vadd.f32 %v5905, %v5871
      %v5907 = vadd.f32 %v5906, %v5872
      %v5908 = vadd.f32 %v5907, %v5873
      %v5909 = vadd.f32 %v5908, %v5874
      %v5910 = vadd.f32 %v5909, %v5875
      %v5911 = vadd.f32 %v5910, %v5876
      %v5912 = vadd.f32 %v5911, %v5877
      %v5913 = vadd.f32 %v5912, %v5878
      %v5914 = vadd.f32 %v5913, %v5879
      %v5915 = vadd.f32 %v5914, %v5880
      %v5916 = vadd.f32 %v5915, %v5881
      %v5917 = vadd.f32 %v5916, %v5882
      %v5918 = vadd.f32 %v5917, %v5883
      %v5919 = vadd.f32 %v5918, %v5884
      %v5920 = vrot.slane %v5919, 4
      %v5921 = vadd.f32 %v5919, %v5920
      %v5922 = vrot.slane %v5921, 2
      %v5923 = vadd.f32 %v5921, %v5922
      %v5924 = vrot.slane %v5923, 1
      %v5925 = vadd.f32 %v5923, %v5924
      %5927 = vrot.lane.b32.xlu0 %v5848, 96
      %v5928 = vpop.permute.xlu0 %5927
      %v5930 = vadd.f32 %v5848, %v5928
      %5931 = vrot.lane.b32.xlu0 %v5848, 64
      %v5932 = vpop.permute.xlu0 %5931
      %v5934 = vadd.f32 %v5930, %v5932
      %5935 = vrot.lane.b32.xlu0 %v5848, 32
      %v5936 = vpop.permute.xlu0 %5935
      %v5938 = vadd.f32 %v5934, %v5936
      %5940 = vrot.lane.b32.xlu0 %v5925, 96
      %v5941 = vpop.permute.xlu0 %5940
      %v5943 = vadd.f32 %v5925, %v5941
      %5944 = vrot.lane.b32.xlu0 %v5925, 64
      %v5945 = vpop.permute.xlu0 %5944
      %v5947 = vadd.f32 %v5943, %v5945
      %5948 = vrot.lane.b32.xlu0 %v5925, 32
      %v5949 = vpop.permute.xlu0 %5948
      %v5951 = vadd.f32 %v5947, %v5949
      %v5952 = vmul.f32 %v5938, 0.0009765625
      %v5953 = vmul.f32 %v5951, 0.0009765625
      %v5954 = vmul.f32 %v5952, %v5952
      %v5955 = vsub.f32 %v5953, %v5954
      %v5956 = vmax.f32 %v5955, 0.0
      %v5957 = vadd.f32 %v5956, 1e-05
      %v5958 = vrsqrt.pop %v5957
      %5960 = vrot.lane.b32.xlu0 %v5952, 32
      %v5961 = vpop.permute.xlu0 %5960
      %5963 = vrot.lane.b32.xlu0 %v5952, 64
      %v5964 = vpop.permute.xlu0 %5963
      %5966 = vrot.lane.b32.xlu0 %v5952, 96
      %v5967 = vpop.permute.xlu0 %5966
      %vm5969 = vcmask 261120
      %v5970 = vsel %vm5969, %v5952, %v5961
      %vm5971 = vcmask 523264
      %v5972 = vsel %vm5971, %v5970, %v5964
      %vm5973 = vcmask 785408
      %v5974 = vsel %vm5973, %v5972, %v5967
      %5976 = vrot.lane.b32.xlu0 %v5958, 32
      %v5977 = vpop.permute.xlu0 %5976
      %5979 = vrot.lane.b32.xlu0 %v5958, 64
      %v5980 = vpop.permute.xlu0 %5979
      %5982 = vrot.lane.b32.xlu0 %v5958, 96
      %v5983 = vpop.permute.xlu0 %5982
      %v5985 = vsel %vm5969, %v5958, %v5977
      %v5986 = vsel %vm5971, %v5985, %v5980
      %v5987 = vsel %vm5973, %v5986, %v5983
      %v5988 = vlaneseq
      %v5989 = vshrl.u32 %v5988, 7
      %v5990 = vsub.s32 0, %v5989
      %v5991 = vrot.slane %v5974, %v5990
      %v5992 = vsub.f32 %v5015, %v5991
      %v5993 = vsub.f32 %v5016, %v5991
      %v5994 = vsub.f32 %v5017, %v5991
      %v5995 = vsub.f32 %v5018, %v5991
      %v5996 = vsub.f32 %v5019, %v5991
      %v5997 = vsub.f32 %v5020, %v5991
      %v5998 = vsub.f32 %v5021, %v5991
      %v5999 = vsub.f32 %v5022, %v5991
      %v6000 = vsub.f32 %v5023, %v5991
      %v6001 = vsub.f32 %v5024, %v5991
      %v6002 = vsub.f32 %v5025, %v5991
      %v6003 = vsub.f32 %v5026, %v5991
      %v6004 = vsub.f32 %v5027, %v5991
      %v6005 = vsub.f32 %v5028, %v5991
      %v6006 = vsub.f32 %v5029, %v5991
      %v6007 = vsub.f32 %v5030, %v5991
      %v6008 = vsub.f32 %v5031, %v5991
      %v6009 = vsub.f32 %v5032, %v5991
      %v6010 = vsub.f32 %v5033, %v5991
      %v6011 = vsub.f32 %v5034, %v5991
      %v6012 = vsub.f32 %v5035, %v5991
      %v6013 = vsub.f32 %v5036, %v5991
      %v6014 = vsub.f32 %v5037, %v5991
      %v6015 = vsub.f32 %v5038, %v5991
      %v6016 = vsub.f32 %v5039, %v5991
      %v6017 = vsub.f32 %v5040, %v5991
      %v6018 = vsub.f32 %v5041, %v5991
      %v6019 = vsub.f32 %v5042, %v5991
      %v6020 = vsub.f32 %v5043, %v5991
      %v6021 = vsub.f32 %v5044, %v5991
      %v6022 = vsub.f32 %v5045, %v5991
      %v6023 = vsub.f32 %v5046, %v5991
      %v6024 = vsub.f32 %v5047, %v5991
      %v6025 = vsub.f32 %v5048, %v5991
      %v6026 = vsub.f32 %v5049, %v5991
      %v6027 = vsub.f32 %v5050, %v5991
      %v6028 = vlaneseq
      %v6029 = vshrl.u32 %v6028, 7
      %v6030 = vsub.s32 0, %v6029
      %v6031 = vrot.slane %v5987, %v6030
      %v6032 = vmul.f32 %v5992, %v6031
      %v6033 = vmul.f32 %v5993, %v6031
      %v6034 = vmul.f32 %v5994, %v6031
      %v6035 = vmul.f32 %v5995, %v6031
      %v6036 = vmul.f32 %v5996, %v6031
      %v6037 = vmul.f32 %v5997, %v6031
      %v6038 = vmul.f32 %v5998, %v6031
      %v6039 = vmul.f32 %v5999, %v6031
      %v6040 = vmul.f32 %v6000, %v6031
      %v6041 = vmul.f32 %v6001, %v6031
      %v6042 = vmul.f32 %v6002, %v6031
      %v6043 = vmul.f32 %v6003, %v6031
      %v6044 = vmul.f32 %v6004, %v6031
      %v6045 = vmul.f32 %v6005, %v6031
      %v6046 = vmul.f32 %v6006, %v6031
      %v6047 = vmul.f32 %v6007, %v6031
      %v6048 = vmul.f32 %v6008, %v6031
      %v6049 = vmul.f32 %v6009, %v6031
      %v6050 = vmul.f32 %v6010, %v6031
      %v6051 = vmul.f32 %v6011, %v6031
      %v6052 = vmul.f32 %v6012, %v6031
      %v6053 = vmul.f32 %v6013, %v6031
      %v6054 = vmul.f32 %v6014, %v6031
      %v6055 = vmul.f32 %v6015, %v6031
      %v6056 = vmul.f32 %v6016, %v6031
      %v6057 = vmul.f32 %v6017, %v6031
      %v6058 = vmul.f32 %v6018, %v6031
      %v6059 = vmul.f32 %v6019, %v6031
      %v6060 = vmul.f32 %v6020, %v6031
      %v6061 = vmul.f32 %v6021, %v6031
      %v6062 = vmul.f32 %v6022, %v6031
      %v6063 = vmul.f32 %v6023, %v6031
      %v6064 = vmul.f32 %v6024, %v6031
      %v6065 = vmul.f32 %v6025, %v6031
      %v6066 = vmul.f32 %v6026, %v6031
      %v6067 = vmul.f32 %v6027, %v6031
      %v6068 = vmax.f32 %v6032, 0.0
      %v6069 = vmax.f32 %v6033, 0.0
      %v6070 = vmax.f32 %v6034, 0.0
      %v6071 = vmax.f32 %v6035, 0.0
      %v6072 = vmax.f32 %v6036, 0.0
      %v6073 = vmax.f32 %v6037, 0.0
      %v6074 = vmax.f32 %v6038, 0.0
      %v6075 = vmax.f32 %v6039, 0.0
      %v6076 = vmax.f32 %v6040, 0.0
      %v6077 = vmax.f32 %v6041, 0.0
      %v6078 = vmax.f32 %v6042, 0.0
      %v6079 = vmax.f32 %v6043, 0.0
      %v6080 = vmax.f32 %v6044, 0.0
      %v6081 = vmax.f32 %v6045, 0.0
      %v6082 = vmax.f32 %v6046, 0.0
      %v6083 = vmax.f32 %v6047, 0.0
      %v6084 = vmax.f32 %v6048, 0.0
      %v6085 = vmax.f32 %v6049, 0.0
      %v6086 = vmax.f32 %v6050, 0.0
      %v6087 = vmax.f32 %v6051, 0.0
      %v6088 = vmax.f32 %v6052, 0.0
      %v6089 = vmax.f32 %v6053, 0.0
      %v6090 = vmax.f32 %v6054, 0.0
      %v6091 = vmax.f32 %v6055, 0.0
      %v6092 = vmax.f32 %v6056, 0.0
      %v6093 = vmax.f32 %v6057, 0.0
      %v6094 = vmax.f32 %v6058, 0.0
      %v6095 = vmax.f32 %v6059, 0.0
      %v6096 = vmax.f32 %v6060, 0.0
      %v6097 = vmax.f32 %v6061, 0.0
      %v6098 = vmax.f32 %v6062, 0.0
      %v6099 = vmax.f32 %v6063, 0.0
      %v6100 = vmax.f32 %v6064, 0.0
      %v6101 = vmax.f32 %v6065, 0.0
      %v6102 = vmax.f32 %v6066, 0.0
      %v6103 = vmax.f32 %v6067, 0.0
      %v6104 = vpack.c.bf16 %v6069, %v6068
      %v6105 = vpack.c.bf16 %v6071, %v6070
      %v6106 = vpack.c.bf16 %v6073, %v6072
      %v6107 = vpack.c.bf16 %v6075, %v6074
      %v6108 = vpack.c.bf16 %v6077, %v6076
      %v6109 = vpack.c.bf16 %v6079, %v6078
      %v6110 = vpack.c.bf16 %v6081, %v6080
      %v6111 = vpack.c.bf16 %v6083, %v6082
      %v6112 = vpack.c.bf16 %v6085, %v6084
      %v6113 = vpack.c.bf16 %v6087, %v6086
      %v6114 = vpack.c.bf16 %v6089, %v6088
      %v6115 = vpack.c.bf16 %v6091, %v6090
      %v6116 = vpack.c.bf16 %v6093, %v6092
      %v6117 = vpack.c.bf16 %v6095, %v6094
      %v6118 = vpack.c.bf16 %v6097, %v6096
      %v6119 = vpack.c.bf16 %v6099, %v6098
      %v6120 = vpack.c.bf16 %v6101, %v6100
      %v6121 = vpack.c.bf16 %v6103, %v6102
      %v6140 = vunpack.c.l.b16 %v6104
      %v6141 = vunpack.c.h.b16 %v6104
      %v6142 = vunpack.c.l.b16 %v6105
      %v6143 = vunpack.c.h.b16 %v6105
      %v6144 = vunpack.c.l.b16 %v6106
      %v6145 = vunpack.c.h.b16 %v6106
      %v6146 = vunpack.c.l.b16 %v6107
      %v6147 = vunpack.c.h.b16 %v6107
      %v6148 = vunpack.c.l.b16 %v6108
      %v6149 = vunpack.c.h.b16 %v6108
      %v6150 = vunpack.c.l.b16 %v6109
      %v6151 = vunpack.c.h.b16 %v6109
      %v6152 = vunpack.c.l.b16 %v6110
      %v6153 = vunpack.c.h.b16 %v6110
      %v6154 = vunpack.c.l.b16 %v6111
      %v6155 = vunpack.c.h.b16 %v6111
      %v6156 = vunpack.c.l.b16 %v6112
      %v6157 = vunpack.c.h.b16 %v6112
      %v6158 = vunpack.c.l.b16 %v6113
      %v6159 = vunpack.c.h.b16 %v6113
      %v6160 = vunpack.c.l.b16 %v6114
      %v6161 = vunpack.c.h.b16 %v6114
      %v6162 = vunpack.c.l.b16 %v6115
      %v6163 = vunpack.c.h.b16 %v6115
      %v6164 = vunpack.c.l.b16 %v6116
      %v6165 = vunpack.c.h.b16 %v6116
      %v6166 = vunpack.c.l.b16 %v6117
      %v6167 = vunpack.c.h.b16 %v6117
      %v6168 = vunpack.c.l.b16 %v6118
      %v6169 = vunpack.c.h.b16 %v6118
      %v6170 = vunpack.c.l.b16 %v6119
      %v6171 = vunpack.c.h.b16 %v6119
      %v6172 = vunpack.c.l.b16 %v6120
      %v6173 = vunpack.c.h.b16 %v6120
      %v6174 = vunpack.c.l.b16 %v6121
      %v6175 = vunpack.c.h.b16 %v6121
      %v6176 = vpack.c.b16 %v6140, %v6140
      %v6177 = vpack.c.b16 %v6141, %v6141
      %v6178 = vpack.c.b16 %v6142, %v6142
      %v6179 = vpack.c.b16 %v6143, %v6143
      %v6180 = vpack.c.b16 %v6144, %v6144
      %v6181 = vpack.c.b16 %v6145, %v6145
      %v6182 = vpack.c.b16 %v6146, %v6146
      %v6183 = vpack.c.b16 %v6147, %v6147
      %v6184 = vpack.c.b16 %v6148, %v6148
      %v6185 = vpack.c.b16 %v6149, %v6149
      %v6186 = vpack.c.b16 %v6150, %v6150
      %v6187 = vpack.c.b16 %v6151, %v6151
      %v6188 = vpack.c.b16 %v6152, %v6152
      %v6189 = vpack.c.b16 %v6153, %v6153
      %v6190 = vpack.c.b16 %v6154, %v6154
      %v6191 = vpack.c.b16 %v6155, %v6155
      %v6192 = vpack.c.b16 %v6156, %v6156
      %v6193 = vpack.c.b16 %v6157, %v6157
      %v6194 = vpack.c.b16 %v6158, %v6158
      %v6195 = vpack.c.b16 %v6159, %v6159
      %v6196 = vpack.c.b16 %v6160, %v6160
      %v6197 = vpack.c.b16 %v6161, %v6161
      %v6198 = vpack.c.b16 %v6162, %v6162
      %v6199 = vpack.c.b16 %v6163, %v6163
      %v6200 = vpack.c.b16 %v6164, %v6164
      %v6201 = vpack.c.b16 %v6165, %v6165
      %v6202 = vpack.c.b16 %v6166, %v6166
      %v6203 = vpack.c.b16 %v6167, %v6167
      %v6204 = vpack.c.b16 %v6168, %v6168
      %v6205 = vpack.c.b16 %v6169, %v6169
      %v6206 = vpack.c.b16 %v6170, %v6170
      %v6207 = vpack.c.b16 %v6171, %v6171
      %v6208 = vpack.c.b16 %v6172, %v6172
      %v6209 = vpack.c.b16 %v6173, %v6173
      %v6210 = vpack.c.b16 %v6174, %v6174
      %v6211 = vpack.c.b16 %v6175, %v6175
      %6248 = vst [vmem:[%s143] sm:$0xf] %v6176
      %6249 = vst [vmem:[%s143 + $0x4] sm:$0xf] %v6177
      %6250 = vst [vmem:[%s143 + $0x8] sm:$0xf] %v6178
      %6251 = vst [vmem:[%s143 + $0xc] sm:$0xf] %v6179
      %6252 = vst [vmem:[%s143 + $0x10] sm:$0xf] %v6180
      %6253 = vst [vmem:[%s143 + $0x14] sm:$0xf] %v6181
      %6254 = vst [vmem:[%s143 + $0x18] sm:$0xf] %v6182
      %6255 = vst [vmem:[%s143 + $0x1c] sm:$0xf] %v6183
      %6256 = vst [vmem:[%s143 + $0x20] sm:$0xf] %v6184
      %6257 = vst [vmem:[%s143 + $0x24] sm:$0xf] %v6185
      %6258 = vst [vmem:[%s143 + $0x28] sm:$0xf] %v6186
      %6259 = vst [vmem:[%s143 + $0x2c] sm:$0xf] %v6187
      %6260 = vst [vmem:[%s143 + $0x30] sm:$0xf] %v6188
      %6261 = vst [vmem:[%s143 + $0x34] sm:$0xf] %v6189
      %6262 = vst [vmem:[%s143 + $0x38] sm:$0xf] %v6190
      %6263 = vst [vmem:[%s143 + $0x3c] sm:$0xf] %v6191
      %6264 = vst [vmem:[%s143 + $0x40] sm:$0xf] %v6192
      %6265 = vst [vmem:[%s143 + $0x44] sm:$0xf] %v6193
      %6266 = vst [vmem:[%s143 + $0x48] sm:$0xf] %v6194
      %6267 = vst [vmem:[%s143 + $0x4c] sm:$0xf] %v6195
      %6268 = vst [vmem:[%s143 + $0x50] sm:$0xf] %v6196
      %6269 = vst [vmem:[%s143 + $0x54] sm:$0xf] %v6197
      %6270 = vst [vmem:[%s143 + $0x58] sm:$0xf] %v6198
      %6271 = vst [vmem:[%s143 + $0x5c] sm:$0xf] %v6199
      %6272 = vst [vmem:[%s143 + $0x60] sm:$0xf] %v6200
      %6273 = vst [vmem:[%s143 + $0x64] sm:$0xf] %v6201
      %6274 = vst [vmem:[%s143 + $0x68] sm:$0xf] %v6202
      %6275 = vst [vmem:[%s143 + $0x6c] sm:$0xf] %v6203
      %6276 = vst [vmem:[%s143 + $0x70] sm:$0xf] %v6204
      %6277 = vst [vmem:[%s143 + $0x74] sm:$0xf] %v6205
      %6278 = vst [vmem:[%s143 + $0x78] sm:$0xf] %v6206
      %6279 = vst [vmem:[%s143 + $0x7c] sm:$0xf] %v6207
      %6280 = vst [vmem:[%s143 + $0x80] sm:$0xf] %v6208
      %6281 = vst [vmem:[%s143 + $0x84] sm:$0xf] %v6209
      %6282 = vst [vmem:[%s143 + $0x88] sm:$0xf] %v6210
      %6283 = vst [vmem:[%s143 + $0x8c] sm:$0xf] %v6211
      %p6284 = scmp.lt.s32.totalorder %s13, 1
      %s6285 = scalar_select %p6284, %s13, 1
      %s6286 = smul.addr %s6285, 36
      %s6287 = smul.addr %s6286, 4
      %s6288 = scalar_lea.vmem %s2, %s6287
      // Predicated region
      $region29: #{upsample.1} parent=27 // pred_check
        %p6289 = pneg %p78
      $region30: #{upsample.1} parent=27 // pred_check_branch
        %6291 = sbr.rel (%p6289) target = $region32
      $region31: #{upsample.1} parent=27 // pred_region
        _
      $region32: #{upsample.1} parent=27 // pred_fallthru
        _
    $region28: #{upsample.1} parent=5 // pred_fallthru
      _
    %p6292 = scmp.le.s32.totalorder 2, %s8
    // Predicated region
    $region33: #{upsample.1} parent=5 // pred_check
      %p6293 = pneg %p6292
    $region34: #{upsample.1} parent=5 // pred_check_branch
      %6295 = sbr.rel (%p6293) target = $region36
    $region35: #{upsample.1} parent=5 // pred_region
      %s6296 = ssub.s32 %s8, 2
      // Predicated region
      $region37: #{upsample.1} parent=35 // pred_check
        %p6297 = pneg %p84
      $region38: #{upsample.1} parent=35 // pred_check_branch
        %6299 = sbr.rel (%p6297) target = $region40
      $region39: #{upsample.1} parent=35 // pred_region
        %p6300 = scmp.lt.s32.totalorder %s14, 1
        %s6301 = scalar_select %p6300, %s14, 1
        %s6302 = smul.addr %s6301, 36
        %s6303 = smul.addr %s6302, 4
        %s6304 = scalar_lea.vmem %s2, %s6303
      $region40: #{upsample.1} parent=35 // pred_fallthru
        _
    $region36: #{upsample.1} parent=5 // pred_fallthru
      _
  $region6: #{upsample.1} parent=0 // loop_footer
    %s12 = sadd.s32 1, %s8
  $region7: #{upsample.1} parent=0 // loop_footer_branch
    %7 = sbr.rel target = $region3
  $region8: #{upsample.1} parent=0 // loop_exit
    _

</llo_original>
